<compile_context>
chip_gen: v7x
topology: tpu7x:2x2x1
jax: 0.10.0
libtpu: 0.0.40
codegen_flags: <defaults>
</compile_context>

<pallas_src>
import numpy as np
import jax
import jax.numpy as jnp
from jax.experimental import pallas as pl
from jax.experimental.pallas import tpu as pltpu


# ----------------------------------------------------------------------------
# Constant positional buffers (same math as the PyTorch generate_encoder)
# ----------------------------------------------------------------------------
def generate_encoder_np(in_channels, max_len):
    pos = np.arange(max_len, dtype=np.float64)[:, None]            # (L, 1)
    i = np.arange(in_channels, dtype=np.float64)[None, :]          # (1, C)
    angle_rates = 1.0 / np.power(10000.0, 2.0 * np.floor(i / 2.0) / in_channels)
    pe = pos * angle_rates                                          # (L, C)
    pe[:, 0::2] = np.sin(pe[:, 0::2])
    pe[:, 1::2] = np.cos(pe[:, 1::2])
    return pe


def build_position_buffers(in_channels, max_h=200, max_w=200):
    # PyTorch registers (1, C, max_h, 1) and (1, C, 1, max_w); we keep dense (C, L) forms.
    h_enc = jnp.asarray(generate_encoder_np(in_channels, max_h).T, jnp.float32)   # (C, max_h)
    w_enc = jnp.asarray(generate_encoder_np(in_channels, max_w).T, jnp.float32)   # (C, max_w)
    return h_enc, w_enc


def build_position_maps(h_enc, w_enc, H, W):
    """Materialize the lane-dense (C, H*W) positional slabs ONCE per (H, W) at setup.
       pe_h[c, h*W + w] = h_enc[c, h]      pe_w[c, h*W + w] = w_enc[c, w]"""
    pe_h = jnp.repeat(h_enc[:, :H], W, axis=1)                      # (C, H*W)
    pe_w = jnp.tile(w_enc[:, :W], (1, H))                           # (C, H*W)
    return pe_h, pe_w


def prepare_kernel_params(params):
    """One-time layout prep: Conv2d 1x1 weights stay in native (C_out, C_in) orientation
    (kernel computes W @ pooled_column); biases become (C, 1) channel-on-sublane columns."""
    C = params['h_w1'].shape[0]
    f32 = lambda v: jnp.asarray(v, jnp.float32)
    col = lambda v: jnp.asarray(v, jnp.float32).reshape(C, 1)
    return dict(h_w1=f32(params['h_w1']), h_b1=col(params['h_b1']),
                h_w2=f32(params['h_w2']), h_b2=col(params['h_b2']),
                w_w1=f32(params['w_w1']), w_b1=col(params['w_b1']),
                w_w2=f32(params['w_w2']), w_b2=col(params['w_b2']))


# ----------------------------------------------------------------------------
# Fused Pallas kernel: pool + 2x (1x1conv->relu->1x1conv->sigmoid) + broadcast add
# ----------------------------------------------------------------------------
def _ape_kernel(x_ref, peh_ref, pew_ref,
                w1h_ref, b1h_ref, w2h_ref, b2h_ref,
                w1w_ref, b1w_ref, w2w_ref, b2w_ref,
                o_ref):
    bblk = x_ref.shape[0]
    inv_hw = 1.0 / x_ref.shape[-1]

    # Constants (single-buffered, fetched once) hoisted out of the batch loop.
    pe_h = peh_ref[...]                                             # (C, HW) f32 lane-dense
    pe_w = pew_ref[...]                                             # (C, HW) f32 lane-dense
    w1h, b1h, w2h, b2h = w1h_ref[...], b1h_ref[...], w2h_ref[...], b2h_ref[...]
    w1w, b1w, w2w, b2w = w1w_ref[...], b1w_ref[...], w2w_ref[...], b2w_ref[...]

    def scale_mlp(pooled, w1, b1, w2, b2):
        # 1x1 convs on a (C,1,1) map == channel-mixing matvecs -> MXU (vector-extended slot),
        # keeping channel on sublanes so the result broadcasts straight onto pe_* with no
        # relayout.  (For bblk>1 these could be fused into one (C,C)x(C,bblk) matmul; kept
        # per-row for layout simplicity -- the MXU cost is negligible either way.)
        h1 = jnp.dot(w1, pooled, precision=jax.lax.Precision.HIGHEST,
                     preferred_element_type=jnp.float32) + b1        # (C, 1)
        h1 = jnp.maximum(h1, 0.0)
        z = jnp.dot(w2, h1, precision=jax.lax.Precision.HIGHEST,
                    preferred_element_type=jnp.float32) + b2         # (C, 1)
        return pl.reciprocal(1.0 + jnp.exp(-z))                      # sigmoid: EUP exp + rcp

    # Static unroll over the batch rows of this block (bblk <= 8).
    for b in range(bblk):
        xb = x_ref[b].astype(jnp.float32)                            # (C, HW) f32 compute
        # AdaptiveAvgPool2d(1): lane reduction -> (C, 1) channel column.
        pooled = jnp.sum(xb, axis=-1, keepdims=True) * inv_hw
        hs = scale_mlp(pooled, w1h, b1h, w2h, b2h)                   # (C, 1)
        ws = scale_mlp(pooled, w1w, b1w, w2w, b2w)                   # (C, 1)
        # out = x + h_scale*pe_h + w_scale*pe_w on the lane-dense (C, HW) slab.
        o_ref[b] = (xb + hs * pe_h + ws * pe_w).astype(o_ref.dtype)


def _choose_block_batch(B, C, HW, x_itemsize, const_bytes, vmem_budget=24 * 1024 * 1024):
    """Largest batch block (divisor of B, <=8) whose double-buffered in/out slabs plus
    single-buffered constants fit comfortably in scoped VMEM; prefer >=2 grid steps when
    B allows so both v7x TensorCores get work on the 'parallel' axis."""
    def footprint(bblk):
        slab = bblk * C * HW
        # in + out blocks double-buffered + ~2 f32 per-row temporaries + constants.
        return 4 * slab * x_itemsize + 2 * C * HW * 4 + const_bytes

    cands = [d for d in range(1, min(B, 8) + 1) if B % d == 0 and footprint(d) <= vmem_budget]
    if not cands:
        return 1
    if B >= 4:
        multi = [d for d in cands if B // d >= 2]
        if multi:
            cands = multi
    return max(cands)


def adaptive_2d_position_encoder(x_nchw, kparams, pe_h_map, pe_w_map):
    """Fused forward.  kparams / pe_*_map come from prepare_kernel_params /
    build_position_maps, built once at setup (NOT per call)."""
    B, C, H, W = x_nchw.shape
    HW = H * W
    x_flat = x_nchw.reshape(B, C, HW)           # contiguous NCHW -> free reshape, dtype kept

    const_bytes = (2 * C * HW + 4 * C * C + 4 * C) * 4
    bblk = _choose_block_batch(B, C, HW, x_nchw.dtype.itemsize, const_bytes)

    def _const_spec(shape):
        zeros = (0,) * len(shape)
        # constant index_map -> fetched once; Buffered(1) avoids a duplicated VMEM buffer.
        return pl.BlockSpec(shape, lambda b: zeros, pipeline_mode=pl.Buffered(1))

    out_flat = pl.pallas_call(
        _ape_kernel,
        out_shape=jax.ShapeDtypeStruct((B, C, HW), x_nchw.dtype),
        grid=(B // bblk,),
        in_specs=[
            pl.BlockSpec((bblk, C, HW), lambda b: (b, 0, 0)),        # x: streamed, double-buffered
            _const_spec((C, HW)),                                    # pe_h
            _const_spec((C, HW)),                                    # pe_w
            _const_spec((C, C)), _const_spec((C, 1)),                # h_scale conv1 (W, b)
            _const_spec((C, C)), _const_spec((C, 1)),                # h_scale conv2 (W, b)
            _const_spec((C, C)), _const_spec((C, 1)),                # w_scale conv1 (W, b)
            _const_spec((C, C)), _const_spec((C, 1)),                # w_scale conv2 (W, b)
        ],
        out_specs=pl.BlockSpec((bblk, C, HW), lambda b: (b, 0, 0)),
        compiler_params=pltpu.CompilerParams(dimension_semantics=("parallel",)),
    )(x_flat, pe_h_map, pe_w_map,
      kparams['h_w1'], kparams['h_b1'], kparams['h_w2'], kparams['h_b2'],
      kparams['w_w1'], kparams['w_b1'], kparams['w_w2'], kparams['w_b2'])

    return out_flat.reshape(B, C, H, W)


# ----------------------------------------------------------------------------
# Parameters (two 1x1-conv scale heads, weight shape (C_out, C_in) like Conv2d)
# ----------------------------------------------------------------------------
def init_params(key, in_channels):
    ks = jax.random.split(key, 8)

    def conv1x1(kw, kb):
        w = jax.random.normal(kw, (in_channels, in_channels), jnp.float32) * 0.5
        b = jax.random.normal(kb, (in_channels,), jnp.float32) * 0.1
        return w, b

    h_w1, h_b1 = conv1x1(ks[0], ks[1])
    h_w2, h_b2 = conv1x1(ks[2], ks[3])
    w_w1, w_b1 = conv1x1(ks[4], ks[5])
    w_w2, w_b2 = conv1x1(ks[6], ks[7])
    return dict(h_w1=h_w1, h_b1=h_b1, h_w2=h_w2, h_b2=h_b2,
                w_w1=w_w1, w_b1=w_b1, w_w2=w_w2, w_b2=w_b2)


# ----------------------------------------------------------------------------
# Pure-JAX reference of the full forward (for correctness checking)
# ----------------------------------------------------------------------------
def reference_forward(x, params, h_enc, w_enc):
    B, C, H, W = x.shape
    pooled = jnp.mean(x.astype(jnp.float32), axis=(2, 3))            # (B, C)

    def mlp(w1, b1, w2, b2):
        h1 = jnp.maximum(
            jnp.dot(pooled, w1.T, precision=jax.lax.Precision.HIGHEST) + b1, 0.0)
        z = jnp.dot(h1, w2.T, precision=jax.lax.Precision.HIGHEST) + b2
        return 1.0 / (1.0 + jnp.exp(-z))                              # (B, C)

    hs = mlp(params['h_w1'], params['h_b1'], params['h_w2'], params['h_b2'])
    ws = mlp(params['w_w1'], params['w_b1'], params['w_w2'], params['w_b2'])
    out = (x.astype(jnp.float32)
           + hs[:, :, None, None] * h_enc[None, :, :H, None]
           + ws[:, :, None, None] * w_enc[None, :, None, :W])
    return out.astype(x.dtype)


# ----------------------------------------------------------------------------
if __name__ == "__main__":
    root = jax.random.PRNGKey(0)

    def run_case(case_key, B, C, H, W):
        k_x, k_p = jax.random.split(case_key)
        x = jax.random.normal(k_x, (B, C, H, W), dtype=jnp.float32)
        params = init_params(k_p, C)

        # One-time setup (NOT per forward call): positional slabs + kernel-layout params.
        h_enc, w_enc = build_position_buffers(C, max_h=200, max_w=200)
        pe_h_map, pe_w_map = build_position_maps(h_enc, w_enc, H, W)
        kparams = prepare_kernel_params(params)

        fwd = jax.jit(adaptive_2d_position_encoder)
        out = jax.block_until_ready(fwd(x, kparams, pe_h_map, pe_w_map))

        assert out.shape == x.shape and out.dtype == x.dtype
        ref = reference_forward(x, params, h_enc, w_enc)
        # Tolerance leaves headroom for the MXU scale-MLP matmuls; the O(C*HW) add path
        # is exact f32, so layout/semantics bugs would show up as O(0.1-1) errors.
        assert jnp.allclose(out, ref, atol=1e-3, rtol=1e-3), \
            f"mismatch vs pure-JAX reference at shape {(B, C, H, W)}"

    k1, k2 = jax.random.split(root)
    run_case(k1, B=2, C=4, H=16, W=16)       # module demo shape (Bblk=2, single-step grid)
    run_case(k2, B=4, C=128, H=16, W=16)     # MXU-aligned channels, 2-step batch-blocked grid
    print("KERNEL_OK")
</pallas_src>

<mosaic_0001>
module attributes {stable_mosaic.version = 11 : i64} {
  func.func @_ape_kernel(%arg0: i32, %arg1: memref<2x4x256xf32, #tpu.memory_space<vmem>>, %arg2: memref<4x256xf32, #tpu.memory_space<vmem>>, %arg3: memref<4x256xf32, #tpu.memory_space<vmem>>, %arg4: memref<4x4xf32, #tpu.memory_space<vmem>>, %arg5: memref<4x1xf32, #tpu.memory_space<vmem>>, %arg6: memref<4x4xf32, #tpu.memory_space<vmem>>, %arg7: memref<4x1xf32, #tpu.memory_space<vmem>>, %arg8: memref<4x4xf32, #tpu.memory_space<vmem>>, %arg9: memref<4x1xf32, #tpu.memory_space<vmem>>, %arg10: memref<4x4xf32, #tpu.memory_space<vmem>>, %arg11: memref<4x1xf32, #tpu.memory_space<vmem>>, %arg12: memref<2x4x256xf32, #tpu.memory_space<vmem>>) attributes {dimension_semantics = [#tpu.dimension_semantics<parallel>], iteration_bounds = array<i64: 1>, scalar_prefetch = 0 : i64, scratch_operands = 0 : i64, tpu.core_type = #tpu.core_type<tc>, window_params = [{transform_indices = @transform_0, window_bounds = array<i64: 2, 4, 256>}, {pipeline_mode = #tpu.pipeline_mode<synchronous>, transform_indices = @transform_1, window_bounds = array<i64: 4, 256>}, {pipeline_mode = #tpu.pipeline_mode<synchronous>, transform_indices = @transform_2, window_bounds = array<i64: 4, 256>}, {pipeline_mode = #tpu.pipeline_mode<synchronous>, transform_indices = @transform_3, window_bounds = array<i64: 4, 4>}, {pipeline_mode = #tpu.pipeline_mode<synchronous>, transform_indices = @transform_4, window_bounds = array<i64: 4, 1>}, {pipeline_mode = #tpu.pipeline_mode<synchronous>, transform_indices = @transform_5, window_bounds = array<i64: 4, 4>}, {pipeline_mode = #tpu.pipeline_mode<synchronous>, transform_indices = @transform_6, window_bounds = array<i64: 4, 1>}, {pipeline_mode = #tpu.pipeline_mode<synchronous>, transform_indices = @transform_7, window_bounds = array<i64: 4, 4>}, {pipeline_mode = #tpu.pipeline_mode<synchronous>, transform_indices = @transform_8, window_bounds = array<i64: 4, 1>}, {pipeline_mode = #tpu.pipeline_mode<synchronous>, transform_indices = @transform_9, window_bounds = array<i64: 4, 4>}, {pipeline_mode = #tpu.pipeline_mode<synchronous>, transform_indices = @transform_10, window_bounds = array<i64: 4, 1>}, {transform_indices = @transform_11, window_bounds = array<i64: 2, 4, 256>}]} {
    %c0 = arith.constant 0 : index
    %c0_0 = arith.constant 0 : index
    %0 = vector.load %arg2[%c0, %c0_0] : memref<4x256xf32, #tpu.memory_space<vmem>>, vector<4x256xf32>
    %c0_1 = arith.constant 0 : index
    %c0_2 = arith.constant 0 : index
    %1 = vector.load %arg3[%c0_1, %c0_2] : memref<4x256xf32, #tpu.memory_space<vmem>>, vector<4x256xf32>
    %c0_3 = arith.constant 0 : index
    %c0_4 = arith.constant 0 : index
    %2 = vector.load %arg4[%c0_3, %c0_4] : memref<4x4xf32, #tpu.memory_space<vmem>>, vector<4x4xf32>
    %c0_5 = arith.constant 0 : index
    %c0_6 = arith.constant 0 : index
    %3 = vector.load %arg5[%c0_5, %c0_6] : memref<4x1xf32, #tpu.memory_space<vmem>>, vector<4x1xf32>
    %c0_7 = arith.constant 0 : index
    %c0_8 = arith.constant 0 : index
    %4 = vector.load %arg6[%c0_7, %c0_8] : memref<4x4xf32, #tpu.memory_space<vmem>>, vector<4x4xf32>
    %c0_9 = arith.constant 0 : index
    %c0_10 = arith.constant 0 : index
    %5 = vector.load %arg7[%c0_9, %c0_10] : memref<4x1xf32, #tpu.memory_space<vmem>>, vector<4x1xf32>
    %c0_11 = arith.constant 0 : index
    %c0_12 = arith.constant 0 : index
    %6 = vector.load %arg8[%c0_11, %c0_12] : memref<4x4xf32, #tpu.memory_space<vmem>>, vector<4x4xf32>
    %c0_13 = arith.constant 0 : index
    %c0_14 = arith.constant 0 : index
    %7 = vector.load %arg9[%c0_13, %c0_14] : memref<4x1xf32, #tpu.memory_space<vmem>>, vector<4x1xf32>
    %c0_15 = arith.constant 0 : index
    %c0_16 = arith.constant 0 : index
    %8 = vector.load %arg10[%c0_15, %c0_16] : memref<4x4xf32, #tpu.memory_space<vmem>>, vector<4x4xf32>
    %c0_17 = arith.constant 0 : index
    %c0_18 = arith.constant 0 : index
    %9 = vector.load %arg11[%c0_17, %c0_18] : memref<4x1xf32, #tpu.memory_space<vmem>>, vector<4x1xf32>
    %c0_19 = arith.constant 0 : index
    %c0_20 = arith.constant 0 : index
    %c0_21 = arith.constant 0 : index
    %10 = vector.load %arg1[%c0_19, %c0_20, %c0_21] : memref<2x4x256xf32, #tpu.memory_space<vmem>>, vector<1x4x256xf32>
    %11 = vector.shape_cast %10 : vector<1x4x256xf32> to vector<4x256xf32>
    %cst = arith.constant dense<0.000000e+00> : vector<4xf32>
    %12 = vector.multi_reduction <add>, %11, %cst [1] : vector<4x256xf32> to vector<4xf32>
    %13 = vector.shape_cast %12 : vector<4xf32> to vector<4x1xf32>
    %cst_22 = arith.constant 3.906250e-03 : f32
    %14 = vector.broadcast %cst_22 : f32 to vector<4x1xf32>
    %15 = arith.mulf %13, %14 : vector<4x1xf32>
    %cst_23 = arith.constant dense<0.000000e+00> : vector<4x1xf32>
    %16 = tpu.matmul %2, %15, %cst_23 {dimension_numbers = #tpu.dot_dimension_numbers<[1], [0], [0], [1], [0, 0, 1, 1], [], []>, precision = #tpu.contract_precision<fp32>} : vector<4x4xf32>, vector<4x1xf32>, vector<4x1xf32> -> vector<4x1xf32>
    %17 = arith.addf %16, %3 : vector<4x1xf32>
    %cst_24 = arith.constant 0.000000e+00 : f32
    %18 = vector.broadcast %cst_24 : f32 to vector<4x1xf32>
    %19 = arith.maximumf %17, %18 : vector<4x1xf32>
    %cst_25 = arith.constant dense<0.000000e+00> : vector<4x1xf32>
    %20 = tpu.matmul %4, %19, %cst_25 {dimension_numbers = #tpu.dot_dimension_numbers<[1], [0], [0], [1], [0, 0, 1, 1], [], []>, precision = #tpu.contract_precision<fp32>} : vector<4x4xf32>, vector<4x1xf32>, vector<4x1xf32> -> vector<4x1xf32>
    %21 = arith.addf %20, %5 : vector<4x1xf32>
    %cst_26 = arith.constant 0.000000e+00 : f32
    %22 = vector.broadcast %cst_26 : f32 to vector<4x1xf32>
    %23 = arith.subf %22, %21 : vector<4x1xf32>
    %24 = math.exp %23 : vector<4x1xf32>
    %cst_27 = arith.constant 1.000000e+00 : f32
    %25 = vector.broadcast %cst_27 : f32 to vector<4x1xf32>
    %26 = arith.addf %25, %24 : vector<4x1xf32>
    %27 = tpu.reciprocal %26 : vector<4x1xf32> -> vector<4x1xf32>
    %cst_28 = arith.constant dense<0.000000e+00> : vector<4x1xf32>
    %28 = tpu.matmul %6, %15, %cst_28 {dimension_numbers = #tpu.dot_dimension_numbers<[1], [0], [0], [1], [0, 0, 1, 1], [], []>, precision = #tpu.contract_precision<fp32>} : vector<4x4xf32>, vector<4x1xf32>, vector<4x1xf32> -> vector<4x1xf32>
    %29 = arith.addf %28, %7 : vector<4x1xf32>
    %cst_29 = arith.constant 0.000000e+00 : f32
    %30 = vector.broadcast %cst_29 : f32 to vector<4x1xf32>
    %31 = arith.maximumf %29, %30 : vector<4x1xf32>
    %cst_30 = arith.constant dense<0.000000e+00> : vector<4x1xf32>
    %32 = tpu.matmul %8, %31, %cst_30 {dimension_numbers = #tpu.dot_dimension_numbers<[1], [0], [0], [1], [0, 0, 1, 1], [], []>, precision = #tpu.contract_precision<fp32>} : vector<4x4xf32>, vector<4x1xf32>, vector<4x1xf32> -> vector<4x1xf32>
    %33 = arith.addf %32, %9 : vector<4x1xf32>
    %cst_31 = arith.constant 0.000000e+00 : f32
    %34 = vector.broadcast %cst_31 : f32 to vector<4x1xf32>
    %35 = arith.subf %34, %33 : vector<4x1xf32>
    %36 = math.exp %35 : vector<4x1xf32>
    %cst_32 = arith.constant 1.000000e+00 : f32
    %37 = vector.broadcast %cst_32 : f32 to vector<4x1xf32>
    %38 = arith.addf %37, %36 : vector<4x1xf32>
    %39 = tpu.reciprocal %38 : vector<4x1xf32> -> vector<4x1xf32>
    %40 = vector.broadcast %27 : vector<4x1xf32> to vector<4x256xf32>
    %41 = arith.mulf %40, %0 : vector<4x256xf32>
    %42 = arith.addf %11, %41 : vector<4x256xf32>
    %43 = vector.broadcast %39 : vector<4x1xf32> to vector<4x256xf32>
    %44 = arith.mulf %43, %1 : vector<4x256xf32>
    %45 = arith.addf %42, %44 : vector<4x256xf32>
    %c0_33 = arith.constant 0 : index
    %c0_34 = arith.constant 0 : index
    %c0_35 = arith.constant 0 : index
    %46 = vector.load %arg12[%c0_33, %c0_34, %c0_35] : memref<2x4x256xf32, #tpu.memory_space<vmem>>, vector<1x4x256xf32>
    %47 = vector.shape_cast %46 : vector<1x4x256xf32> to vector<4x256xf32>
    %48 = vector.shape_cast %45 : vector<4x256xf32> to vector<1x4x256xf32>
    tpu.vector_store %arg12[%c0_33, %c0_34, %c0_35], %48 {strides = array<i32>} : memref<2x4x256xf32, #tpu.memory_space<vmem>>, vector<1x4x256xf32>,
    %c1 = arith.constant 1 : index
    %c0_36 = arith.constant 0 : index
    %c0_37 = arith.constant 0 : index
    %49 = vector.load %arg1[%c1, %c0_36, %c0_37] : memref<2x4x256xf32, #tpu.memory_space<vmem>>, vector<1x4x256xf32>
    %50 = vector.shape_cast %49 : vector<1x4x256xf32> to vector<4x256xf32>
    %cst_38 = arith.constant dense<0.000000e+00> : vector<4xf32>
    %51 = vector.multi_reduction <add>, %50, %cst_38 [1] : vector<4x256xf32> to vector<4xf32>
    %52 = vector.shape_cast %51 : vector<4xf32> to vector<4x1xf32>
    %cst_39 = arith.constant 3.906250e-03 : f32
    %53 = vector.broadcast %cst_39 : f32 to vector<4x1xf32>
    %54 = arith.mulf %52, %53 : vector<4x1xf32>
    %cst_40 = arith.constant dense<0.000000e+00> : vector<4x1xf32>
    %55 = tpu.matmul %2, %54, %cst_40 {dimension_numbers = #tpu.dot_dimension_numbers<[1], [0], [0], [1], [0, 0, 1, 1], [], []>, precision = #tpu.contract_precision<fp32>} : vector<4x4xf32>, vector<4x1xf32>, vector<4x1xf32> -> vector<4x1xf32>
    %56 = arith.addf %55, %3 : vector<4x1xf32>
    %cst_41 = arith.constant 0.000000e+00 : f32
    %57 = vector.broadcast %cst_41 : f32 to vector<4x1xf32>
    %58 = arith.maximumf %56, %57 : vector<4x1xf32>
    %cst_42 = arith.constant dense<0.000000e+00> : vector<4x1xf32>
    %59 = tpu.matmul %4, %58, %cst_42 {dimension_numbers = #tpu.dot_dimension_numbers<[1], [0], [0], [1], [0, 0, 1, 1], [], []>, precision = #tpu.contract_precision<fp32>} : vector<4x4xf32>, vector<4x1xf32>, vector<4x1xf32> -> vector<4x1xf32>
    %60 = arith.addf %59, %5 : vector<4x1xf32>
    %cst_43 = arith.constant 0.000000e+00 : f32
    %61 = vector.broadcast %cst_43 : f32 to vector<4x1xf32>
    %62 = arith.subf %61, %60 : vector<4x1xf32>
    %63 = math.exp %62 : vector<4x1xf32>
    %cst_44 = arith.constant 1.000000e+00 : f32
    %64 = vector.broadcast %cst_44 : f32 to vector<4x1xf32>
    %65 = arith.addf %64, %63 : vector<4x1xf32>
    %66 = tpu.reciprocal %65 : vector<4x1xf32> -> vector<4x1xf32>
    %cst_45 = arith.constant dense<0.000000e+00> : vector<4x1xf32>
    %67 = tpu.matmul %6, %54, %cst_45 {dimension_numbers = #tpu.dot_dimension_numbers<[1], [0], [0], [1], [0, 0, 1, 1], [], []>, precision = #tpu.contract_precision<fp32>} : vector<4x4xf32>, vector<4x1xf32>, vector<4x1xf32> -> vector<4x1xf32>
    %68 = arith.addf %67, %7 : vector<4x1xf32>
    %cst_46 = arith.constant 0.000000e+00 : f32
    %69 = vector.broadcast %cst_46 : f32 to vector<4x1xf32>
    %70 = arith.maximumf %68, %69 : vector<4x1xf32>
    %cst_47 = arith.constant dense<0.000000e+00> : vector<4x1xf32>
    %71 = tpu.matmul %8, %70, %cst_47 {dimension_numbers = #tpu.dot_dimension_numbers<[1], [0], [0], [1], [0, 0, 1, 1], [], []>, precision = #tpu.contract_precision<fp32>} : vector<4x4xf32>, vector<4x1xf32>, vector<4x1xf32> -> vector<4x1xf32>
    %72 = arith.addf %71, %9 : vector<4x1xf32>
    %cst_48 = arith.constant 0.000000e+00 : f32
    %73 = vector.broadcast %cst_48 : f32 to vector<4x1xf32>
    %74 = arith.subf %73, %72 : vector<4x1xf32>
    %75 = math.exp %74 : vector<4x1xf32>
    %cst_49 = arith.constant 1.000000e+00 : f32
    %76 = vector.broadcast %cst_49 : f32 to vector<4x1xf32>
    %77 = arith.addf %76, %75 : vector<4x1xf32>
    %78 = tpu.reciprocal %77 : vector<4x1xf32> -> vector<4x1xf32>
    %79 = vector.broadcast %66 : vector<4x1xf32> to vector<4x256xf32>
    %80 = arith.mulf %79, %0 : vector<4x256xf32>
    %81 = arith.addf %50, %80 : vector<4x256xf32>
    %82 = vector.broadcast %78 : vector<4x1xf32> to vector<4x256xf32>
    %83 = arith.mulf %82, %1 : vector<4x256xf32>
    %84 = arith.addf %81, %83 : vector<4x256xf32>
    %c1_50 = arith.constant 1 : index
    %c0_51 = arith.constant 0 : index
    %c0_52 = arith.constant 0 : index
    %85 = vector.load %arg12[%c1_50, %c0_51, %c0_52] : memref<2x4x256xf32, #tpu.memory_space<vmem>>, vector<1x4x256xf32>
    %86 = vector.shape_cast %85 : vector<1x4x256xf32> to vector<4x256xf32>
    %87 = vector.shape_cast %84 : vector<4x256xf32> to vector<1x4x256xf32>
    tpu.vector_store %arg12[%c1_50, %c0_51, %c0_52], %87 {strides = array<i32>} : memref<2x4x256xf32, #tpu.memory_space<vmem>>, vector<1x4x256xf32>,
    return
  }
  func.func @transform_0(%arg0: i32) -> (i32, i32, i32) {
    %c0_i32 = arith.constant 0 : i32
    %c0_i32_0 = arith.constant 0 : i32
    %c0_i32_1 = arith.constant 0 : i32
    return %arg0, %c0_i32, %c0_i32_0 : i32, i32, i32
  }
  func.func @transform_1(%arg0: i32) -> (i32, i32) {
    %c0_i32 = arith.constant 0 : i32
    %c0_i32_0 = arith.constant 0 : i32
    %c0_i32_1 = arith.constant 0 : i32
    return %c0_i32, %c0_i32_0 : i32, i32
  }
  func.func @transform_2(%arg0: i32) -> (i32, i32) {
    %c0_i32 = arith.constant 0 : i32
    %c0_i32_0 = arith.constant 0 : i32
    %c0_i32_1 = arith.constant 0 : i32
    return %c0_i32, %c0_i32_0 : i32, i32
  }
  func.func @transform_3(%arg0: i32) -> (i32, i32) {
    %c0_i32 = arith.constant 0 : i32
    %c0_i32_0 = arith.constant 0 : i32
    %c0_i32_1 = arith.constant 0 : i32
    return %c0_i32, %c0_i32_0 : i32, i32
  }
  func.func @transform_4(%arg0: i32) -> (i32, i32) {
    %c0_i32 = arith.constant 0 : i32
    %c0_i32_0 = arith.constant 0 : i32
    %c0_i32_1 = arith.constant 0 : i32
    return %c0_i32, %c0_i32_0 : i32, i32
  }
  func.func @transform_5(%arg0: i32) -> (i32, i32) {
    %c0_i32 = arith.constant 0 : i32
    %c0_i32_0 = arith.constant 0 : i32
    %c0_i32_1 = arith.constant 0 : i32
    return %c0_i32, %c0_i32_0 : i32, i32
  }
  func.func @transform_6(%arg0: i32) -> (i32, i32) {
    %c0_i32 = arith.constant 0 : i32
    %c0_i32_0 = arith.constant 0 : i32
    %c0_i32_1 = arith.constant 0 : i32
    return %c0_i32, %c0_i32_0 : i32, i32
  }
  func.func @transform_7(%arg0: i32) -> (i32, i32) {
    %c0_i32 = arith.constant 0 : i32
    %c0_i32_0 = arith.constant 0 : i32
    %c0_i32_1 = arith.constant 0 : i32
    return %c0_i32, %c0_i32_0 : i32, i32
  }
  func.func @transform_8(%arg0: i32) -> (i32, i32) {
    %c0_i32 = arith.constant 0 : i32
    %c0_i32_0 = arith.constant 0 : i32
    %c0_i32_1 = arith.constant 0 : i32
    return %c0_i32, %c0_i32_0 : i32, i32
  }
  func.func @transform_9(%arg0: i32) -> (i32, i32) {
    %c0_i32 = arith.constant 0 : i32
    %c0_i32_0 = arith.constant 0 : i32
    %c0_i32_1 = arith.constant 0 : i32
    return %c0_i32, %c0_i32_0 : i32, i32
  }
  func.func @transform_10(%arg0: i32) -> (i32, i32) {
    %c0_i32 = arith.constant 0 : i32
    %c0_i32_0 = arith.constant 0 : i32
    %c0_i32_1 = arith.constant 0 : i32
    return %c0_i32, %c0_i32_0 : i32, i32
  }
  func.func @transform_11(%arg0: i32) -> (i32, i32, i32) {
    %c0_i32 = arith.constant 0 : i32
    %c0_i32_0 = arith.constant 0 : i32
    %c0_i32_1 = arith.constant 0 : i32
    return %arg0, %c0_i32, %c0_i32_0 : i32, i32, i32
  }
}

</mosaic_0001>

<llo_original>
// kernel: adaptive_2d_position_encoder.1
$region0: #{adaptive_2d_position_encoder.1}
  #allocation0 [shape = 'u32[]', space=smem, size = 0x4, offset = 0x4, fixed_abs, tag = 'smem constant byte address 0x4 - core index']
  #allocation1 [shape = 'u32[144,128]{1,0:T(1,128)}', space=vmem, size = 0x12000, scoped, tag = 'internal scratch']
  %s0 = inlined_call_operand.vmem [shape: f32[2,4,256], index: 0, kind: input, shape index: {}]
  %s1 = inlined_call_operand.vmem [shape: f32[4,256], index: 1, kind: input, shape index: {}]
  %s2 = inlined_call_operand.vmem [shape: f32[4,256], index: 2, kind: input, shape index: {}]
  %s3 = inlined_call_operand.vmem [shape: f32[4,4], index: 3, kind: input, shape index: {}]
  %s4 = inlined_call_operand.vmem [shape: f32[4,1], index: 4, kind: input, shape index: {}]
  %s5 = inlined_call_operand.vmem [shape: f32[4,4], index: 5, kind: input, shape index: {}]
  %s6 = inlined_call_operand.vmem [shape: f32[4,1], index: 6, kind: input, shape index: {}]
  %s7 = inlined_call_operand.vmem [shape: f32[4,4], index: 7, kind: input, shape index: {}]
  %s8 = inlined_call_operand.vmem [shape: f32[4,1], index: 8, kind: input, shape index: {}]
  %s9 = inlined_call_operand.vmem [shape: f32[4,4], index: 9, kind: input, shape index: {}]
  %s10 = inlined_call_operand.vmem [shape: f32[4,1], index: 10, kind: input, shape index: {}]
  %s11 = inlined_call_operand.vmem [shape: f32[2,4,256], index: 11, kind: output, shape index: {}]
  %s12 = sld [smem:[#allocation0]]
  $region54: #{adaptive_2d_position_encoder.1} parent=0
    _
  %s14 = ssub.s32 1, %s12
  %s15 = scalar_select 0, %s14, %s12
  // Predicated region
  $region2: #{adaptive_2d_position_encoder.1} parent=0 // pred_check
    _
  $region3: #{adaptive_2d_position_encoder.1} parent=0 // pred_check_branch
    %17 = sbr.rel (0) target = $region5
  $region4: #{adaptive_2d_position_encoder.1} parent=0 // pred_region
    _
  $region5: #{adaptive_2d_position_encoder.1} parent=0 // pred_fallthru
    _
  // Predicated region
  $region6: #{adaptive_2d_position_encoder.1} parent=0 // pred_check
    _
  $region7: #{adaptive_2d_position_encoder.1} parent=0 // pred_check_branch
    %19 = sbr.rel (0) target = $region9
  $region8: #{adaptive_2d_position_encoder.1} parent=0 // pred_region
    _
  $region9: #{adaptive_2d_position_encoder.1} parent=0 // pred_fallthru
    _
  // Predicated region
  $region10: #{adaptive_2d_position_encoder.1} parent=0 // pred_check
    _
  $region11: #{adaptive_2d_position_encoder.1} parent=0 // pred_check_branch
    %21 = sbr.rel (0) target = $region13
  $region12: #{adaptive_2d_position_encoder.1} parent=0 // pred_region
    _
  $region13: #{adaptive_2d_position_encoder.1} parent=0 // pred_fallthru
    _
  // Predicated region
  $region14: #{adaptive_2d_position_encoder.1} parent=0 // pred_check
    _
  $region15: #{adaptive_2d_position_encoder.1} parent=0 // pred_check_branch
    %23 = sbr.rel (0) target = $region17
  $region16: #{adaptive_2d_position_encoder.1} parent=0 // pred_region
    _
  $region17: #{adaptive_2d_position_encoder.1} parent=0 // pred_fallthru
    _
  // Predicated region
  $region18: #{adaptive_2d_position_encoder.1} parent=0 // pred_check
    _
  $region19: #{adaptive_2d_position_encoder.1} parent=0 // pred_check_branch
    %25 = sbr.rel (0) target = $region21
  $region20: #{adaptive_2d_position_encoder.1} parent=0 // pred_region
    _
  $region21: #{adaptive_2d_position_encoder.1} parent=0 // pred_fallthru
    _
  // Predicated region
  $region22: #{adaptive_2d_position_encoder.1} parent=0 // pred_check
    _
  $region23: #{adaptive_2d_position_encoder.1} parent=0 // pred_check_branch
    %27 = sbr.rel (0) target = $region25
  $region24: #{adaptive_2d_position_encoder.1} parent=0 // pred_region
    _
  $region25: #{adaptive_2d_position_encoder.1} parent=0 // pred_fallthru
    _
  // Predicated region
  $region26: #{adaptive_2d_position_encoder.1} parent=0 // pred_check
    _
  $region27: #{adaptive_2d_position_encoder.1} parent=0 // pred_check_branch
    %29 = sbr.rel (0) target = $region29
  $region28: #{adaptive_2d_position_encoder.1} parent=0 // pred_region
    _
  $region29: #{adaptive_2d_position_encoder.1} parent=0 // pred_fallthru
    _
  // Predicated region
  $region30: #{adaptive_2d_position_encoder.1} parent=0 // pred_check
    _
  $region31: #{adaptive_2d_position_encoder.1} parent=0 // pred_check_branch
    %31 = sbr.rel (0) target = $region33
  $region32: #{adaptive_2d_position_encoder.1} parent=0 // pred_region
    _
  $region33: #{adaptive_2d_position_encoder.1} parent=0 // pred_fallthru
    _
  // Predicated region
  $region34: #{adaptive_2d_position_encoder.1} parent=0 // pred_check
    _
  $region35: #{adaptive_2d_position_encoder.1} parent=0 // pred_check_branch
    %33 = sbr.rel (0) target = $region37
  $region36: #{adaptive_2d_position_encoder.1} parent=0 // pred_region
    _
  $region37: #{adaptive_2d_position_encoder.1} parent=0 // pred_fallthru
    _
  // Predicated region
  $region38: #{adaptive_2d_position_encoder.1} parent=0 // pred_check
    _
  $region39: #{adaptive_2d_position_encoder.1} parent=0 // pred_check_branch
    %35 = sbr.rel (0) target = $region41
  $region40: #{adaptive_2d_position_encoder.1} parent=0 // pred_region
    _
  $region41: #{adaptive_2d_position_encoder.1} parent=0 // pred_fallthru
    _
  // Predicated region
  $region42: #{adaptive_2d_position_encoder.1} parent=0 // pred_check
    _
  $region43: #{adaptive_2d_position_encoder.1} parent=0 // pred_check_branch
    %37 = sbr.rel (0) target = $region45
  $region44: #{adaptive_2d_position_encoder.1} parent=0 // pred_region
    _
  $region45: #{adaptive_2d_position_encoder.1} parent=0 // pred_fallthru
    _
  %v38 = vld [vmem:[%s1] sm:$0xff]
  %v39 = vld [vmem:[%s2] sm:$0xff]
  %v40 = vld [vmem:[%s3] sm:$0xf]
  %v41 = vld [vmem:[%s4] sm:$0xf]
  %v42 = vld [vmem:[%s5] sm:$0xf]
  %v43 = vld [vmem:[%s6] sm:$0xf]
  %v44 = vld [vmem:[%s7] sm:$0xf]
  %v45 = vld [vmem:[%s8] sm:$0xf]
  %v46 = vld [vmem:[%s9] sm:$0xf]
  %v47 = vld [vmem:[%s10] sm:$0xf]
  %v48 = vld [vmem:[%s0] sm:$0xff]
  %v50 = vcombine.high %v48, %v48
  %vm52 = vcmask 1043456
  %v53 = vsel %vm52, %v48, 0.0
  %v54 = vsel %vm52, %v50, 0.0
  %v55 = vadd.f32 %v53, %v54
  %56 = vadd.xlane.f32.xlu0 %v55
  %v57 = vpop.xlane.xlu0 %56
  %v58 = vmul.f32 %v57, 0.00390625
  %vm59 = vcmask 31744
  %v61 = vsel %vm59, %v40, 0
  %v64 = vsel %vm52, %v58, 0
  %66 = vmatprep.subr.mxu0 0.0
  %v67 = vand.u32 %v64, 4294901760
  %68 = vmatpush1.msra.mxu0 %v67
  %69 = vmatprep.subr.mxu0 0.0
  %70 = vmatpush1.msra.mxu0 0.0
  %71 = vmatprep.subr.mxu0 0.0
  %72 = vmatpush1.msra.mxu0 0.0
  %73 = vmatprep.subr.mxu0 0.0
  %74 = vmatpush1.msra.mxu0 0.0
  %75 = vmatprep.subr.mxu0 0.0
  %76 = vmatpush1.msra.mxu0 0.0
  %77 = vmatprep.subr.mxu0 0.0
  %78 = vmatpush1.msra.mxu0 0.0
  %79 = vmatprep.subr.mxu0 0.0
  %80 = vmatpush1.msra.mxu0 0.0
  %81 = vmatprep.subr.mxu0 0.0
  %82 = vmatpush1.msra.mxu0 0.0
  %83 = vmatprep.subr.mxu0 0.0
  %84 = vmatpush1.msra.mxu0 0.0
  %85 = vmatprep.subr.mxu0 0.0
  %86 = vmatpush1.msra.mxu0 0.0
  %87 = vmatprep.subr.mxu0 0.0
  %88 = vmatpush1.msra.mxu0 0.0
  %89 = vmatprep.subr.mxu0 0.0
  %90 = vmatpush1.msra.mxu0 0.0
  %91 = vmatprep.subr.mxu0 0.0
  %92 = vmatpush1.msra.mxu0 0.0
  %93 = vmatprep.subr.mxu0 0.0
  %94 = vmatpush1.msra.mxu0 0.0
  %95 = vmatprep.subr.mxu0 0.0
  %96 = vmatpush1.msra.mxu0 0.0
  %97 = vmatprep.subr.mxu0 0.0
  %98 = vmatpush1.msra.mxu0 0.0
  %99 = vmatprep.subr.mxu0 0.0
  %100 = vmatpush1.msra.mxu0 0.0
  %101 = vmatprep.subr.mxu0 0.0
  %102 = vmatpush1.msra.mxu0 0.0
  %103 = vmatprep.subr.mxu0 0.0
  %104 = vmatpush1.msra.mxu0 0.0
  %105 = vmatprep.subr.mxu0 0.0
  %106 = vmatpush1.msra.mxu0 0.0
  %107 = vmatprep.subr.mxu0 0.0
  %108 = vmatpush1.msra.mxu0 0.0
  %109 = vmatprep.subr.mxu0 0.0
  %110 = vmatpush1.msra.mxu0 0.0
  %111 = vmatprep.subr.mxu0 0.0
  %112 = vmatpush1.msra.mxu0 0.0
  %113 = vmatprep.subr.mxu0 0.0
  %114 = vmatpush1.msra.mxu0 0.0
  %115 = vmatprep.subr.mxu0 0.0
  %116 = vmatpush1.msra.mxu0 0.0
  %117 = vmatprep.subr.mxu0 0.0
  %118 = vmatpush1.msra.mxu0 0.0
  %119 = vmatprep.subr.mxu0 0.0
  %120 = vmatpush1.msra.mxu0 0.0
  %121 = vmatprep.subr.mxu0 0.0
  %122 = vmatpush1.msra.mxu0 0.0
  %123 = vmatprep.subr.mxu0 0.0
  %124 = vmatpush1.msra.mxu0 0.0
  %125 = vmatprep.subr.mxu0 0.0
  %126 = vmatpush1.msra.mxu0 0.0
  %127 = vmatprep.subr.mxu0 0.0
  %128 = vmatpush1.msra.mxu0 0.0
  %129 = vmatprep.subr.mxu0 0.0
  %130 = vmatpush1.msra.mxu0 0.0
  %131 = vmatprep.mubr.f32.mxu0 0.0
  %v132 = vand.u32 %v61, 4294901760
  %v133 = vsub.f32 %v61, %v132
  %v134 = vand.u32 %v133, 4294901760
  %v135 = vsub.f32 %v133, %v134
  %v136 = vand.u32 %v135, 4294901760
  %137 = vmatmul.mubr.f32.gmra.mrb[0].mxu0 %v136
  %v138 = vpop.f32.mrb[0].mxu0
  %v139 = vadd.f32 %v41, %v138
  %v140 = vpop.f32.mrb[0].mxu0
  %141 = vdwg.mxu0
  %142 = vmatprep.subr.mxu0 0.0
  %v143 = vand.u32 %v64, 4294901760
  %v144 = vsub.f32 %v64, %v143
  %v145 = vand.u32 %v144, 4294901760
  %v146 = vsub.f32 %v144, %v145
  %v147 = vand.u32 %v146, 4294901760
  %148 = vmatpush1.msra.mxu0 %v147
  %149 = vmatprep.subr.mxu0 0.0
  %150 = vmatpush1.msra.mxu0 0.0
  %151 = vmatprep.subr.mxu0 0.0
  %152 = vmatpush1.msra.mxu0 0.0
  %153 = vmatprep.subr.mxu0 0.0
  %154 = vmatpush1.msra.mxu0 0.0
  %155 = vmatprep.subr.mxu0 0.0
  %156 = vmatpush1.msra.mxu0 0.0
  %157 = vmatprep.subr.mxu0 0.0
  %158 = vmatpush1.msra.mxu0 0.0
  %159 = vmatprep.subr.mxu0 0.0
  %160 = vmatpush1.msra.mxu0 0.0
  %161 = vmatprep.subr.mxu0 0.0
  %162 = vmatpush1.msra.mxu0 0.0
  %163 = vmatprep.subr.mxu0 0.0
  %164 = vmatpush1.msra.mxu0 0.0
  %165 = vmatprep.subr.mxu0 0.0
  %166 = vmatpush1.msra.mxu0 0.0
  %167 = vmatprep.subr.mxu0 0.0
  %168 = vmatpush1.msra.mxu0 0.0
  %169 = vmatprep.subr.mxu0 0.0
  %170 = vmatpush1.msra.mxu0 0.0
  %171 = vmatprep.subr.mxu0 0.0
  %172 = vmatpush1.msra.mxu0 0.0
  %173 = vmatprep.subr.mxu0 0.0
  %174 = vmatpush1.msra.mxu0 0.0
  %175 = vmatprep.subr.mxu0 0.0
  %176 = vmatpush1.msra.mxu0 0.0
  %177 = vmatprep.subr.mxu0 0.0
  %178 = vmatpush1.msra.mxu0 0.0
  %179 = vmatprep.subr.mxu0 0.0
  %180 = vmatpush1.msra.mxu0 0.0
  %181 = vmatprep.subr.mxu0 0.0
  %182 = vmatpush1.msra.mxu0 0.0
  %183 = vmatprep.subr.mxu0 0.0
  %184 = vmatpush1.msra.mxu0 0.0
  %185 = vmatprep.subr.mxu0 0.0
  %186 = vmatpush1.msra.mxu0 0.0
  %187 = vmatprep.subr.mxu0 0.0
  %188 = vmatpush1.msra.mxu0 0.0
  %189 = vmatprep.subr.mxu0 0.0
  %190 = vmatpush1.msra.mxu0 0.0
  %191 = vmatprep.subr.mxu0 0.0
  %192 = vmatpush1.msra.mxu0 0.0
  %193 = vmatprep.subr.mxu0 0.0
  %194 = vmatpush1.msra.mxu0 0.0
  %195 = vmatprep.subr.mxu0 0.0
  %196 = vmatpush1.msra.mxu0 0.0
  %197 = vmatprep.subr.mxu0 0.0
  %198 = vmatpush1.msra.mxu0 0.0
  %199 = vmatprep.subr.mxu0 0.0
  %200 = vmatpush1.msra.mxu0 0.0
  %201 = vmatprep.subr.mxu0 0.0
  %202 = vmatpush1.msra.mxu0 0.0
  %203 = vmatprep.subr.mxu0 0.0
  %204 = vmatpush1.msra.mxu0 0.0
  %205 = vmatprep.subr.mxu0 0.0
  %206 = vmatpush1.msra.mxu0 0.0
  %207 = vmatprep.subr.mxu0 0.0
  %208 = vmatpush1.msra.mxu0 0.0
  %209 = vmatprep.subr.mxu0 0.0
  %210 = vmatpush1.msra.mxu0 0.0
  %211 = vmatprep.mubr.f32.mxu0 0.0
  %v212 = vand.u32 %v61, 4294901760
  %213 = vmatmul.mubr.f32.gmra.mrb[0].mxu0 %v212
  %v214 = vpop.f32.mrb[0].mxu0
  %v215 = vadd.f32 %v139, %v214
  %v216 = vpop.f32.mrb[0].mxu0
  %217 = vdwg.mxu0
  %218 = vmatprep.subr.mxu0 0.0
  %v219 = vand.u32 %v64, 4294901760
  %v220 = vsub.f32 %v64, %v219
  %221 = vmatpush1.msra.mxu0 %v220
  %222 = vmatprep.subr.mxu0 0.0
  %223 = vmatpush1.msra.mxu0 0.0
  %224 = vmatprep.subr.mxu0 0.0
  %225 = vmatpush1.msra.mxu0 0.0
  %226 = vmatprep.subr.mxu0 0.0
  %227 = vmatpush1.msra.mxu0 0.0
  %228 = vmatprep.subr.mxu0 0.0
  %229 = vmatpush1.msra.mxu0 0.0
  %230 = vmatprep.subr.mxu0 0.0
  %231 = vmatpush1.msra.mxu0 0.0
  %232 = vmatprep.subr.mxu0 0.0
  %233 = vmatpush1.msra.mxu0 0.0
  %234 = vmatprep.subr.mxu0 0.0
  %235 = vmatpush1.msra.mxu0 0.0
  %236 = vmatprep.subr.mxu0 0.0
  %237 = vmatpush1.msra.mxu0 0.0
  %238 = vmatprep.subr.mxu0 0.0
  %239 = vmatpush1.msra.mxu0 0.0
  %240 = vmatprep.subr.mxu0 0.0
  %241 = vmatpush1.msra.mxu0 0.0
  %242 = vmatprep.subr.mxu0 0.0
  %243 = vmatpush1.msra.mxu0 0.0
  %244 = vmatprep.subr.mxu0 0.0
  %245 = vmatpush1.msra.mxu0 0.0
  %246 = vmatprep.subr.mxu0 0.0
  %247 = vmatpush1.msra.mxu0 0.0
  %248 = vmatprep.subr.mxu0 0.0
  %249 = vmatpush1.msra.mxu0 0.0
  %250 = vmatprep.subr.mxu0 0.0
  %251 = vmatpush1.msra.mxu0 0.0
  %252 = vmatprep.subr.mxu0 0.0
  %253 = vmatpush1.msra.mxu0 0.0
  %254 = vmatprep.subr.mxu0 0.0
  %255 = vmatpush1.msra.mxu0 0.0
  %256 = vmatprep.subr.mxu0 0.0
  %257 = vmatpush1.msra.mxu0 0.0
  %258 = vmatprep.subr.mxu0 0.0
  %259 = vmatpush1.msra.mxu0 0.0
  %260 = vmatprep.subr.mxu0 0.0
  %261 = vmatpush1.msra.mxu0 0.0
  %262 = vmatprep.subr.mxu0 0.0
  %263 = vmatpush1.msra.mxu0 0.0
  %264 = vmatprep.subr.mxu0 0.0
  %265 = vmatpush1.msra.mxu0 0.0
  %266 = vmatprep.subr.mxu0 0.0
  %267 = vmatpush1.msra.mxu0 0.0
  %268 = vmatprep.subr.mxu0 0.0
  %269 = vmatpush1.msra.mxu0 0.0
  %270 = vmatprep.subr.mxu0 0.0
  %271 = vmatpush1.msra.mxu0 0.0
  %272 = vmatprep.subr.mxu0 0.0
  %273 = vmatpush1.msra.mxu0 0.0
  %274 = vmatprep.subr.mxu0 0.0
  %275 = vmatpush1.msra.mxu0 0.0
  %276 = vmatprep.subr.mxu0 0.0
  %277 = vmatpush1.msra.mxu0 0.0
  %278 = vmatprep.subr.mxu0 0.0
  %279 = vmatpush1.msra.mxu0 0.0
  %280 = vmatprep.subr.mxu0 0.0
  %281 = vmatpush1.msra.mxu0 0.0
  %282 = vmatprep.subr.mxu0 0.0
  %283 = vmatpush1.msra.mxu0 0.0
  %284 = vmatprep.mubr.f32.mxu0 0.0
  %v285 = vand.u32 %v61, 4294901760
  %v286 = vsub.f32 %v61, %v285
  %287 = vmatmul.mubr.f32.gmra.mrb[0].mxu0 %v286
  %v288 = vpop.f32.mrb[0].mxu0
  %v289 = vadd.f32 %v215, %v288
  %v290 = vpop.f32.mrb[0].mxu0
  %291 = vdwg.mxu0
  %292 = vmatprep.subr.mxu0 0.0
  %v293 = vand.u32 %v64, 4294901760
  %294 = vmatpush1.msra.mxu0 %v293
  %295 = vmatprep.subr.mxu0 0.0
  %296 = vmatpush1.msra.mxu0 0.0
  %297 = vmatprep.subr.mxu0 0.0
  %298 = vmatpush1.msra.mxu0 0.0
  %299 = vmatprep.subr.mxu0 0.0
  %300 = vmatpush1.msra.mxu0 0.0
  %301 = vmatprep.subr.mxu0 0.0
  %302 = vmatpush1.msra.mxu0 0.0
  %303 = vmatprep.subr.mxu0 0.0
  %304 = vmatpush1.msra.mxu0 0.0
  %305 = vmatprep.subr.mxu0 0.0
  %306 = vmatpush1.msra.mxu0 0.0
  %307 = vmatprep.subr.mxu0 0.0
  %308 = vmatpush1.msra.mxu0 0.0
  %309 = vmatprep.subr.mxu0 0.0
  %310 = vmatpush1.msra.mxu0 0.0
  %311 = vmatprep.subr.mxu0 0.0
  %312 = vmatpush1.msra.mxu0 0.0
  %313 = vmatprep.subr.mxu0 0.0
  %314 = vmatpush1.msra.mxu0 0.0
  %315 = vmatprep.subr.mxu0 0.0
  %316 = vmatpush1.msra.mxu0 0.0
  %317 = vmatprep.subr.mxu0 0.0
  %318 = vmatpush1.msra.mxu0 0.0
  %319 = vmatprep.subr.mxu0 0.0
  %320 = vmatpush1.msra.mxu0 0.0
  %321 = vmatprep.subr.mxu0 0.0
  %322 = vmatpush1.msra.mxu0 0.0
  %323 = vmatprep.subr.mxu0 0.0
  %324 = vmatpush1.msra.mxu0 0.0
  %325 = vmatprep.subr.mxu0 0.0
  %326 = vmatpush1.msra.mxu0 0.0
  %327 = vmatprep.subr.mxu0 0.0
  %328 = vmatpush1.msra.mxu0 0.0
  %329 = vmatprep.subr.mxu0 0.0
  %330 = vmatpush1.msra.mxu0 0.0
  %331 = vmatprep.subr.mxu0 0.0
  %332 = vmatpush1.msra.mxu0 0.0
  %333 = vmatprep.subr.mxu0 0.0
  %334 = vmatpush1.msra.mxu0 0.0
  %335 = vmatprep.subr.mxu0 0.0
  %336 = vmatpush1.msra.mxu0 0.0
  %337 = vmatprep.subr.mxu0 0.0
  %338 = vmatpush1.msra.mxu0 0.0
  %339 = vmatprep.subr.mxu0 0.0
  %340 = vmatpush1.msra.mxu0 0.0
  %341 = vmatprep.subr.mxu0 0.0
  %342 = vmatpush1.msra.mxu0 0.0
  %343 = vmatprep.subr.mxu0 0.0
  %344 = vmatpush1.msra.mxu0 0.0
  %345 = vmatprep.subr.mxu0 0.0
  %346 = vmatpush1.msra.mxu0 0.0
  %347 = vmatprep.subr.mxu0 0.0
  %348 = vmatpush1.msra.mxu0 0.0
  %349 = vmatprep.subr.mxu0 0.0
  %350 = vmatpush1.msra.mxu0 0.0
  %351 = vmatprep.subr.mxu0 0.0
  %352 = vmatpush1.msra.mxu0 0.0
  %353 = vmatprep.subr.mxu0 0.0
  %354 = vmatpush1.msra.mxu0 0.0
  %355 = vmatprep.subr.mxu0 0.0
  %356 = vmatpush1.msra.mxu0 0.0
  %357 = vmatprep.mubr.f32.mxu0 0.0
  %v358 = vand.u32 %v61, 4294901760
  %v359 = vsub.f32 %v61, %v358
  %v360 = vand.u32 %v359, 4294901760
  %361 = vmatmul.mubr.f32.gmra.mrb[0].mxu0 %v360
  %v362 = vpop.f32.mrb[0].mxu0
  %v363 = vadd.f32 %v289, %v362
  %v364 = vpop.f32.mrb[0].mxu0
  %365 = vdwg.mxu0
  %366 = vmatprep.subr.mxu0 0.0
  %v367 = vand.u32 %v64, 4294901760
  %v368 = vsub.f32 %v64, %v367
  %v369 = vand.u32 %v368, 4294901760
  %370 = vmatpush1.msra.mxu0 %v369
  %371 = vmatprep.subr.mxu0 0.0
  %372 = vmatpush1.msra.mxu0 0.0
  %373 = vmatprep.subr.mxu0 0.0
  %374 = vmatpush1.msra.mxu0 0.0
  %375 = vmatprep.subr.mxu0 0.0
  %376 = vmatpush1.msra.mxu0 0.0
  %377 = vmatprep.subr.mxu0 0.0
  %378 = vmatpush1.msra.mxu0 0.0
  %379 = vmatprep.subr.mxu0 0.0
  %380 = vmatpush1.msra.mxu0 0.0
  %381 = vmatprep.subr.mxu0 0.0
  %382 = vmatpush1.msra.mxu0 0.0
  %383 = vmatprep.subr.mxu0 0.0
  %384 = vmatpush1.msra.mxu0 0.0
  %385 = vmatprep.subr.mxu0 0.0
  %386 = vmatpush1.msra.mxu0 0.0
  %387 = vmatprep.subr.mxu0 0.0
  %388 = vmatpush1.msra.mxu0 0.0
  %389 = vmatprep.subr.mxu0 0.0
  %390 = vmatpush1.msra.mxu0 0.0
  %391 = vmatprep.subr.mxu0 0.0
  %392 = vmatpush1.msra.mxu0 0.0
  %393 = vmatprep.subr.mxu0 0.0
  %394 = vmatpush1.msra.mxu0 0.0
  %395 = vmatprep.subr.mxu0 0.0
  %396 = vmatpush1.msra.mxu0 0.0
  %397 = vmatprep.subr.mxu0 0.0
  %398 = vmatpush1.msra.mxu0 0.0
  %399 = vmatprep.subr.mxu0 0.0
  %400 = vmatpush1.msra.mxu0 0.0
  %401 = vmatprep.subr.mxu0 0.0
  %402 = vmatpush1.msra.mxu0 0.0
  %403 = vmatprep.subr.mxu0 0.0
  %404 = vmatpush1.msra.mxu0 0.0
  %405 = vmatprep.subr.mxu0 0.0
  %406 = vmatpush1.msra.mxu0 0.0
  %407 = vmatprep.subr.mxu0 0.0
  %408 = vmatpush1.msra.mxu0 0.0
  %409 = vmatprep.subr.mxu0 0.0
  %410 = vmatpush1.msra.mxu0 0.0
  %411 = vmatprep.subr.mxu0 0.0
  %412 = vmatpush1.msra.mxu0 0.0
  %413 = vmatprep.subr.mxu0 0.0
  %414 = vmatpush1.msra.mxu0 0.0
  %415 = vmatprep.subr.mxu0 0.0
  %416 = vmatpush1.msra.mxu0 0.0
  %417 = vmatprep.subr.mxu0 0.0
  %418 = vmatpush1.msra.mxu0 0.0
  %419 = vmatprep.subr.mxu0 0.0
  %420 = vmatpush1.msra.mxu0 0.0
  %421 = vmatprep.subr.mxu0 0.0
  %422 = vmatpush1.msra.mxu0 0.0
  %423 = vmatprep.subr.mxu0 0.0
  %424 = vmatpush1.msra.mxu0 0.0
  %425 = vmatprep.subr.mxu0 0.0
  %426 = vmatpush1.msra.mxu0 0.0
  %427 = vmatprep.subr.mxu0 0.0
  %428 = vmatpush1.msra.mxu0 0.0
  %429 = vmatprep.subr.mxu0 0.0
  %430 = vmatpush1.msra.mxu0 0.0
  %431 = vmatprep.subr.mxu0 0.0
  %432 = vmatpush1.msra.mxu0 0.0
  %433 = vmatprep.mubr.f32.mxu0 0.0
  %v434 = vand.u32 %v61, 4294901760
  %435 = vmatmul.mubr.f32.gmra.mrb[0].mxu0 %v434
  %v436 = vpop.f32.mrb[0].mxu0
  %v437 = vadd.f32 %v363, %v436
  %v438 = vpop.f32.mrb[0].mxu0
  %439 = vdwg.mxu0
  %440 = vmatprep.subr.mxu0 0.0
  %v441 = vand.u32 %v64, 4294901760
  %442 = vmatpush1.msra.mxu0 %v441
  %443 = vmatprep.subr.mxu0 0.0
  %444 = vmatpush1.msra.mxu0 0.0
  %445 = vmatprep.subr.mxu0 0.0
  %446 = vmatpush1.msra.mxu0 0.0
  %447 = vmatprep.subr.mxu0 0.0
  %448 = vmatpush1.msra.mxu0 0.0
  %449 = vmatprep.subr.mxu0 0.0
  %450 = vmatpush1.msra.mxu0 0.0
  %451 = vmatprep.subr.mxu0 0.0
  %452 = vmatpush1.msra.mxu0 0.0
  %453 = vmatprep.subr.mxu0 0.0
  %454 = vmatpush1.msra.mxu0 0.0
  %455 = vmatprep.subr.mxu0 0.0
  %456 = vmatpush1.msra.mxu0 0.0
  %457 = vmatprep.subr.mxu0 0.0
  %458 = vmatpush1.msra.mxu0 0.0
  %459 = vmatprep.subr.mxu0 0.0
  %460 = vmatpush1.msra.mxu0 0.0
  %461 = vmatprep.subr.mxu0 0.0
  %462 = vmatpush1.msra.mxu0 0.0
  %463 = vmatprep.subr.mxu0 0.0
  %464 = vmatpush1.msra.mxu0 0.0
  %465 = vmatprep.subr.mxu0 0.0
  %466 = vmatpush1.msra.mxu0 0.0
  %467 = vmatprep.subr.mxu0 0.0
  %468 = vmatpush1.msra.mxu0 0.0
  %469 = vmatprep.subr.mxu0 0.0
  %470 = vmatpush1.msra.mxu0 0.0
  %471 = vmatprep.subr.mxu0 0.0
  %472 = vmatpush1.msra.mxu0 0.0
  %473 = vmatprep.subr.mxu0 0.0
  %474 = vmatpush1.msra.mxu0 0.0
  %475 = vmatprep.subr.mxu0 0.0
  %476 = vmatpush1.msra.mxu0 0.0
  %477 = vmatprep.subr.mxu0 0.0
  %478 = vmatpush1.msra.mxu0 0.0
  %479 = vmatprep.subr.mxu0 0.0
  %480 = vmatpush1.msra.mxu0 0.0
  %481 = vmatprep.subr.mxu0 0.0
  %482 = vmatpush1.msra.mxu0 0.0
  %483 = vmatprep.subr.mxu0 0.0
  %484 = vmatpush1.msra.mxu0 0.0
  %485 = vmatprep.subr.mxu0 0.0
  %486 = vmatpush1.msra.mxu0 0.0
  %487 = vmatprep.subr.mxu0 0.0
  %488 = vmatpush1.msra.mxu0 0.0
  %489 = vmatprep.subr.mxu0 0.0
  %490 = vmatpush1.msra.mxu0 0.0
  %491 = vmatprep.subr.mxu0 0.0
  %492 = vmatpush1.msra.mxu0 0.0
  %493 = vmatprep.subr.mxu0 0.0
  %494 = vmatpush1.msra.mxu0 0.0
  %495 = vmatprep.subr.mxu0 0.0
  %496 = vmatpush1.msra.mxu0 0.0
  %497 = vmatprep.subr.mxu0 0.0
  %498 = vmatpush1.msra.mxu0 0.0
  %499 = vmatprep.subr.mxu0 0.0
  %500 = vmatpush1.msra.mxu0 0.0
  %501 = vmatprep.subr.mxu0 0.0
  %502 = vmatpush1.msra.mxu0 0.0
  %503 = vmatprep.subr.mxu0 0.0
  %504 = vmatpush1.msra.mxu0 0.0
  %505 = vmatprep.mubr.f32.mxu0 0.0
  %v506 = vand.u32 %v61, 4294901760
  %507 = vmatmul.mubr.f32.gmra.mrb[0].mxu0 %v506
  %v508 = vpop.f32.mrb[0].mxu0
  %v509 = vadd.f32 %v437, %v508
  %v510 = vpop.f32.mrb[0].mxu0
  %511 = vdwg.mxu0
  %v512 = vmax.f32 %v509, 0.0
  %v514 = vsel %vm59, %v42, 0
  %v517 = vsel %vm52, %v512, 0
  %519 = vmatprep.subr.mxu0 0.0
  %v520 = vand.u32 %v517, 4294901760
  %521 = vmatpush1.msra.mxu0 %v520
  %522 = vmatprep.subr.mxu0 0.0
  %523 = vmatpush1.msra.mxu0 0.0
  %524 = vmatprep.subr.mxu0 0.0
  %525 = vmatpush1.msra.mxu0 0.0
  %526 = vmatprep.subr.mxu0 0.0
  %527 = vmatpush1.msra.mxu0 0.0
  %528 = vmatprep.subr.mxu0 0.0
  %529 = vmatpush1.msra.mxu0 0.0
  %530 = vmatprep.subr.mxu0 0.0
  %531 = vmatpush1.msra.mxu0 0.0
  %532 = vmatprep.subr.mxu0 0.0
  %533 = vmatpush1.msra.mxu0 0.0
  %534 = vmatprep.subr.mxu0 0.0
  %535 = vmatpush1.msra.mxu0 0.0
  %536 = vmatprep.subr.mxu0 0.0
  %537 = vmatpush1.msra.mxu0 0.0
  %538 = vmatprep.subr.mxu0 0.0
  %539 = vmatpush1.msra.mxu0 0.0
  %540 = vmatprep.subr.mxu0 0.0
  %541 = vmatpush1.msra.mxu0 0.0
  %542 = vmatprep.subr.mxu0 0.0
  %543 = vmatpush1.msra.mxu0 0.0
  %544 = vmatprep.subr.mxu0 0.0
  %545 = vmatpush1.msra.mxu0 0.0
  %546 = vmatprep.subr.mxu0 0.0
  %547 = vmatpush1.msra.mxu0 0.0
  %548 = vmatprep.subr.mxu0 0.0
  %549 = vmatpush1.msra.mxu0 0.0
  %550 = vmatprep.subr.mxu0 0.0
  %551 = vmatpush1.msra.mxu0 0.0
  %552 = vmatprep.subr.mxu0 0.0
  %553 = vmatpush1.msra.mxu0 0.0
  %554 = vmatprep.subr.mxu0 0.0
  %555 = vmatpush1.msra.mxu0 0.0
  %556 = vmatprep.subr.mxu0 0.0
  %557 = vmatpush1.msra.mxu0 0.0
  %558 = vmatprep.subr.mxu0 0.0
  %559 = vmatpush1.msra.mxu0 0.0
  %560 = vmatprep.subr.mxu0 0.0
  %561 = vmatpush1.msra.mxu0 0.0
  %562 = vmatprep.subr.mxu0 0.0
  %563 = vmatpush1.msra.mxu0 0.0
  %564 = vmatprep.subr.mxu0 0.0
  %565 = vmatpush1.msra.mxu0 0.0
  %566 = vmatprep.subr.mxu0 0.0
  %567 = vmatpush1.msra.mxu0 0.0
  %568 = vmatprep.subr.mxu0 0.0
  %569 = vmatpush1.msra.mxu0 0.0
  %570 = vmatprep.subr.mxu0 0.0
  %571 = vmatpush1.msra.mxu0 0.0
  %572 = vmatprep.subr.mxu0 0.0
  %573 = vmatpush1.msra.mxu0 0.0
  %574 = vmatprep.subr.mxu0 0.0
  %575 = vmatpush1.msra.mxu0 0.0
  %576 = vmatprep.subr.mxu0 0.0
  %577 = vmatpush1.msra.mxu0 0.0
  %578 = vmatprep.subr.mxu0 0.0
  %579 = vmatpush1.msra.mxu0 0.0
  %580 = vmatprep.subr.mxu0 0.0
  %581 = vmatpush1.msra.mxu0 0.0
  %582 = vmatprep.subr.mxu0 0.0
  %583 = vmatpush1.msra.mxu0 0.0
  %584 = vmatprep.mubr.f32.mxu0 0.0
  %v585 = vand.u32 %v514, 4294901760
  %v586 = vsub.f32 %v514, %v585
  %v587 = vand.u32 %v586, 4294901760
  %v588 = vsub.f32 %v586, %v587
  %v589 = vand.u32 %v588, 4294901760
  %590 = vmatmul.mubr.f32.gmra.mrb[0].mxu0 %v589
  %v591 = vpop.f32.mrb[0].mxu0
  %v592 = vadd.f32 %v43, %v591
  %v593 = vpop.f32.mrb[0].mxu0
  %594 = vdwg.mxu0
  %595 = vmatprep.subr.mxu0 0.0
  %v596 = vand.u32 %v517, 4294901760
  %v597 = vsub.f32 %v517, %v596
  %v598 = vand.u32 %v597, 4294901760
  %v599 = vsub.f32 %v597, %v598
  %v600 = vand.u32 %v599, 4294901760
  %601 = vmatpush1.msra.mxu0 %v600
  %602 = vmatprep.subr.mxu0 0.0
  %603 = vmatpush1.msra.mxu0 0.0
  %604 = vmatprep.subr.mxu0 0.0
  %605 = vmatpush1.msra.mxu0 0.0
  %606 = vmatprep.subr.mxu0 0.0
  %607 = vmatpush1.msra.mxu0 0.0
  %608 = vmatprep.subr.mxu0 0.0
  %609 = vmatpush1.msra.mxu0 0.0
  %610 = vmatprep.subr.mxu0 0.0
  %611 = vmatpush1.msra.mxu0 0.0
  %612 = vmatprep.subr.mxu0 0.0
  %613 = vmatpush1.msra.mxu0 0.0
  %614 = vmatprep.subr.mxu0 0.0
  %615 = vmatpush1.msra.mxu0 0.0
  %616 = vmatprep.subr.mxu0 0.0
  %617 = vmatpush1.msra.mxu0 0.0
  %618 = vmatprep.subr.mxu0 0.0
  %619 = vmatpush1.msra.mxu0 0.0
  %620 = vmatprep.subr.mxu0 0.0
  %621 = vmatpush1.msra.mxu0 0.0
  %622 = vmatprep.subr.mxu0 0.0
  %623 = vmatpush1.msra.mxu0 0.0
  %624 = vmatprep.subr.mxu0 0.0
  %625 = vmatpush1.msra.mxu0 0.0
  %626 = vmatprep.subr.mxu0 0.0
  %627 = vmatpush1.msra.mxu0 0.0
  %628 = vmatprep.subr.mxu0 0.0
  %629 = vmatpush1.msra.mxu0 0.0
  %630 = vmatprep.subr.mxu0 0.0
  %631 = vmatpush1.msra.mxu0 0.0
  %632 = vmatprep.subr.mxu0 0.0
  %633 = vmatpush1.msra.mxu0 0.0
  %634 = vmatprep.subr.mxu0 0.0
  %635 = vmatpush1.msra.mxu0 0.0
  %636 = vmatprep.subr.mxu0 0.0
  %637 = vmatpush1.msra.mxu0 0.0
  %638 = vmatprep.subr.mxu0 0.0
  %639 = vmatpush1.msra.mxu0 0.0
  %640 = vmatprep.subr.mxu0 0.0
  %641 = vmatpush1.msra.mxu0 0.0
  %642 = vmatprep.subr.mxu0 0.0
  %643 = vmatpush1.msra.mxu0 0.0
  %644 = vmatprep.subr.mxu0 0.0
  %645 = vmatpush1.msra.mxu0 0.0
  %646 = vmatprep.subr.mxu0 0.0
  %647 = vmatpush1.msra.mxu0 0.0
  %648 = vmatprep.subr.mxu0 0.0
  %649 = vmatpush1.msra.mxu0 0.0
  %650 = vmatprep.subr.mxu0 0.0
  %651 = vmatpush1.msra.mxu0 0.0
  %652 = vmatprep.subr.mxu0 0.0
  %653 = vmatpush1.msra.mxu0 0.0
  %654 = vmatprep.subr.mxu0 0.0
  %655 = vmatpush1.msra.mxu0 0.0
  %656 = vmatprep.subr.mxu0 0.0
  %657 = vmatpush1.msra.mxu0 0.0
  %658 = vmatprep.subr.mxu0 0.0
  %659 = vmatpush1.msra.mxu0 0.0
  %660 = vmatprep.subr.mxu0 0.0
  %661 = vmatpush1.msra.mxu0 0.0
  %662 = vmatprep.subr.mxu0 0.0
  %663 = vmatpush1.msra.mxu0 0.0
  %664 = vmatprep.mubr.f32.mxu0 0.0
  %v665 = vand.u32 %v514, 4294901760
  %666 = vmatmul.mubr.f32.gmra.mrb[0].mxu0 %v665
  %v667 = vpop.f32.mrb[0].mxu0
  %v668 = vadd.f32 %v592, %v667
  %v669 = vpop.f32.mrb[0].mxu0
  %670 = vdwg.mxu0
  %671 = vmatprep.subr.mxu0 0.0
  %v672 = vand.u32 %v517, 4294901760
  %v673 = vsub.f32 %v517, %v672
  %674 = vmatpush1.msra.mxu0 %v673
  %675 = vmatprep.subr.mxu0 0.0
  %676 = vmatpush1.msra.mxu0 0.0
  %677 = vmatprep.subr.mxu0 0.0
  %678 = vmatpush1.msra.mxu0 0.0
  %679 = vmatprep.subr.mxu0 0.0
  %680 = vmatpush1.msra.mxu0 0.0
  %681 = vmatprep.subr.mxu0 0.0
  %682 = vmatpush1.msra.mxu0 0.0
  %683 = vmatprep.subr.mxu0 0.0
  %684 = vmatpush1.msra.mxu0 0.0
  %685 = vmatprep.subr.mxu0 0.0
  %686 = vmatpush1.msra.mxu0 0.0
  %687 = vmatprep.subr.mxu0 0.0
  %688 = vmatpush1.msra.mxu0 0.0
  %689 = vmatprep.subr.mxu0 0.0
  %690 = vmatpush1.msra.mxu0 0.0
  %691 = vmatprep.subr.mxu0 0.0
  %692 = vmatpush1.msra.mxu0 0.0
  %693 = vmatprep.subr.mxu0 0.0
  %694 = vmatpush1.msra.mxu0 0.0
  %695 = vmatprep.subr.mxu0 0.0
  %696 = vmatpush1.msra.mxu0 0.0
  %697 = vmatprep.subr.mxu0 0.0
  %698 = vmatpush1.msra.mxu0 0.0
  %699 = vmatprep.subr.mxu0 0.0
  %700 = vmatpush1.msra.mxu0 0.0
  %701 = vmatprep.subr.mxu0 0.0
  %702 = vmatpush1.msra.mxu0 0.0
  %703 = vmatprep.subr.mxu0 0.0
  %704 = vmatpush1.msra.mxu0 0.0
  %705 = vmatprep.subr.mxu0 0.0
  %706 = vmatpush1.msra.mxu0 0.0
  %707 = vmatprep.subr.mxu0 0.0
  %708 = vmatpush1.msra.mxu0 0.0
  %709 = vmatprep.subr.mxu0 0.0
  %710 = vmatpush1.msra.mxu0 0.0
  %711 = vmatprep.subr.mxu0 0.0
  %712 = vmatpush1.msra.mxu0 0.0
  %713 = vmatprep.subr.mxu0 0.0
  %714 = vmatpush1.msra.mxu0 0.0
  %715 = vmatprep.subr.mxu0 0.0
  %716 = vmatpush1.msra.mxu0 0.0
  %717 = vmatprep.subr.mxu0 0.0
  %718 = vmatpush1.msra.mxu0 0.0
  %719 = vmatprep.subr.mxu0 0.0
  %720 = vmatpush1.msra.mxu0 0.0
  %721 = vmatprep.subr.mxu0 0.0
  %722 = vmatpush1.msra.mxu0 0.0
  %723 = vmatprep.subr.mxu0 0.0
  %724 = vmatpush1.msra.mxu0 0.0
  %725 = vmatprep.subr.mxu0 0.0
  %726 = vmatpush1.msra.mxu0 0.0
  %727 = vmatprep.subr.mxu0 0.0
  %728 = vmatpush1.msra.mxu0 0.0
  %729 = vmatprep.subr.mxu0 0.0
  %730 = vmatpush1.msra.mxu0 0.0
  %731 = vmatprep.subr.mxu0 0.0
  %732 = vmatpush1.msra.mxu0 0.0
  %733 = vmatprep.subr.mxu0 0.0
  %734 = vmatpush1.msra.mxu0 0.0
  %735 = vmatprep.subr.mxu0 0.0
  %736 = vmatpush1.msra.mxu0 0.0
  %737 = vmatprep.mubr.f32.mxu0 0.0
  %v738 = vand.u32 %v514, 4294901760
  %v739 = vsub.f32 %v514, %v738
  %740 = vmatmul.mubr.f32.gmra.mrb[0].mxu0 %v739
  %v741 = vpop.f32.mrb[0].mxu0
  %v742 = vadd.f32 %v668, %v741
  %v743 = vpop.f32.mrb[0].mxu0
  %744 = vdwg.mxu0
  %745 = vmatprep.subr.mxu0 0.0
  %v746 = vand.u32 %v517, 4294901760
  %747 = vmatpush1.msra.mxu0 %v746
  %748 = vmatprep.subr.mxu0 0.0
  %749 = vmatpush1.msra.mxu0 0.0
  %750 = vmatprep.subr.mxu0 0.0
  %751 = vmatpush1.msra.mxu0 0.0
  %752 = vmatprep.subr.mxu0 0.0
  %753 = vmatpush1.msra.mxu0 0.0
  %754 = vmatprep.subr.mxu0 0.0
  %755 = vmatpush1.msra.mxu0 0.0
  %756 = vmatprep.subr.mxu0 0.0
  %757 = vmatpush1.msra.mxu0 0.0
  %758 = vmatprep.subr.mxu0 0.0
  %759 = vmatpush1.msra.mxu0 0.0
  %760 = vmatprep.subr.mxu0 0.0
  %761 = vmatpush1.msra.mxu0 0.0
  %762 = vmatprep.subr.mxu0 0.0
  %763 = vmatpush1.msra.mxu0 0.0
  %764 = vmatprep.subr.mxu0 0.0
  %765 = vmatpush1.msra.mxu0 0.0
  %766 = vmatprep.subr.mxu0 0.0
  %767 = vmatpush1.msra.mxu0 0.0
  %768 = vmatprep.subr.mxu0 0.0
  %769 = vmatpush1.msra.mxu0 0.0
  %770 = vmatprep.subr.mxu0 0.0
  %771 = vmatpush1.msra.mxu0 0.0
  %772 = vmatprep.subr.mxu0 0.0
  %773 = vmatpush1.msra.mxu0 0.0
  %774 = vmatprep.subr.mxu0 0.0
  %775 = vmatpush1.msra.mxu0 0.0
  %776 = vmatprep.subr.mxu0 0.0
  %777 = vmatpush1.msra.mxu0 0.0
  %778 = vmatprep.subr.mxu0 0.0
  %779 = vmatpush1.msra.mxu0 0.0
  %780 = vmatprep.subr.mxu0 0.0
  %781 = vmatpush1.msra.mxu0 0.0
  %782 = vmatprep.subr.mxu0 0.0
  %783 = vmatpush1.msra.mxu0 0.0
  %784 = vmatprep.subr.mxu0 0.0
  %785 = vmatpush1.msra.mxu0 0.0
  %786 = vmatprep.subr.mxu0 0.0
  %787 = vmatpush1.msra.mxu0 0.0
  %788 = vmatprep.subr.mxu0 0.0
  %789 = vmatpush1.msra.mxu0 0.0
  %790 = vmatprep.subr.mxu0 0.0
  %791 = vmatpush1.msra.mxu0 0.0
  %792 = vmatprep.subr.mxu0 0.0
  %793 = vmatpush1.msra.mxu0 0.0
  %794 = vmatprep.subr.mxu0 0.0
  %795 = vmatpush1.msra.mxu0 0.0
  %796 = vmatprep.subr.mxu0 0.0
  %797 = vmatpush1.msra.mxu0 0.0
  %798 = vmatprep.subr.mxu0 0.0
  %799 = vmatpush1.msra.mxu0 0.0
  %800 = vmatprep.subr.mxu0 0.0
  %801 = vmatpush1.msra.mxu0 0.0
  %802 = vmatprep.subr.mxu0 0.0
  %803 = vmatpush1.msra.mxu0 0.0
  %804 = vmatprep.subr.mxu0 0.0
  %805 = vmatpush1.msra.mxu0 0.0
  %806 = vmatprep.subr.mxu0 0.0
  %807 = vmatpush1.msra.mxu0 0.0
  %808 = vmatprep.subr.mxu0 0.0
  %809 = vmatpush1.msra.mxu0 0.0
  %810 = vmatprep.mubr.f32.mxu0 0.0
  %v811 = vand.u32 %v514, 4294901760
  %v812 = vsub.f32 %v514, %v811
  %v813 = vand.u32 %v812, 4294901760
  %814 = vmatmul.mubr.f32.gmra.mrb[0].mxu0 %v813
  %v815 = vpop.f32.mrb[0].mxu0
  %v816 = vadd.f32 %v742, %v815
  %v817 = vpop.f32.mrb[0].mxu0
  %818 = vdwg.mxu0
  %819 = vmatprep.subr.mxu0 0.0
  %v820 = vand.u32 %v517, 4294901760
  %v821 = vsub.f32 %v517, %v820
  %v822 = vand.u32 %v821, 4294901760
  %823 = vmatpush1.msra.mxu0 %v822
  %824 = vmatprep.subr.mxu0 0.0
  %825 = vmatpush1.msra.mxu0 0.0
  %826 = vmatprep.subr.mxu0 0.0
  %827 = vmatpush1.msra.mxu0 0.0
  %828 = vmatprep.subr.mxu0 0.0
  %829 = vmatpush1.msra.mxu0 0.0
  %830 = vmatprep.subr.mxu0 0.0
  %831 = vmatpush1.msra.mxu0 0.0
  %832 = vmatprep.subr.mxu0 0.0
  %833 = vmatpush1.msra.mxu0 0.0
  %834 = vmatprep.subr.mxu0 0.0
  %835 = vmatpush1.msra.mxu0 0.0
  %836 = vmatprep.subr.mxu0 0.0
  %837 = vmatpush1.msra.mxu0 0.0
  %838 = vmatprep.subr.mxu0 0.0
  %839 = vmatpush1.msra.mxu0 0.0
  %840 = vmatprep.subr.mxu0 0.0
  %841 = vmatpush1.msra.mxu0 0.0
  %842 = vmatprep.subr.mxu0 0.0
  %843 = vmatpush1.msra.mxu0 0.0
  %844 = vmatprep.subr.mxu0 0.0
  %845 = vmatpush1.msra.mxu0 0.0
  %846 = vmatprep.subr.mxu0 0.0
  %847 = vmatpush1.msra.mxu0 0.0
  %848 = vmatprep.subr.mxu0 0.0
  %849 = vmatpush1.msra.mxu0 0.0
  %850 = vmatprep.subr.mxu0 0.0
  %851 = vmatpush1.msra.mxu0 0.0
  %852 = vmatprep.subr.mxu0 0.0
  %853 = vmatpush1.msra.mxu0 0.0
  %854 = vmatprep.subr.mxu0 0.0
  %855 = vmatpush1.msra.mxu0 0.0
  %856 = vmatprep.subr.mxu0 0.0
  %857 = vmatpush1.msra.mxu0 0.0
  %858 = vmatprep.subr.mxu0 0.0
  %859 = vmatpush1.msra.mxu0 0.0
  %860 = vmatprep.subr.mxu0 0.0
  %861 = vmatpush1.msra.mxu0 0.0
  %862 = vmatprep.subr.mxu0 0.0
  %863 = vmatpush1.msra.mxu0 0.0
  %864 = vmatprep.subr.mxu0 0.0
  %865 = vmatpush1.msra.mxu0 0.0
  %866 = vmatprep.subr.mxu0 0.0
  %867 = vmatpush1.msra.mxu0 0.0
  %868 = vmatprep.subr.mxu0 0.0
  %869 = vmatpush1.msra.mxu0 0.0
  %870 = vmatprep.subr.mxu0 0.0
  %871 = vmatpush1.msra.mxu0 0.0
  %872 = vmatprep.subr.mxu0 0.0
  %873 = vmatpush1.msra.mxu0 0.0
  %874 = vmatprep.subr.mxu0 0.0
  %875 = vmatpush1.msra.mxu0 0.0
  %876 = vmatprep.subr.mxu0 0.0
  %877 = vmatpush1.msra.mxu0 0.0
  %878 = vmatprep.subr.mxu0 0.0
  %879 = vmatpush1.msra.mxu0 0.0
  %880 = vmatprep.subr.mxu0 0.0
  %881 = vmatpush1.msra.mxu0 0.0
  %882 = vmatprep.subr.mxu0 0.0
  %883 = vmatpush1.msra.mxu0 0.0
  %884 = vmatprep.subr.mxu0 0.0
  %885 = vmatpush1.msra.mxu0 0.0
  %886 = vmatprep.mubr.f32.mxu0 0.0
  %v887 = vand.u32 %v514, 4294901760
  %888 = vmatmul.mubr.f32.gmra.mrb[0].mxu0 %v887
  %v889 = vpop.f32.mrb[0].mxu0
  %v890 = vadd.f32 %v816, %v889
  %v891 = vpop.f32.mrb[0].mxu0
  %892 = vdwg.mxu0
  %893 = vmatprep.subr.mxu0 0.0
  %v894 = vand.u32 %v517, 4294901760
  %895 = vmatpush1.msra.mxu0 %v894
  %896 = vmatprep.subr.mxu0 0.0
  %897 = vmatpush1.msra.mxu0 0.0
  %898 = vmatprep.subr.mxu0 0.0
  %899 = vmatpush1.msra.mxu0 0.0
  %900 = vmatprep.subr.mxu0 0.0
  %901 = vmatpush1.msra.mxu0 0.0
  %902 = vmatprep.subr.mxu0 0.0
  %903 = vmatpush1.msra.mxu0 0.0
  %904 = vmatprep.subr.mxu0 0.0
  %905 = vmatpush1.msra.mxu0 0.0
  %906 = vmatprep.subr.mxu0 0.0
  %907 = vmatpush1.msra.mxu0 0.0
  %908 = vmatprep.subr.mxu0 0.0
  %909 = vmatpush1.msra.mxu0 0.0
  %910 = vmatprep.subr.mxu0 0.0
  %911 = vmatpush1.msra.mxu0 0.0
  %912 = vmatprep.subr.mxu0 0.0
  %913 = vmatpush1.msra.mxu0 0.0
  %914 = vmatprep.subr.mxu0 0.0
  %915 = vmatpush1.msra.mxu0 0.0
  %916 = vmatprep.subr.mxu0 0.0
  %917 = vmatpush1.msra.mxu0 0.0
  %918 = vmatprep.subr.mxu0 0.0
  %919 = vmatpush1.msra.mxu0 0.0
  %920 = vmatprep.subr.mxu0 0.0
  %921 = vmatpush1.msra.mxu0 0.0
  %922 = vmatprep.subr.mxu0 0.0
  %923 = vmatpush1.msra.mxu0 0.0
  %924 = vmatprep.subr.mxu0 0.0
  %925 = vmatpush1.msra.mxu0 0.0
  %926 = vmatprep.subr.mxu0 0.0
  %927 = vmatpush1.msra.mxu0 0.0
  %928 = vmatprep.subr.mxu0 0.0
  %929 = vmatpush1.msra.mxu0 0.0
  %930 = vmatprep.subr.mxu0 0.0
  %931 = vmatpush1.msra.mxu0 0.0
  %932 = vmatprep.subr.mxu0 0.0
  %933 = vmatpush1.msra.mxu0 0.0
  %934 = vmatprep.subr.mxu0 0.0
  %935 = vmatpush1.msra.mxu0 0.0
  %936 = vmatprep.subr.mxu0 0.0
  %937 = vmatpush1.msra.mxu0 0.0
  %938 = vmatprep.subr.mxu0 0.0
  %939 = vmatpush1.msra.mxu0 0.0
  %940 = vmatprep.subr.mxu0 0.0
  %941 = vmatpush1.msra.mxu0 0.0
  %942 = vmatprep.subr.mxu0 0.0
  %943 = vmatpush1.msra.mxu0 0.0
  %944 = vmatprep.subr.mxu0 0.0
  %945 = vmatpush1.msra.mxu0 0.0
  %946 = vmatprep.subr.mxu0 0.0
  %947 = vmatpush1.msra.mxu0 0.0
  %948 = vmatprep.subr.mxu0 0.0
  %949 = vmatpush1.msra.mxu0 0.0
  %950 = vmatprep.subr.mxu0 0.0
  %951 = vmatpush1.msra.mxu0 0.0
  %952 = vmatprep.subr.mxu0 0.0
  %953 = vmatpush1.msra.mxu0 0.0
  %954 = vmatprep.subr.mxu0 0.0
  %955 = vmatpush1.msra.mxu0 0.0
  %956 = vmatprep.subr.mxu0 0.0
  %957 = vmatpush1.msra.mxu0 0.0
  %958 = vmatprep.mubr.f32.mxu0 0.0
  %v959 = vand.u32 %v514, 4294901760
  %960 = vmatmul.mubr.f32.gmra.mrb[0].mxu0 %v959
  %v961 = vpop.f32.mrb[0].mxu0
  %v962 = vadd.f32 %v890, %v961
  %v963 = vpop.f32.mrb[0].mxu0
  %964 = vdwg.mxu0
  %v965 = vsub.f32 0.0, %v962
  %v966 = vmul.f32 %v965, 1.442695
  %v967 = vpow.pop %v966
  %v968 = vadd.f32 %v967, 1.0
  %v969 = vrcp.pop %v968
  %v971 = vsel %vm59, %v44, 0
  %973 = vmatprep.subr.mxu0 0.0
  %v974 = vand.u32 %v64, 4294901760
  %975 = vmatpush1.msra.mxu0 %v974
  %976 = vmatprep.subr.mxu0 0.0
  %977 = vmatpush1.msra.mxu0 0.0
  %978 = vmatprep.subr.mxu0 0.0
  %979 = vmatpush1.msra.mxu0 0.0
  %980 = vmatprep.subr.mxu0 0.0
  %981 = vmatpush1.msra.mxu0 0.0
  %982 = vmatprep.subr.mxu0 0.0
  %983 = vmatpush1.msra.mxu0 0.0
  %984 = vmatprep.subr.mxu0 0.0
  %985 = vmatpush1.msra.mxu0 0.0
  %986 = vmatprep.subr.mxu0 0.0
  %987 = vmatpush1.msra.mxu0 0.0
  %988 = vmatprep.subr.mxu0 0.0
  %989 = vmatpush1.msra.mxu0 0.0
  %990 = vmatprep.subr.mxu0 0.0
  %991 = vmatpush1.msra.mxu0 0.0
  %992 = vmatprep.subr.mxu0 0.0
  %993 = vmatpush1.msra.mxu0 0.0
  %994 = vmatprep.subr.mxu0 0.0
  %995 = vmatpush1.msra.mxu0 0.0
  %996 = vmatprep.subr.mxu0 0.0
  %997 = vmatpush1.msra.mxu0 0.0
  %998 = vmatprep.subr.mxu0 0.0
  %999 = vmatpush1.msra.mxu0 0.0
  %1000 = vmatprep.subr.mxu0 0.0
  %1001 = vmatpush1.msra.mxu0 0.0
  %1002 = vmatprep.subr.mxu0 0.0
  %1003 = vmatpush1.msra.mxu0 0.0
  %1004 = vmatprep.subr.mxu0 0.0
  %1005 = vmatpush1.msra.mxu0 0.0
  %1006 = vmatprep.subr.mxu0 0.0
  %1007 = vmatpush1.msra.mxu0 0.0
  %1008 = vmatprep.subr.mxu0 0.0
  %1009 = vmatpush1.msra.mxu0 0.0
  %1010 = vmatprep.subr.mxu0 0.0
  %1011 = vmatpush1.msra.mxu0 0.0
  %1012 = vmatprep.subr.mxu0 0.0
  %1013 = vmatpush1.msra.mxu0 0.0
  %1014 = vmatprep.subr.mxu0 0.0
  %1015 = vmatpush1.msra.mxu0 0.0
  %1016 = vmatprep.subr.mxu0 0.0
  %1017 = vmatpush1.msra.mxu0 0.0
  %1018 = vmatprep.subr.mxu0 0.0
  %1019 = vmatpush1.msra.mxu0 0.0
  %1020 = vmatprep.subr.mxu0 0.0
  %1021 = vmatpush1.msra.mxu0 0.0
  %1022 = vmatprep.subr.mxu0 0.0
  %1023 = vmatpush1.msra.mxu0 0.0
  %1024 = vmatprep.subr.mxu0 0.0
  %1025 = vmatpush1.msra.mxu0 0.0
  %1026 = vmatprep.subr.mxu0 0.0
  %1027 = vmatpush1.msra.mxu0 0.0
  %1028 = vmatprep.subr.mxu0 0.0
  %1029 = vmatpush1.msra.mxu0 0.0
  %1030 = vmatprep.subr.mxu0 0.0
  %1031 = vmatpush1.msra.mxu0 0.0
  %1032 = vmatprep.subr.mxu0 0.0
  %1033 = vmatpush1.msra.mxu0 0.0
  %1034 = vmatprep.subr.mxu0 0.0
  %1035 = vmatpush1.msra.mxu0 0.0
  %1036 = vmatprep.subr.mxu0 0.0
  %1037 = vmatpush1.msra.mxu0 0.0
  %1038 = vmatprep.mubr.f32.mxu0 0.0
  %v1039 = vand.u32 %v971, 4294901760
  %v1040 = vsub.f32 %v971, %v1039
  %v1041 = vand.u32 %v1040, 4294901760
  %v1042 = vsub.f32 %v1040, %v1041
  %v1043 = vand.u32 %v1042, 4294901760
  %1044 = vmatmul.mubr.f32.gmra.mrb[0].mxu0 %v1043
  %v1045 = vpop.f32.mrb[0].mxu0
  %v1046 = vadd.f32 %v45, %v1045
  %v1047 = vpop.f32.mrb[0].mxu0
  %1048 = vdwg.mxu0
  %1049 = vmatprep.subr.mxu0 0.0
  %v1050 = vand.u32 %v64, 4294901760
  %v1051 = vsub.f32 %v64, %v1050
  %v1052 = vand.u32 %v1051, 4294901760
  %v1053 = vsub.f32 %v1051, %v1052
  %v1054 = vand.u32 %v1053, 4294901760
  %1055 = vmatpush1.msra.mxu0 %v1054
  %1056 = vmatprep.subr.mxu0 0.0
  %1057 = vmatpush1.msra.mxu0 0.0
  %1058 = vmatprep.subr.mxu0 0.0
  %1059 = vmatpush1.msra.mxu0 0.0
  %1060 = vmatprep.subr.mxu0 0.0
  %1061 = vmatpush1.msra.mxu0 0.0
  %1062 = vmatprep.subr.mxu0 0.0
  %1063 = vmatpush1.msra.mxu0 0.0
  %1064 = vmatprep.subr.mxu0 0.0
  %1065 = vmatpush1.msra.mxu0 0.0
  %1066 = vmatprep.subr.mxu0 0.0
  %1067 = vmatpush1.msra.mxu0 0.0
  %1068 = vmatprep.subr.mxu0 0.0
  %1069 = vmatpush1.msra.mxu0 0.0
  %1070 = vmatprep.subr.mxu0 0.0
  %1071 = vmatpush1.msra.mxu0 0.0
  %1072 = vmatprep.subr.mxu0 0.0
  %1073 = vmatpush1.msra.mxu0 0.0
  %1074 = vmatprep.subr.mxu0 0.0
  %1075 = vmatpush1.msra.mxu0 0.0
  %1076 = vmatprep.subr.mxu0 0.0
  %1077 = vmatpush1.msra.mxu0 0.0
  %1078 = vmatprep.subr.mxu0 0.0
  %1079 = vmatpush1.msra.mxu0 0.0
  %1080 = vmatprep.subr.mxu0 0.0
  %1081 = vmatpush1.msra.mxu0 0.0
  %1082 = vmatprep.subr.mxu0 0.0
  %1083 = vmatpush1.msra.mxu0 0.0
  %1084 = vmatprep.subr.mxu0 0.0
  %1085 = vmatpush1.msra.mxu0 0.0
  %1086 = vmatprep.subr.mxu0 0.0
  %1087 = vmatpush1.msra.mxu0 0.0
  %1088 = vmatprep.subr.mxu0 0.0
  %1089 = vmatpush1.msra.mxu0 0.0
  %1090 = vmatprep.subr.mxu0 0.0
  %1091 = vmatpush1.msra.mxu0 0.0
  %1092 = vmatprep.subr.mxu0 0.0
  %1093 = vmatpush1.msra.mxu0 0.0
  %1094 = vmatprep.subr.mxu0 0.0
  %1095 = vmatpush1.msra.mxu0 0.0
  %1096 = vmatprep.subr.mxu0 0.0
  %1097 = vmatpush1.msra.mxu0 0.0
  %1098 = vmatprep.subr.mxu0 0.0
  %1099 = vmatpush1.msra.mxu0 0.0
  %1100 = vmatprep.subr.mxu0 0.0
  %1101 = vmatpush1.msra.mxu0 0.0
  %1102 = vmatprep.subr.mxu0 0.0
  %1103 = vmatpush1.msra.mxu0 0.0
  %1104 = vmatprep.subr.mxu0 0.0
  %1105 = vmatpush1.msra.mxu0 0.0
  %1106 = vmatprep.subr.mxu0 0.0
  %1107 = vmatpush1.msra.mxu0 0.0
  %1108 = vmatprep.subr.mxu0 0.0
  %1109 = vmatpush1.msra.mxu0 0.0
  %1110 = vmatprep.subr.mxu0 0.0
  %1111 = vmatpush1.msra.mxu0 0.0
  %1112 = vmatprep.subr.mxu0 0.0
  %1113 = vmatpush1.msra.mxu0 0.0
  %1114 = vmatprep.subr.mxu0 0.0
  %1115 = vmatpush1.msra.mxu0 0.0
  %1116 = vmatprep.subr.mxu0 0.0
  %1117 = vmatpush1.msra.mxu0 0.0
  %1118 = vmatprep.mubr.f32.mxu0 0.0
  %v1119 = vand.u32 %v971, 4294901760
  %1120 = vmatmul.mubr.f32.gmra.mrb[0].mxu0 %v1119
  %v1121 = vpop.f32.mrb[0].mxu0
  %v1122 = vadd.f32 %v1046, %v1121
  %v1123 = vpop.f32.mrb[0].mxu0
  %1124 = vdwg.mxu0
  %1125 = vmatprep.subr.mxu0 0.0
  %v1126 = vand.u32 %v64, 4294901760
  %v1127 = vsub.f32 %v64, %v1126
  %1128 = vmatpush1.msra.mxu0 %v1127
  %1129 = vmatprep.subr.mxu0 0.0
  %1130 = vmatpush1.msra.mxu0 0.0
  %1131 = vmatprep.subr.mxu0 0.0
  %1132 = vmatpush1.msra.mxu0 0.0
  %1133 = vmatprep.subr.mxu0 0.0
  %1134 = vmatpush1.msra.mxu0 0.0
  %1135 = vmatprep.subr.mxu0 0.0
  %1136 = vmatpush1.msra.mxu0 0.0
  %1137 = vmatprep.subr.mxu0 0.0
  %1138 = vmatpush1.msra.mxu0 0.0
  %1139 = vmatprep.subr.mxu0 0.0
  %1140 = vmatpush1.msra.mxu0 0.0
  %1141 = vmatprep.subr.mxu0 0.0
  %1142 = vmatpush1.msra.mxu0 0.0
  %1143 = vmatprep.subr.mxu0 0.0
  %1144 = vmatpush1.msra.mxu0 0.0
  %1145 = vmatprep.subr.mxu0 0.0
  %1146 = vmatpush1.msra.mxu0 0.0
  %1147 = vmatprep.subr.mxu0 0.0
  %1148 = vmatpush1.msra.mxu0 0.0
  %1149 = vmatprep.subr.mxu0 0.0
  %1150 = vmatpush1.msra.mxu0 0.0
  %1151 = vmatprep.subr.mxu0 0.0
  %1152 = vmatpush1.msra.mxu0 0.0
  %1153 = vmatprep.subr.mxu0 0.0
  %1154 = vmatpush1.msra.mxu0 0.0
  %1155 = vmatprep.subr.mxu0 0.0
  %1156 = vmatpush1.msra.mxu0 0.0
  %1157 = vmatprep.subr.mxu0 0.0
  %1158 = vmatpush1.msra.mxu0 0.0
  %1159 = vmatprep.subr.mxu0 0.0
  %1160 = vmatpush1.msra.mxu0 0.0
  %1161 = vmatprep.subr.mxu0 0.0
  %1162 = vmatpush1.msra.mxu0 0.0
  %1163 = vmatprep.subr.mxu0 0.0
  %1164 = vmatpush1.msra.mxu0 0.0
  %1165 = vmatprep.subr.mxu0 0.0
  %1166 = vmatpush1.msra.mxu0 0.0
  %1167 = vmatprep.subr.mxu0 0.0
  %1168 = vmatpush1.msra.mxu0 0.0
  %1169 = vmatprep.subr.mxu0 0.0
  %1170 = vmatpush1.msra.mxu0 0.0
  %1171 = vmatprep.subr.mxu0 0.0
  %1172 = vmatpush1.msra.mxu0 0.0
  %1173 = vmatprep.subr.mxu0 0.0
  %1174 = vmatpush1.msra.mxu0 0.0
  %1175 = vmatprep.subr.mxu0 0.0
  %1176 = vmatpush1.msra.mxu0 0.0
  %1177 = vmatprep.subr.mxu0 0.0
  %1178 = vmatpush1.msra.mxu0 0.0
  %1179 = vmatprep.subr.mxu0 0.0
  %1180 = vmatpush1.msra.mxu0 0.0
  %1181 = vmatprep.subr.mxu0 0.0
  %1182 = vmatpush1.msra.mxu0 0.0
  %1183 = vmatprep.subr.mxu0 0.0
  %1184 = vmatpush1.msra.mxu0 0.0
  %1185 = vmatprep.subr.mxu0 0.0
  %1186 = vmatpush1.msra.mxu0 0.0
  %1187 = vmatprep.subr.mxu0 0.0
  %1188 = vmatpush1.msra.mxu0 0.0
  %1189 = vmatprep.subr.mxu0 0.0
  %1190 = vmatpush1.msra.mxu0 0.0
  %1191 = vmatprep.mubr.f32.mxu0 0.0
  %v1192 = vand.u32 %v971, 4294901760
  %v1193 = vsub.f32 %v971, %v1192
  %1194 = vmatmul.mubr.f32.gmra.mrb[0].mxu0 %v1193
  %v1195 = vpop.f32.mrb[0].mxu0
  %v1196 = vadd.f32 %v1122, %v1195
  %v1197 = vpop.f32.mrb[0].mxu0
  %1198 = vdwg.mxu0
  %1199 = vmatprep.subr.mxu0 0.0
  %v1200 = vand.u32 %v64, 4294901760
  %1201 = vmatpush1.msra.mxu0 %v1200
  %1202 = vmatprep.subr.mxu0 0.0
  %1203 = vmatpush1.msra.mxu0 0.0
  %1204 = vmatprep.subr.mxu0 0.0
  %1205 = vmatpush1.msra.mxu0 0.0
  %1206 = vmatprep.subr.mxu0 0.0
  %1207 = vmatpush1.msra.mxu0 0.0
  %1208 = vmatprep.subr.mxu0 0.0
  %1209 = vmatpush1.msra.mxu0 0.0
  %1210 = vmatprep.subr.mxu0 0.0
  %1211 = vmatpush1.msra.mxu0 0.0
  %1212 = vmatprep.subr.mxu0 0.0
  %1213 = vmatpush1.msra.mxu0 0.0
  %1214 = vmatprep.subr.mxu0 0.0
  %1215 = vmatpush1.msra.mxu0 0.0
  %1216 = vmatprep.subr.mxu0 0.0
  %1217 = vmatpush1.msra.mxu0 0.0
  %1218 = vmatprep.subr.mxu0 0.0
  %1219 = vmatpush1.msra.mxu0 0.0
  %1220 = vmatprep.subr.mxu0 0.0
  %1221 = vmatpush1.msra.mxu0 0.0
  %1222 = vmatprep.subr.mxu0 0.0
  %1223 = vmatpush1.msra.mxu0 0.0
  %1224 = vmatprep.subr.mxu0 0.0
  %1225 = vmatpush1.msra.mxu0 0.0
  %1226 = vmatprep.subr.mxu0 0.0
  %1227 = vmatpush1.msra.mxu0 0.0
  %1228 = vmatprep.subr.mxu0 0.0
  %1229 = vmatpush1.msra.mxu0 0.0
  %1230 = vmatprep.subr.mxu0 0.0
  %1231 = vmatpush1.msra.mxu0 0.0
  %1232 = vmatprep.subr.mxu0 0.0
  %1233 = vmatpush1.msra.mxu0 0.0
  %1234 = vmatprep.subr.mxu0 0.0
  %1235 = vmatpush1.msra.mxu0 0.0
  %1236 = vmatprep.subr.mxu0 0.0
  %1237 = vmatpush1.msra.mxu0 0.0
  %1238 = vmatprep.subr.mxu0 0.0
  %1239 = vmatpush1.msra.mxu0 0.0
  %1240 = vmatprep.subr.mxu0 0.0
  %1241 = vmatpush1.msra.mxu0 0.0
  %1242 = vmatprep.subr.mxu0 0.0
  %1243 = vmatpush1.msra.mxu0 0.0
  %1244 = vmatprep.subr.mxu0 0.0
  %1245 = vmatpush1.msra.mxu0 0.0
  %1246 = vmatprep.subr.mxu0 0.0
  %1247 = vmatpush1.msra.mxu0 0.0
  %1248 = vmatprep.subr.mxu0 0.0
  %1249 = vmatpush1.msra.mxu0 0.0
  %1250 = vmatprep.subr.mxu0 0.0
  %1251 = vmatpush1.msra.mxu0 0.0
  %1252 = vmatprep.subr.mxu0 0.0
  %1253 = vmatpush1.msra.mxu0 0.0
  %1254 = vmatprep.subr.mxu0 0.0
  %1255 = vmatpush1.msra.mxu0 0.0
  %1256 = vmatprep.subr.mxu0 0.0
  %1257 = vmatpush1.msra.mxu0 0.0
  %1258 = vmatprep.subr.mxu0 0.0
  %1259 = vmatpush1.msra.mxu0 0.0
  %1260 = vmatprep.subr.mxu0 0.0
  %1261 = vmatpush1.msra.mxu0 0.0
  %1262 = vmatprep.subr.mxu0 0.0
  %1263 = vmatpush1.msra.mxu0 0.0
  %1264 = vmatprep.mubr.f32.mxu0 0.0
  %v1265 = vand.u32 %v971, 4294901760
  %v1266 = vsub.f32 %v971, %v1265
  %v1267 = vand.u32 %v1266, 4294901760
  %1268 = vmatmul.mubr.f32.gmra.mrb[0].mxu0 %v1267
  %v1269 = vpop.f32.mrb[0].mxu0
  %v1270 = vadd.f32 %v1196, %v1269
  %v1271 = vpop.f32.mrb[0].mxu0
  %1272 = vdwg.mxu0
  %1273 = vmatprep.subr.mxu0 0.0
  %v1274 = vand.u32 %v64, 4294901760
  %v1275 = vsub.f32 %v64, %v1274
  %v1276 = vand.u32 %v1275, 4294901760
  %1277 = vmatpush1.msra.mxu0 %v1276
  %1278 = vmatprep.subr.mxu0 0.0
  %1279 = vmatpush1.msra.mxu0 0.0
  %1280 = vmatprep.subr.mxu0 0.0
  %1281 = vmatpush1.msra.mxu0 0.0
  %1282 = vmatprep.subr.mxu0 0.0
  %1283 = vmatpush1.msra.mxu0 0.0
  %1284 = vmatprep.subr.mxu0 0.0
  %1285 = vmatpush1.msra.mxu0 0.0
  %1286 = vmatprep.subr.mxu0 0.0
  %1287 = vmatpush1.msra.mxu0 0.0
  %1288 = vmatprep.subr.mxu0 0.0
  %1289 = vmatpush1.msra.mxu0 0.0
  %1290 = vmatprep.subr.mxu0 0.0
  %1291 = vmatpush1.msra.mxu0 0.0
  %1292 = vmatprep.subr.mxu0 0.0
  %1293 = vmatpush1.msra.mxu0 0.0
  %1294 = vmatprep.subr.mxu0 0.0
  %1295 = vmatpush1.msra.mxu0 0.0
  %1296 = vmatprep.subr.mxu0 0.0
  %1297 = vmatpush1.msra.mxu0 0.0
  %1298 = vmatprep.subr.mxu0 0.0
  %1299 = vmatpush1.msra.mxu0 0.0
  %1300 = vmatprep.subr.mxu0 0.0
  %1301 = vmatpush1.msra.mxu0 0.0
  %1302 = vmatprep.subr.mxu0 0.0
  %1303 = vmatpush1.msra.mxu0 0.0
  %1304 = vmatprep.subr.mxu0 0.0
  %1305 = vmatpush1.msra.mxu0 0.0
  %1306 = vmatprep.subr.mxu0 0.0
  %1307 = vmatpush1.msra.mxu0 0.0
  %1308 = vmatprep.subr.mxu0 0.0
  %1309 = vmatpush1.msra.mxu0 0.0
  %1310 = vmatprep.subr.mxu0 0.0
  %1311 = vmatpush1.msra.mxu0 0.0
  %1312 = vmatprep.subr.mxu0 0.0
  %1313 = vmatpush1.msra.mxu0 0.0
  %1314 = vmatprep.subr.mxu0 0.0
  %1315 = vmatpush1.msra.mxu0 0.0
  %1316 = vmatprep.subr.mxu0 0.0
  %1317 = vmatpush1.msra.mxu0 0.0
  %1318 = vmatprep.subr.mxu0 0.0
  %1319 = vmatpush1.msra.mxu0 0.0
  %1320 = vmatprep.subr.mxu0 0.0
  %1321 = vmatpush1.msra.mxu0 0.0
  %1322 = vmatprep.subr.mxu0 0.0
  %1323 = vmatpush1.msra.mxu0 0.0
  %1324 = vmatprep.subr.mxu0 0.0
  %1325 = vmatpush1.msra.mxu0 0.0
  %1326 = vmatprep.subr.mxu0 0.0
  %1327 = vmatpush1.msra.mxu0 0.0
  %1328 = vmatprep.subr.mxu0 0.0
  %1329 = vmatpush1.msra.mxu0 0.0
  %1330 = vmatprep.subr.mxu0 0.0
  %1331 = vmatpush1.msra.mxu0 0.0
  %1332 = vmatprep.subr.mxu0 0.0
  %1333 = vmatpush1.msra.mxu0 0.0
  %1334 = vmatprep.subr.mxu0 0.0
  %1335 = vmatpush1.msra.mxu0 0.0
  %1336 = vmatprep.subr.mxu0 0.0
  %1337 = vmatpush1.msra.mxu0 0.0
  %1338 = vmatprep.subr.mxu0 0.0
  %1339 = vmatpush1.msra.mxu0 0.0
  %1340 = vmatprep.mubr.f32.mxu0 0.0
  %v1341 = vand.u32 %v971, 4294901760
  %1342 = vmatmul.mubr.f32.gmra.mrb[0].mxu0 %v1341
  %v1343 = vpop.f32.mrb[0].mxu0
  %v1344 = vadd.f32 %v1270, %v1343
  %v1345 = vpop.f32.mrb[0].mxu0
  %1346 = vdwg.mxu0
  %1347 = vmatprep.subr.mxu0 0.0
  %v1348 = vand.u32 %v64, 4294901760
  %1349 = vmatpush1.msra.mxu0 %v1348
  %1350 = vmatprep.subr.mxu0 0.0
  %1351 = vmatpush1.msra.mxu0 0.0
  %1352 = vmatprep.subr.mxu0 0.0
  %1353 = vmatpush1.msra.mxu0 0.0
  %1354 = vmatprep.subr.mxu0 0.0
  %1355 = vmatpush1.msra.mxu0 0.0
  %1356 = vmatprep.subr.mxu0 0.0
  %1357 = vmatpush1.msra.mxu0 0.0
  %1358 = vmatprep.subr.mxu0 0.0
  %1359 = vmatpush1.msra.mxu0 0.0
  %1360 = vmatprep.subr.mxu0 0.0
  %1361 = vmatpush1.msra.mxu0 0.0
  %1362 = vmatprep.subr.mxu0 0.0
  %1363 = vmatpush1.msra.mxu0 0.0
  %1364 = vmatprep.subr.mxu0 0.0
  %1365 = vmatpush1.msra.mxu0 0.0
  %1366 = vmatprep.subr.mxu0 0.0
  %1367 = vmatpush1.msra.mxu0 0.0
  %1368 = vmatprep.subr.mxu0 0.0
  %1369 = vmatpush1.msra.mxu0 0.0
  %1370 = vmatprep.subr.mxu0 0.0
  %1371 = vmatpush1.msra.mxu0 0.0
  %1372 = vmatprep.subr.mxu0 0.0
  %1373 = vmatpush1.msra.mxu0 0.0
  %1374 = vmatprep.subr.mxu0 0.0
  %1375 = vmatpush1.msra.mxu0 0.0
  %1376 = vmatprep.subr.mxu0 0.0
  %1377 = vmatpush1.msra.mxu0 0.0
  %1378 = vmatprep.subr.mxu0 0.0
  %1379 = vmatpush1.msra.mxu0 0.0
  %1380 = vmatprep.subr.mxu0 0.0
  %1381 = vmatpush1.msra.mxu0 0.0
  %1382 = vmatprep.subr.mxu0 0.0
  %1383 = vmatpush1.msra.mxu0 0.0
  %1384 = vmatprep.subr.mxu0 0.0
  %1385 = vmatpush1.msra.mxu0 0.0
  %1386 = vmatprep.subr.mxu0 0.0
  %1387 = vmatpush1.msra.mxu0 0.0
  %1388 = vmatprep.subr.mxu0 0.0
  %1389 = vmatpush1.msra.mxu0 0.0
  %1390 = vmatprep.subr.mxu0 0.0
  %1391 = vmatpush1.msra.mxu0 0.0
  %1392 = vmatprep.subr.mxu0 0.0
  %1393 = vmatpush1.msra.mxu0 0.0
  %1394 = vmatprep.subr.mxu0 0.0
  %1395 = vmatpush1.msra.mxu0 0.0
  %1396 = vmatprep.subr.mxu0 0.0
  %1397 = vmatpush1.msra.mxu0 0.0
  %1398 = vmatprep.subr.mxu0 0.0
  %1399 = vmatpush1.msra.mxu0 0.0
  %1400 = vmatprep.subr.mxu0 0.0
  %1401 = vmatpush1.msra.mxu0 0.0
  %1402 = vmatprep.subr.mxu0 0.0
  %1403 = vmatpush1.msra.mxu0 0.0
  %1404 = vmatprep.subr.mxu0 0.0
  %1405 = vmatpush1.msra.mxu0 0.0
  %1406 = vmatprep.subr.mxu0 0.0
  %1407 = vmatpush1.msra.mxu0 0.0
  %1408 = vmatprep.subr.mxu0 0.0
  %1409 = vmatpush1.msra.mxu0 0.0
  %1410 = vmatprep.subr.mxu0 0.0
  %1411 = vmatpush1.msra.mxu0 0.0
  %1412 = vmatprep.mubr.f32.mxu0 0.0
  %v1413 = vand.u32 %v971, 4294901760
  %1414 = vmatmul.mubr.f32.gmra.mrb[0].mxu0 %v1413
  %v1415 = vpop.f32.mrb[0].mxu0
  %v1416 = vadd.f32 %v1344, %v1415
  %v1417 = vpop.f32.mrb[0].mxu0
  %1418 = vdwg.mxu0
  %v1419 = vmax.f32 %v1416, 0.0
  %v1421 = vsel %vm59, %v46, 0
  %v1424 = vsel %vm52, %v1419, 0
  %1426 = vmatprep.subr.mxu0 0.0
  %v1427 = vand.u32 %v1424, 4294901760
  %1428 = vmatpush1.msra.mxu0 %v1427
  %1429 = vmatprep.subr.mxu0 0.0
  %1430 = vmatpush1.msra.mxu0 0.0
  %1431 = vmatprep.subr.mxu0 0.0
  %1432 = vmatpush1.msra.mxu0 0.0
  %1433 = vmatprep.subr.mxu0 0.0
  %1434 = vmatpush1.msra.mxu0 0.0
  %1435 = vmatprep.subr.mxu0 0.0
  %1436 = vmatpush1.msra.mxu0 0.0
  %1437 = vmatprep.subr.mxu0 0.0
  %1438 = vmatpush1.msra.mxu0 0.0
  %1439 = vmatprep.subr.mxu0 0.0
  %1440 = vmatpush1.msra.mxu0 0.0
  %1441 = vmatprep.subr.mxu0 0.0
  %1442 = vmatpush1.msra.mxu0 0.0
  %1443 = vmatprep.subr.mxu0 0.0
  %1444 = vmatpush1.msra.mxu0 0.0
  %1445 = vmatprep.subr.mxu0 0.0
  %1446 = vmatpush1.msra.mxu0 0.0
  %1447 = vmatprep.subr.mxu0 0.0
  %1448 = vmatpush1.msra.mxu0 0.0
  %1449 = vmatprep.subr.mxu0 0.0
  %1450 = vmatpush1.msra.mxu0 0.0
  %1451 = vmatprep.subr.mxu0 0.0
  %1452 = vmatpush1.msra.mxu0 0.0
  %1453 = vmatprep.subr.mxu0 0.0
  %1454 = vmatpush1.msra.mxu0 0.0
  %1455 = vmatprep.subr.mxu0 0.0
  %1456 = vmatpush1.msra.mxu0 0.0
  %1457 = vmatprep.subr.mxu0 0.0
  %1458 = vmatpush1.msra.mxu0 0.0
  %1459 = vmatprep.subr.mxu0 0.0
  %1460 = vmatpush1.msra.mxu0 0.0
  %1461 = vmatprep.subr.mxu0 0.0
  %1462 = vmatpush1.msra.mxu0 0.0
  %1463 = vmatprep.subr.mxu0 0.0
  %1464 = vmatpush1.msra.mxu0 0.0
  %1465 = vmatprep.subr.mxu0 0.0
  %1466 = vmatpush1.msra.mxu0 0.0
  %1467 = vmatprep.subr.mxu0 0.0
  %1468 = vmatpush1.msra.mxu0 0.0
  %1469 = vmatprep.subr.mxu0 0.0
  %1470 = vmatpush1.msra.mxu0 0.0
  %1471 = vmatprep.subr.mxu0 0.0
  %1472 = vmatpush1.msra.mxu0 0.0
  %1473 = vmatprep.subr.mxu0 0.0
  %1474 = vmatpush1.msra.mxu0 0.0
  %1475 = vmatprep.subr.mxu0 0.0
  %1476 = vmatpush1.msra.mxu0 0.0
  %1477 = vmatprep.subr.mxu0 0.0
  %1478 = vmatpush1.msra.mxu0 0.0
  %1479 = vmatprep.subr.mxu0 0.0
  %1480 = vmatpush1.msra.mxu0 0.0
  %1481 = vmatprep.subr.mxu0 0.0
  %1482 = vmatpush1.msra.mxu0 0.0
  %1483 = vmatprep.subr.mxu0 0.0
  %1484 = vmatpush1.msra.mxu0 0.0
  %1485 = vmatprep.subr.mxu0 0.0
  %1486 = vmatpush1.msra.mxu0 0.0
  %1487 = vmatprep.subr.mxu0 0.0
  %1488 = vmatpush1.msra.mxu0 0.0
  %1489 = vmatprep.subr.mxu0 0.0
  %1490 = vmatpush1.msra.mxu0 0.0
  %1491 = vmatprep.mubr.f32.mxu0 0.0
  %v1492 = vand.u32 %v1421, 4294901760
  %v1493 = vsub.f32 %v1421, %v1492
  %v1494 = vand.u32 %v1493, 4294901760
  %v1495 = vsub.f32 %v1493, %v1494
  %v1496 = vand.u32 %v1495, 4294901760
  %1497 = vmatmul.mubr.f32.gmra.mrb[0].mxu0 %v1496
  %v1498 = vpop.f32.mrb[0].mxu0
  %v1499 = vadd.f32 %v47, %v1498
  %v1500 = vpop.f32.mrb[0].mxu0
  %1501 = vdwg.mxu0
  %1502 = vmatprep.subr.mxu0 0.0
  %v1503 = vand.u32 %v1424, 4294901760
  %v1504 = vsub.f32 %v1424, %v1503
  %v1505 = vand.u32 %v1504, 4294901760
  %v1506 = vsub.f32 %v1504, %v1505
  %v1507 = vand.u32 %v1506, 4294901760
  %1508 = vmatpush1.msra.mxu0 %v1507
  %1509 = vmatprep.subr.mxu0 0.0
  %1510 = vmatpush1.msra.mxu0 0.0
  %1511 = vmatprep.subr.mxu0 0.0
  %1512 = vmatpush1.msra.mxu0 0.0
  %1513 = vmatprep.subr.mxu0 0.0
  %1514 = vmatpush1.msra.mxu0 0.0
  %1515 = vmatprep.subr.mxu0 0.0
  %1516 = vmatpush1.msra.mxu0 0.0
  %1517 = vmatprep.subr.mxu0 0.0
  %1518 = vmatpush1.msra.mxu0 0.0
  %1519 = vmatprep.subr.mxu0 0.0
  %1520 = vmatpush1.msra.mxu0 0.0
  %1521 = vmatprep.subr.mxu0 0.0
  %1522 = vmatpush1.msra.mxu0 0.0
  %1523 = vmatprep.subr.mxu0 0.0
  %1524 = vmatpush1.msra.mxu0 0.0
  %1525 = vmatprep.subr.mxu0 0.0
  %1526 = vmatpush1.msra.mxu0 0.0
  %1527 = vmatprep.subr.mxu0 0.0
  %1528 = vmatpush1.msra.mxu0 0.0
  %1529 = vmatprep.subr.mxu0 0.0
  %1530 = vmatpush1.msra.mxu0 0.0
  %1531 = vmatprep.subr.mxu0 0.0
  %1532 = vmatpush1.msra.mxu0 0.0
  %1533 = vmatprep.subr.mxu0 0.0
  %1534 = vmatpush1.msra.mxu0 0.0
  %1535 = vmatprep.subr.mxu0 0.0
  %1536 = vmatpush1.msra.mxu0 0.0
  %1537 = vmatprep.subr.mxu0 0.0
  %1538 = vmatpush1.msra.mxu0 0.0
  %1539 = vmatprep.subr.mxu0 0.0
  %1540 = vmatpush1.msra.mxu0 0.0
  %1541 = vmatprep.subr.mxu0 0.0
  %1542 = vmatpush1.msra.mxu0 0.0
  %1543 = vmatprep.subr.mxu0 0.0
  %1544 = vmatpush1.msra.mxu0 0.0
  %1545 = vmatprep.subr.mxu0 0.0
  %1546 = vmatpush1.msra.mxu0 0.0
  %1547 = vmatprep.subr.mxu0 0.0
  %1548 = vmatpush1.msra.mxu0 0.0
  %1549 = vmatprep.subr.mxu0 0.0
  %1550 = vmatpush1.msra.mxu0 0.0
  %1551 = vmatprep.subr.mxu0 0.0
  %1552 = vmatpush1.msra.mxu0 0.0
  %1553 = vmatprep.subr.mxu0 0.0
  %1554 = vmatpush1.msra.mxu0 0.0
  %1555 = vmatprep.subr.mxu0 0.0
  %1556 = vmatpush1.msra.mxu0 0.0
  %1557 = vmatprep.subr.mxu0 0.0
  %1558 = vmatpush1.msra.mxu0 0.0
  %1559 = vmatprep.subr.mxu0 0.0
  %1560 = vmatpush1.msra.mxu0 0.0
  %1561 = vmatprep.subr.mxu0 0.0
  %1562 = vmatpush1.msra.mxu0 0.0
  %1563 = vmatprep.subr.mxu0 0.0
  %1564 = vmatpush1.msra.mxu0 0.0
  %1565 = vmatprep.subr.mxu0 0.0
  %1566 = vmatpush1.msra.mxu0 0.0
  %1567 = vmatprep.subr.mxu0 0.0
  %1568 = vmatpush1.msra.mxu0 0.0
  %1569 = vmatprep.subr.mxu0 0.0
  %1570 = vmatpush1.msra.mxu0 0.0
  %1571 = vmatprep.mubr.f32.mxu0 0.0
  %v1572 = vand.u32 %v1421, 4294901760
  %1573 = vmatmul.mubr.f32.gmra.mrb[0].mxu0 %v1572
  %v1574 = vpop.f32.mrb[0].mxu0
  %v1575 = vadd.f32 %v1499, %v1574
  %v1576 = vpop.f32.mrb[0].mxu0
  %1577 = vdwg.mxu0
  %1578 = vmatprep.subr.mxu0 0.0
  %v1579 = vand.u32 %v1424, 4294901760
  %v1580 = vsub.f32 %v1424, %v1579
  %1581 = vmatpush1.msra.mxu0 %v1580
  %1582 = vmatprep.subr.mxu0 0.0
  %1583 = vmatpush1.msra.mxu0 0.0
  %1584 = vmatprep.subr.mxu0 0.0
  %1585 = vmatpush1.msra.mxu0 0.0
  %1586 = vmatprep.subr.mxu0 0.0
  %1587 = vmatpush1.msra.mxu0 0.0
  %1588 = vmatprep.subr.mxu0 0.0
  %1589 = vmatpush1.msra.mxu0 0.0
  %1590 = vmatprep.subr.mxu0 0.0
  %1591 = vmatpush1.msra.mxu0 0.0
  %1592 = vmatprep.subr.mxu0 0.0
  %1593 = vmatpush1.msra.mxu0 0.0
  %1594 = vmatprep.subr.mxu0 0.0
  %1595 = vmatpush1.msra.mxu0 0.0
  %1596 = vmatprep.subr.mxu0 0.0
  %1597 = vmatpush1.msra.mxu0 0.0
  %1598 = vmatprep.subr.mxu0 0.0
  %1599 = vmatpush1.msra.mxu0 0.0
  %1600 = vmatprep.subr.mxu0 0.0
  %1601 = vmatpush1.msra.mxu0 0.0
  %1602 = vmatprep.subr.mxu0 0.0
  %1603 = vmatpush1.msra.mxu0 0.0
  %1604 = vmatprep.subr.mxu0 0.0
  %1605 = vmatpush1.msra.mxu0 0.0
  %1606 = vmatprep.subr.mxu0 0.0
  %1607 = vmatpush1.msra.mxu0 0.0
  %1608 = vmatprep.subr.mxu0 0.0
  %1609 = vmatpush1.msra.mxu0 0.0
  %1610 = vmatprep.subr.mxu0 0.0
  %1611 = vmatpush1.msra.mxu0 0.0
  %1612 = vmatprep.subr.mxu0 0.0
  %1613 = vmatpush1.msra.mxu0 0.0
  %1614 = vmatprep.subr.mxu0 0.0
  %1615 = vmatpush1.msra.mxu0 0.0
  %1616 = vmatprep.subr.mxu0 0.0
  %1617 = vmatpush1.msra.mxu0 0.0
  %1618 = vmatprep.subr.mxu0 0.0
  %1619 = vmatpush1.msra.mxu0 0.0
  %1620 = vmatprep.subr.mxu0 0.0
  %1621 = vmatpush1.msra.mxu0 0.0
  %1622 = vmatprep.subr.mxu0 0.0
  %1623 = vmatpush1.msra.mxu0 0.0
  %1624 = vmatprep.subr.mxu0 0.0
  %1625 = vmatpush1.msra.mxu0 0.0
  %1626 = vmatprep.subr.mxu0 0.0
  %1627 = vmatpush1.msra.mxu0 0.0
  %1628 = vmatprep.subr.mxu0 0.0
  %1629 = vmatpush1.msra.mxu0 0.0
  %1630 = vmatprep.subr.mxu0 0.0
  %1631 = vmatpush1.msra.mxu0 0.0
  %1632 = vmatprep.subr.mxu0 0.0
  %1633 = vmatpush1.msra.mxu0 0.0
  %1634 = vmatprep.subr.mxu0 0.0
  %1635 = vmatpush1.msra.mxu0 0.0
  %1636 = vmatprep.subr.mxu0 0.0
  %1637 = vmatpush1.msra.mxu0 0.0
  %1638 = vmatprep.subr.mxu0 0.0
  %1639 = vmatpush1.msra.mxu0 0.0
  %1640 = vmatprep.subr.mxu0 0.0
  %1641 = vmatpush1.msra.mxu0 0.0
  %1642 = vmatprep.subr.mxu0 0.0
  %1643 = vmatpush1.msra.mxu0 0.0
  %1644 = vmatprep.mubr.f32.mxu0 0.0
  %v1645 = vand.u32 %v1421, 4294901760
  %v1646 = vsub.f32 %v1421, %v1645
  %1647 = vmatmul.mubr.f32.gmra.mrb[0].mxu0 %v1646
  %v1648 = vpop.f32.mrb[0].mxu0
  %v1649 = vadd.f32 %v1575, %v1648
  %v1650 = vpop.f32.mrb[0].mxu0
  %1651 = vdwg.mxu0
  %1652 = vmatprep.subr.mxu0 0.0
  %v1653 = vand.u32 %v1424, 4294901760
  %1654 = vmatpush1.msra.mxu0 %v1653
  %1655 = vmatprep.subr.mxu0 0.0
  %1656 = vmatpush1.msra.mxu0 0.0
  %1657 = vmatprep.subr.mxu0 0.0
  %1658 = vmatpush1.msra.mxu0 0.0
  %1659 = vmatprep.subr.mxu0 0.0
  %1660 = vmatpush1.msra.mxu0 0.0
  %1661 = vmatprep.subr.mxu0 0.0
  %1662 = vmatpush1.msra.mxu0 0.0
  %1663 = vmatprep.subr.mxu0 0.0
  %1664 = vmatpush1.msra.mxu0 0.0
  %1665 = vmatprep.subr.mxu0 0.0
  %1666 = vmatpush1.msra.mxu0 0.0
  %1667 = vmatprep.subr.mxu0 0.0
  %1668 = vmatpush1.msra.mxu0 0.0
  %1669 = vmatprep.subr.mxu0 0.0
  %1670 = vmatpush1.msra.mxu0 0.0
  %1671 = vmatprep.subr.mxu0 0.0
  %1672 = vmatpush1.msra.mxu0 0.0
  %1673 = vmatprep.subr.mxu0 0.0
  %1674 = vmatpush1.msra.mxu0 0.0
  %1675 = vmatprep.subr.mxu0 0.0
  %1676 = vmatpush1.msra.mxu0 0.0
  %1677 = vmatprep.subr.mxu0 0.0
  %1678 = vmatpush1.msra.mxu0 0.0
  %1679 = vmatprep.subr.mxu0 0.0
  %1680 = vmatpush1.msra.mxu0 0.0
  %1681 = vmatprep.subr.mxu0 0.0
  %1682 = vmatpush1.msra.mxu0 0.0
  %1683 = vmatprep.subr.mxu0 0.0
  %1684 = vmatpush1.msra.mxu0 0.0
  %1685 = vmatprep.subr.mxu0 0.0
  %1686 = vmatpush1.msra.mxu0 0.0
  %1687 = vmatprep.subr.mxu0 0.0
  %1688 = vmatpush1.msra.mxu0 0.0
  %1689 = vmatprep.subr.mxu0 0.0
  %1690 = vmatpush1.msra.mxu0 0.0
  %1691 = vmatprep.subr.mxu0 0.0
  %1692 = vmatpush1.msra.mxu0 0.0
  %1693 = vmatprep.subr.mxu0 0.0
  %1694 = vmatpush1.msra.mxu0 0.0
  %1695 = vmatprep.subr.mxu0 0.0
  %1696 = vmatpush1.msra.mxu0 0.0
  %1697 = vmatprep.subr.mxu0 0.0
  %1698 = vmatpush1.msra.mxu0 0.0
  %1699 = vmatprep.subr.mxu0 0.0
  %1700 = vmatpush1.msra.mxu0 0.0
  %1701 = vmatprep.subr.mxu0 0.0
  %1702 = vmatpush1.msra.mxu0 0.0
  %1703 = vmatprep.subr.mxu0 0.0
  %1704 = vmatpush1.msra.mxu0 0.0
  %1705 = vmatprep.subr.mxu0 0.0
  %1706 = vmatpush1.msra.mxu0 0.0
  %1707 = vmatprep.subr.mxu0 0.0
  %1708 = vmatpush1.msra.mxu0 0.0
  %1709 = vmatprep.subr.mxu0 0.0
  %1710 = vmatpush1.msra.mxu0 0.0
  %1711 = vmatprep.subr.mxu0 0.0
  %1712 = vmatpush1.msra.mxu0 0.0
  %1713 = vmatprep.subr.mxu0 0.0
  %1714 = vmatpush1.msra.mxu0 0.0
  %1715 = vmatprep.subr.mxu0 0.0
  %1716 = vmatpush1.msra.mxu0 0.0
  %1717 = vmatprep.mubr.f32.mxu0 0.0
  %v1718 = vand.u32 %v1421, 4294901760
  %v1719 = vsub.f32 %v1421, %v1718
  %v1720 = vand.u32 %v1719, 4294901760
  %1721 = vmatmul.mubr.f32.gmra.mrb[0].mxu0 %v1720
  %v1722 = vpop.f32.mrb[0].mxu0
  %v1723 = vadd.f32 %v1649, %v1722
  %v1724 = vpop.f32.mrb[0].mxu0
  %1725 = vdwg.mxu0
  %1726 = vmatprep.subr.mxu0 0.0
  %v1727 = vand.u32 %v1424, 4294901760
  %v1728 = vsub.f32 %v1424, %v1727
  %v1729 = vand.u32 %v1728, 4294901760
  %1730 = vmatpush1.msra.mxu0 %v1729
  %1731 = vmatprep.subr.mxu0 0.0
  %1732 = vmatpush1.msra.mxu0 0.0
  %1733 = vmatprep.subr.mxu0 0.0
  %1734 = vmatpush1.msra.mxu0 0.0
  %1735 = vmatprep.subr.mxu0 0.0
  %1736 = vmatpush1.msra.mxu0 0.0
  %1737 = vmatprep.subr.mxu0 0.0
  %1738 = vmatpush1.msra.mxu0 0.0
  %1739 = vmatprep.subr.mxu0 0.0
  %1740 = vmatpush1.msra.mxu0 0.0
  %1741 = vmatprep.subr.mxu0 0.0
  %1742 = vmatpush1.msra.mxu0 0.0
  %1743 = vmatprep.subr.mxu0 0.0
  %1744 = vmatpush1.msra.mxu0 0.0
  %1745 = vmatprep.subr.mxu0 0.0
  %1746 = vmatpush1.msra.mxu0 0.0
  %1747 = vmatprep.subr.mxu0 0.0
  %1748 = vmatpush1.msra.mxu0 0.0
  %1749 = vmatprep.subr.mxu0 0.0
  %1750 = vmatpush1.msra.mxu0 0.0
  %1751 = vmatprep.subr.mxu0 0.0
  %1752 = vmatpush1.msra.mxu0 0.0
  %1753 = vmatprep.subr.mxu0 0.0
  %1754 = vmatpush1.msra.mxu0 0.0
  %1755 = vmatprep.subr.mxu0 0.0
  %1756 = vmatpush1.msra.mxu0 0.0
  %1757 = vmatprep.subr.mxu0 0.0
  %1758 = vmatpush1.msra.mxu0 0.0
  %1759 = vmatprep.subr.mxu0 0.0
  %1760 = vmatpush1.msra.mxu0 0.0
  %1761 = vmatprep.subr.mxu0 0.0
  %1762 = vmatpush1.msra.mxu0 0.0
  %1763 = vmatprep.subr.mxu0 0.0
  %1764 = vmatpush1.msra.mxu0 0.0
  %1765 = vmatprep.subr.mxu0 0.0
  %1766 = vmatpush1.msra.mxu0 0.0
  %1767 = vmatprep.subr.mxu0 0.0
  %1768 = vmatpush1.msra.mxu0 0.0
  %1769 = vmatprep.subr.mxu0 0.0
  %1770 = vmatpush1.msra.mxu0 0.0
  %1771 = vmatprep.subr.mxu0 0.0
  %1772 = vmatpush1.msra.mxu0 0.0
  %1773 = vmatprep.subr.mxu0 0.0
  %1774 = vmatpush1.msra.mxu0 0.0
  %1775 = vmatprep.subr.mxu0 0.0
  %1776 = vmatpush1.msra.mxu0 0.0
  %1777 = vmatprep.subr.mxu0 0.0
  %1778 = vmatpush1.msra.mxu0 0.0
  %1779 = vmatprep.subr.mxu0 0.0
  %1780 = vmatpush1.msra.mxu0 0.0
  %1781 = vmatprep.subr.mxu0 0.0
  %1782 = vmatpush1.msra.mxu0 0.0
  %1783 = vmatprep.subr.mxu0 0.0
  %1784 = vmatpush1.msra.mxu0 0.0
  %1785 = vmatprep.subr.mxu0 0.0
  %1786 = vmatpush1.msra.mxu0 0.0
  %1787 = vmatprep.subr.mxu0 0.0
  %1788 = vmatpush1.msra.mxu0 0.0
  %1789 = vmatprep.subr.mxu0 0.0
  %1790 = vmatpush1.msra.mxu0 0.0
  %1791 = vmatprep.subr.mxu0 0.0
  %1792 = vmatpush1.msra.mxu0 0.0
  %1793 = vmatprep.mubr.f32.mxu0 0.0
  %v1794 = vand.u32 %v1421, 4294901760
  %1795 = vmatmul.mubr.f32.gmra.mrb[0].mxu0 %v1794
  %v1796 = vpop.f32.mrb[0].mxu0
  %v1797 = vadd.f32 %v1723, %v1796
  %v1798 = vpop.f32.mrb[0].mxu0
  %1799 = vdwg.mxu0
  %1800 = vmatprep.subr.mxu0 0.0
  %v1801 = vand.u32 %v1424, 4294901760
  %1802 = vmatpush1.msra.mxu0 %v1801
  %1803 = vmatprep.subr.mxu0 0.0
  %1804 = vmatpush1.msra.mxu0 0.0
  %1805 = vmatprep.subr.mxu0 0.0
  %1806 = vmatpush1.msra.mxu0 0.0
  %1807 = vmatprep.subr.mxu0 0.0
  %1808 = vmatpush1.msra.mxu0 0.0
  %1809 = vmatprep.subr.mxu0 0.0
  %1810 = vmatpush1.msra.mxu0 0.0
  %1811 = vmatprep.subr.mxu0 0.0
  %1812 = vmatpush1.msra.mxu0 0.0
  %1813 = vmatprep.subr.mxu0 0.0
  %1814 = vmatpush1.msra.mxu0 0.0
  %1815 = vmatprep.subr.mxu0 0.0
  %1816 = vmatpush1.msra.mxu0 0.0
  %1817 = vmatprep.subr.mxu0 0.0
  %1818 = vmatpush1.msra.mxu0 0.0
  %1819 = vmatprep.subr.mxu0 0.0
  %1820 = vmatpush1.msra.mxu0 0.0
  %1821 = vmatprep.subr.mxu0 0.0
  %1822 = vmatpush1.msra.mxu0 0.0
  %1823 = vmatprep.subr.mxu0 0.0
  %1824 = vmatpush1.msra.mxu0 0.0
  %1825 = vmatprep.subr.mxu0 0.0
  %1826 = vmatpush1.msra.mxu0 0.0
  %1827 = vmatprep.subr.mxu0 0.0
  %1828 = vmatpush1.msra.mxu0 0.0
  %1829 = vmatprep.subr.mxu0 0.0
  %1830 = vmatpush1.msra.mxu0 0.0
  %1831 = vmatprep.subr.mxu0 0.0
  %1832 = vmatpush1.msra.mxu0 0.0
  %1833 = vmatprep.subr.mxu0 0.0
  %1834 = vmatpush1.msra.mxu0 0.0
  %1835 = vmatprep.subr.mxu0 0.0
  %1836 = vmatpush1.msra.mxu0 0.0
  %1837 = vmatprep.subr.mxu0 0.0
  %1838 = vmatpush1.msra.mxu0 0.0
  %1839 = vmatprep.subr.mxu0 0.0
  %1840 = vmatpush1.msra.mxu0 0.0
  %1841 = vmatprep.subr.mxu0 0.0
  %1842 = vmatpush1.msra.mxu0 0.0
  %1843 = vmatprep.subr.mxu0 0.0
  %1844 = vmatpush1.msra.mxu0 0.0
  %1845 = vmatprep.subr.mxu0 0.0
  %1846 = vmatpush1.msra.mxu0 0.0
  %1847 = vmatprep.subr.mxu0 0.0
  %1848 = vmatpush1.msra.mxu0 0.0
  %1849 = vmatprep.subr.mxu0 0.0
  %1850 = vmatpush1.msra.mxu0 0.0
  %1851 = vmatprep.subr.mxu0 0.0
  %1852 = vmatpush1.msra.mxu0 0.0
  %1853 = vmatprep.subr.mxu0 0.0
  %1854 = vmatpush1.msra.mxu0 0.0
  %1855 = vmatprep.subr.mxu0 0.0
  %1856 = vmatpush1.msra.mxu0 0.0
  %1857 = vmatprep.subr.mxu0 0.0
  %1858 = vmatpush1.msra.mxu0 0.0
  %1859 = vmatprep.subr.mxu0 0.0
  %1860 = vmatpush1.msra.mxu0 0.0
  %1861 = vmatprep.subr.mxu0 0.0
  %1862 = vmatpush1.msra.mxu0 0.0
  %1863 = vmatprep.subr.mxu0 0.0
  %1864 = vmatpush1.msra.mxu0 0.0
  %1865 = vmatprep.mubr.f32.mxu0 0.0
  %v1866 = vand.u32 %v1421, 4294901760
  %1867 = vmatmul.mubr.f32.gmra.mrb[0].mxu0 %v1866
  %v1868 = vpop.f32.mrb[0].mxu0
  %v1869 = vadd.f32 %v1797, %v1868
  %v1870 = vpop.f32.mrb[0].mxu0
  %1871 = vdwg.mxu0
  %v1872 = vsub.f32 0.0, %v1869
  %v1873 = vmul.f32 %v1872, 1.442695
  %v1874 = vpow.pop %v1873
  %v1875 = vadd.f32 %v1874, 1.0
  %v1876 = vrcp.pop %v1875
  %1878 = vset.pattern.permute.xlu0 0
  %1879 = vperm.xlu0 %1878, %v969
  %v1880 = vpop.permute.xlu0 %1879
  %v1883 = vcombine.high %v38, %v38
  %v1885 = vmul.f32 %v1880, %v38
  %v1886 = vmul.f32 %v1880, %v1883
  %v1889 = vcombine.low %v1885, %v1886
  %v1891 = vadd.f32 %v48, %v1889
  %1893 = vset.pattern.permute.xlu0 0
  %1894 = vperm.xlu0 %1893, %v1876
  %v1895 = vpop.permute.xlu0 %1894
  %v1898 = vcombine.high %v39, %v39
  %v1900 = vmul.f32 %v1895, %v39
  %v1901 = vmul.f32 %v1895, %v1898
  %v1904 = vcombine.low %v1900, %v1901
  %v1906 = vadd.f32 %v1891, %v1904
  %1907 = vst [vmem:[%s11] sm:$0xff] %v1906
  %s1908 = scalar_lea.vmem %s0, 8
  %v1909 = vld [vmem:[%s1908] sm:$0xff]
  %v1911 = vcombine.high %v1909, %v1909
  %v1913 = vsel %vm52, %v1909, 0.0
  %v1914 = vsel %vm52, %v1911, 0.0
  %v1915 = vadd.f32 %v1913, %v1914
  %1916 = vadd.xlane.f32.xlu0 %v1915
  %v1917 = vpop.xlane.xlu0 %1916
  %v1918 = vmul.f32 %v1917, 0.00390625
  %v1920 = vsel %vm52, %v1918, 0
  %1922 = vmatprep.subr.mxu0 0.0
  %v1923 = vand.u32 %v1920, 4294901760
  %1924 = vmatpush1.msra.mxu0 %v1923
  %1925 = vmatprep.subr.mxu0 0.0
  %1926 = vmatpush1.msra.mxu0 0.0
  %1927 = vmatprep.subr.mxu0 0.0
  %1928 = vmatpush1.msra.mxu0 0.0
  %1929 = vmatprep.subr.mxu0 0.0
  %1930 = vmatpush1.msra.mxu0 0.0
  %1931 = vmatprep.subr.mxu0 0.0
  %1932 = vmatpush1.msra.mxu0 0.0
  %1933 = vmatprep.subr.mxu0 0.0
  %1934 = vmatpush1.msra.mxu0 0.0
  %1935 = vmatprep.subr.mxu0 0.0
  %1936 = vmatpush1.msra.mxu0 0.0
  %1937 = vmatprep.subr.mxu0 0.0
  %1938 = vmatpush1.msra.mxu0 0.0
  %1939 = vmatprep.subr.mxu0 0.0
  %1940 = vmatpush1.msra.mxu0 0.0
  %1941 = vmatprep.subr.mxu0 0.0
  %1942 = vmatpush1.msra.mxu0 0.0
  %1943 = vmatprep.subr.mxu0 0.0
  %1944 = vmatpush1.msra.mxu0 0.0
  %1945 = vmatprep.subr.mxu0 0.0
  %1946 = vmatpush1.msra.mxu0 0.0
  %1947 = vmatprep.subr.mxu0 0.0
  %1948 = vmatpush1.msra.mxu0 0.0
  %1949 = vmatprep.subr.mxu0 0.0
  %1950 = vmatpush1.msra.mxu0 0.0
  %1951 = vmatprep.subr.mxu0 0.0
  %1952 = vmatpush1.msra.mxu0 0.0
  %1953 = vmatprep.subr.mxu0 0.0
  %1954 = vmatpush1.msra.mxu0 0.0
  %1955 = vmatprep.subr.mxu0 0.0
  %1956 = vmatpush1.msra.mxu0 0.0
  %1957 = vmatprep.subr.mxu0 0.0
  %1958 = vmatpush1.msra.mxu0 0.0
  %1959 = vmatprep.subr.mxu0 0.0
  %1960 = vmatpush1.msra.mxu0 0.0
  %1961 = vmatprep.subr.mxu0 0.0
  %1962 = vmatpush1.msra.mxu0 0.0
  %1963 = vmatprep.subr.mxu0 0.0
  %1964 = vmatpush1.msra.mxu0 0.0
  %1965 = vmatprep.subr.mxu0 0.0
  %1966 = vmatpush1.msra.mxu0 0.0
  %1967 = vmatprep.subr.mxu0 0.0
  %1968 = vmatpush1.msra.mxu0 0.0
  %1969 = vmatprep.subr.mxu0 0.0
  %1970 = vmatpush1.msra.mxu0 0.0
  %1971 = vmatprep.subr.mxu0 0.0
  %1972 = vmatpush1.msra.mxu0 0.0
  %1973 = vmatprep.subr.mxu0 0.0
  %1974 = vmatpush1.msra.mxu0 0.0
  %1975 = vmatprep.subr.mxu0 0.0
  %1976 = vmatpush1.msra.mxu0 0.0
  %1977 = vmatprep.subr.mxu0 0.0
  %1978 = vmatpush1.msra.mxu0 0.0
  %1979 = vmatprep.subr.mxu0 0.0
  %1980 = vmatpush1.msra.mxu0 0.0
  %1981 = vmatprep.subr.mxu0 0.0
  %1982 = vmatpush1.msra.mxu0 0.0
  %1983 = vmatprep.subr.mxu0 0.0
  %1984 = vmatpush1.msra.mxu0 0.0
  %1985 = vmatprep.subr.mxu0 0.0
  %1986 = vmatpush1.msra.mxu0 0.0
  %1987 = vmatprep.mubr.f32.mxu0 0.0
  %v1988 = vand.u32 %v61, 4294901760
  %v1989 = vsub.f32 %v61, %v1988
  %v1990 = vand.u32 %v1989, 4294901760
  %v1991 = vsub.f32 %v1989, %v1990
  %v1992 = vand.u32 %v1991, 4294901760
  %1993 = vmatmul.mubr.f32.gmra.mrb[0].mxu0 %v1992
  %v1994 = vpop.f32.mrb[0].mxu0
  %v1995 = vadd.f32 %v41, %v1994
  %v1996 = vpop.f32.mrb[0].mxu0
  %1997 = vdwg.mxu0
  %1998 = vmatprep.subr.mxu0 0.0
  %v1999 = vand.u32 %v1920, 4294901760
  %v2000 = vsub.f32 %v1920, %v1999
  %v2001 = vand.u32 %v2000, 4294901760
  %v2002 = vsub.f32 %v2000, %v2001
  %v2003 = vand.u32 %v2002, 4294901760
  %2004 = vmatpush1.msra.mxu0 %v2003
  %2005 = vmatprep.subr.mxu0 0.0
  %2006 = vmatpush1.msra.mxu0 0.0
  %2007 = vmatprep.subr.mxu0 0.0
  %2008 = vmatpush1.msra.mxu0 0.0
  %2009 = vmatprep.subr.mxu0 0.0
  %2010 = vmatpush1.msra.mxu0 0.0
  %2011 = vmatprep.subr.mxu0 0.0
  %2012 = vmatpush1.msra.mxu0 0.0
  %2013 = vmatprep.subr.mxu0 0.0
  %2014 = vmatpush1.msra.mxu0 0.0
  %2015 = vmatprep.subr.mxu0 0.0
  %2016 = vmatpush1.msra.mxu0 0.0
  %2017 = vmatprep.subr.mxu0 0.0
  %2018 = vmatpush1.msra.mxu0 0.0
  %2019 = vmatprep.subr.mxu0 0.0
  %2020 = vmatpush1.msra.mxu0 0.0
  %2021 = vmatprep.subr.mxu0 0.0
  %2022 = vmatpush1.msra.mxu0 0.0
  %2023 = vmatprep.subr.mxu0 0.0
  %2024 = vmatpush1.msra.mxu0 0.0
  %2025 = vmatprep.subr.mxu0 0.0
  %2026 = vmatpush1.msra.mxu0 0.0
  %2027 = vmatprep.subr.mxu0 0.0
  %2028 = vmatpush1.msra.mxu0 0.0
  %2029 = vmatprep.subr.mxu0 0.0
  %2030 = vmatpush1.msra.mxu0 0.0
  %2031 = vmatprep.subr.mxu0 0.0
  %2032 = vmatpush1.msra.mxu0 0.0
  %2033 = vmatprep.subr.mxu0 0.0
  %2034 = vmatpush1.msra.mxu0 0.0
  %2035 = vmatprep.subr.mxu0 0.0
  %2036 = vmatpush1.msra.mxu0 0.0
  %2037 = vmatprep.subr.mxu0 0.0
  %2038 = vmatpush1.msra.mxu0 0.0
  %2039 = vmatprep.subr.mxu0 0.0
  %2040 = vmatpush1.msra.mxu0 0.0
  %2041 = vmatprep.subr.mxu0 0.0
  %2042 = vmatpush1.msra.mxu0 0.0
  %2043 = vmatprep.subr.mxu0 0.0
  %2044 = vmatpush1.msra.mxu0 0.0
  %2045 = vmatprep.subr.mxu0 0.0
  %2046 = vmatpush1.msra.mxu0 0.0
  %2047 = vmatprep.subr.mxu0 0.0
  %2048 = vmatpush1.msra.mxu0 0.0
  %2049 = vmatprep.subr.mxu0 0.0
  %2050 = vmatpush1.msra.mxu0 0.0
  %2051 = vmatprep.subr.mxu0 0.0
  %2052 = vmatpush1.msra.mxu0 0.0
  %2053 = vmatprep.subr.mxu0 0.0
  %2054 = vmatpush1.msra.mxu0 0.0
  %2055 = vmatprep.subr.mxu0 0.0
  %2056 = vmatpush1.msra.mxu0 0.0
  %2057 = vmatprep.subr.mxu0 0.0
  %2058 = vmatpush1.msra.mxu0 0.0
  %2059 = vmatprep.subr.mxu0 0.0
  %2060 = vmatpush1.msra.mxu0 0.0
  %2061 = vmatprep.subr.mxu0 0.0
  %2062 = vmatpush1.msra.mxu0 0.0
  %2063 = vmatprep.subr.mxu0 0.0
  %2064 = vmatpush1.msra.mxu0 0.0
  %2065 = vmatprep.subr.mxu0 0.0
  %2066 = vmatpush1.msra.mxu0 0.0
  %2067 = vmatprep.mubr.f32.mxu0 0.0
  %v2068 = vand.u32 %v61, 4294901760
  %2069 = vmatmul.mubr.f32.gmra.mrb[0].mxu0 %v2068
  %v2070 = vpop.f32.mrb[0].mxu0
  %v2071 = vadd.f32 %v1995, %v2070
  %v2072 = vpop.f32.mrb[0].mxu0
  %2073 = vdwg.mxu0
  %2074 = vmatprep.subr.mxu0 0.0
  %v2075 = vand.u32 %v1920, 4294901760
  %v2076 = vsub.f32 %v1920, %v2075
  %2077 = vmatpush1.msra.mxu0 %v2076
  %2078 = vmatprep.subr.mxu0 0.0
  %2079 = vmatpush1.msra.mxu0 0.0
  %2080 = vmatprep.subr.mxu0 0.0
  %2081 = vmatpush1.msra.mxu0 0.0
  %2082 = vmatprep.subr.mxu0 0.0
  %2083 = vmatpush1.msra.mxu0 0.0
  %2084 = vmatprep.subr.mxu0 0.0
  %2085 = vmatpush1.msra.mxu0 0.0
  %2086 = vmatprep.subr.mxu0 0.0
  %2087 = vmatpush1.msra.mxu0 0.0
  %2088 = vmatprep.subr.mxu0 0.0
  %2089 = vmatpush1.msra.mxu0 0.0
  %2090 = vmatprep.subr.mxu0 0.0
  %2091 = vmatpush1.msra.mxu0 0.0
  %2092 = vmatprep.subr.mxu0 0.0
  %2093 = vmatpush1.msra.mxu0 0.0
  %2094 = vmatprep.subr.mxu0 0.0
  %2095 = vmatpush1.msra.mxu0 0.0
  %2096 = vmatprep.subr.mxu0 0.0
  %2097 = vmatpush1.msra.mxu0 0.0
  %2098 = vmatprep.subr.mxu0 0.0
  %2099 = vmatpush1.msra.mxu0 0.0
  %2100 = vmatprep.subr.mxu0 0.0
  %2101 = vmatpush1.msra.mxu0 0.0
  %2102 = vmatprep.subr.mxu0 0.0
  %2103 = vmatpush1.msra.mxu0 0.0
  %2104 = vmatprep.subr.mxu0 0.0
  %2105 = vmatpush1.msra.mxu0 0.0
  %2106 = vmatprep.subr.mxu0 0.0
  %2107 = vmatpush1.msra.mxu0 0.0
  %2108 = vmatprep.subr.mxu0 0.0
  %2109 = vmatpush1.msra.mxu0 0.0
  %2110 = vmatprep.subr.mxu0 0.0
  %2111 = vmatpush1.msra.mxu0 0.0
  %2112 = vmatprep.subr.mxu0 0.0
  %2113 = vmatpush1.msra.mxu0 0.0
  %2114 = vmatprep.subr.mxu0 0.0
  %2115 = vmatpush1.msra.mxu0 0.0
  %2116 = vmatprep.subr.mxu0 0.0
  %2117 = vmatpush1.msra.mxu0 0.0
  %2118 = vmatprep.subr.mxu0 0.0
  %2119 = vmatpush1.msra.mxu0 0.0
  %2120 = vmatprep.subr.mxu0 0.0
  %2121 = vmatpush1.msra.mxu0 0.0
  %2122 = vmatprep.subr.mxu0 0.0
  %2123 = vmatpush1.msra.mxu0 0.0
  %2124 = vmatprep.subr.mxu0 0.0
  %2125 = vmatpush1.msra.mxu0 0.0
  %2126 = vmatprep.subr.mxu0 0.0
  %2127 = vmatpush1.msra.mxu0 0.0
  %2128 = vmatprep.subr.mxu0 0.0
  %2129 = vmatpush1.msra.mxu0 0.0
  %2130 = vmatprep.subr.mxu0 0.0
  %2131 = vmatpush1.msra.mxu0 0.0
  %2132 = vmatprep.subr.mxu0 0.0
  %2133 = vmatpush1.msra.mxu0 0.0
  %2134 = vmatprep.subr.mxu0 0.0
  %2135 = vmatpush1.msra.mxu0 0.0
  %2136 = vmatprep.subr.mxu0 0.0
  %2137 = vmatpush1.msra.mxu0 0.0
  %2138 = vmatprep.subr.mxu0 0.0
  %2139 = vmatpush1.msra.mxu0 0.0
  %2140 = vmatprep.mubr.f32.mxu0 0.0
  %v2141 = vand.u32 %v61, 4294901760
  %v2142 = vsub.f32 %v61, %v2141
  %2143 = vmatmul.mubr.f32.gmra.mrb[0].mxu0 %v2142
  %v2144 = vpop.f32.mrb[0].mxu0
  %v2145 = vadd.f32 %v2071, %v2144
  %v2146 = vpop.f32.mrb[0].mxu0
  %2147 = vdwg.mxu0
  %2148 = vmatprep.subr.mxu0 0.0
  %v2149 = vand.u32 %v1920, 4294901760
  %2150 = vmatpush1.msra.mxu0 %v2149
  %2151 = vmatprep.subr.mxu0 0.0
  %2152 = vmatpush1.msra.mxu0 0.0
  %2153 = vmatprep.subr.mxu0 0.0
  %2154 = vmatpush1.msra.mxu0 0.0
  %2155 = vmatprep.subr.mxu0 0.0
  %2156 = vmatpush1.msra.mxu0 0.0
  %2157 = vmatprep.subr.mxu0 0.0
  %2158 = vmatpush1.msra.mxu0 0.0
  %2159 = vmatprep.subr.mxu0 0.0
  %2160 = vmatpush1.msra.mxu0 0.0
  %2161 = vmatprep.subr.mxu0 0.0
  %2162 = vmatpush1.msra.mxu0 0.0
  %2163 = vmatprep.subr.mxu0 0.0
  %2164 = vmatpush1.msra.mxu0 0.0
  %2165 = vmatprep.subr.mxu0 0.0
  %2166 = vmatpush1.msra.mxu0 0.0
  %2167 = vmatprep.subr.mxu0 0.0
  %2168 = vmatpush1.msra.mxu0 0.0
  %2169 = vmatprep.subr.mxu0 0.0
  %2170 = vmatpush1.msra.mxu0 0.0
  %2171 = vmatprep.subr.mxu0 0.0
  %2172 = vmatpush1.msra.mxu0 0.0
  %2173 = vmatprep.subr.mxu0 0.0
  %2174 = vmatpush1.msra.mxu0 0.0
  %2175 = vmatprep.subr.mxu0 0.0
  %2176 = vmatpush1.msra.mxu0 0.0
  %2177 = vmatprep.subr.mxu0 0.0
  %2178 = vmatpush1.msra.mxu0 0.0
  %2179 = vmatprep.subr.mxu0 0.0
  %2180 = vmatpush1.msra.mxu0 0.0
  %2181 = vmatprep.subr.mxu0 0.0
  %2182 = vmatpush1.msra.mxu0 0.0
  %2183 = vmatprep.subr.mxu0 0.0
  %2184 = vmatpush1.msra.mxu0 0.0
  %2185 = vmatprep.subr.mxu0 0.0
  %2186 = vmatpush1.msra.mxu0 0.0
  %2187 = vmatprep.subr.mxu0 0.0
  %2188 = vmatpush1.msra.mxu0 0.0
  %2189 = vmatprep.subr.mxu0 0.0
  %2190 = vmatpush1.msra.mxu0 0.0
  %2191 = vmatprep.subr.mxu0 0.0
  %2192 = vmatpush1.msra.mxu0 0.0
  %2193 = vmatprep.subr.mxu0 0.0
  %2194 = vmatpush1.msra.mxu0 0.0
  %2195 = vmatprep.subr.mxu0 0.0
  %2196 = vmatpush1.msra.mxu0 0.0
  %2197 = vmatprep.subr.mxu0 0.0
  %2198 = vmatpush1.msra.mxu0 0.0
  %2199 = vmatprep.subr.mxu0 0.0
  %2200 = vmatpush1.msra.mxu0 0.0
  %2201 = vmatprep.subr.mxu0 0.0
  %2202 = vmatpush1.msra.mxu0 0.0
  %2203 = vmatprep.subr.mxu0 0.0
  %2204 = vmatpush1.msra.mxu0 0.0
  %2205 = vmatprep.subr.mxu0 0.0
  %2206 = vmatpush1.msra.mxu0 0.0
  %2207 = vmatprep.subr.mxu0 0.0
  %2208 = vmatpush1.msra.mxu0 0.0
  %2209 = vmatprep.subr.mxu0 0.0
  %2210 = vmatpush1.msra.mxu0 0.0
  %2211 = vmatprep.subr.mxu0 0.0
  %2212 = vmatpush1.msra.mxu0 0.0
  %2213 = vmatprep.mubr.f32.mxu0 0.0
  %v2214 = vand.u32 %v61, 4294901760
  %v2215 = vsub.f32 %v61, %v2214
  %v2216 = vand.u32 %v2215, 4294901760
  %2217 = vmatmul.mubr.f32.gmra.mrb[0].mxu0 %v2216
  %v2218 = vpop.f32.mrb[0].mxu0
  %v2219 = vadd.f32 %v2145, %v2218
  %v2220 = vpop.f32.mrb[0].mxu0
  %2221 = vdwg.mxu0
  %2222 = vmatprep.subr.mxu0 0.0
  %v2223 = vand.u32 %v1920, 4294901760
  %v2224 = vsub.f32 %v1920, %v2223
  %v2225 = vand.u32 %v2224, 4294901760
  %2226 = vmatpush1.msra.mxu0 %v2225
  %2227 = vmatprep.subr.mxu0 0.0
  %2228 = vmatpush1.msra.mxu0 0.0
  %2229 = vmatprep.subr.mxu0 0.0
  %2230 = vmatpush1.msra.mxu0 0.0
  %2231 = vmatprep.subr.mxu0 0.0
  %2232 = vmatpush1.msra.mxu0 0.0
  %2233 = vmatprep.subr.mxu0 0.0
  %2234 = vmatpush1.msra.mxu0 0.0
  %2235 = vmatprep.subr.mxu0 0.0
  %2236 = vmatpush1.msra.mxu0 0.0
  %2237 = vmatprep.subr.mxu0 0.0
  %2238 = vmatpush1.msra.mxu0 0.0
  %2239 = vmatprep.subr.mxu0 0.0
  %2240 = vmatpush1.msra.mxu0 0.0
  %2241 = vmatprep.subr.mxu0 0.0
  %2242 = vmatpush1.msra.mxu0 0.0
  %2243 = vmatprep.subr.mxu0 0.0
  %2244 = vmatpush1.msra.mxu0 0.0
  %2245 = vmatprep.subr.mxu0 0.0
  %2246 = vmatpush1.msra.mxu0 0.0
  %2247 = vmatprep.subr.mxu0 0.0
  %2248 = vmatpush1.msra.mxu0 0.0
  %2249 = vmatprep.subr.mxu0 0.0
  %2250 = vmatpush1.msra.mxu0 0.0
  %2251 = vmatprep.subr.mxu0 0.0
  %2252 = vmatpush1.msra.mxu0 0.0
  %2253 = vmatprep.subr.mxu0 0.0
  %2254 = vmatpush1.msra.mxu0 0.0
  %2255 = vmatprep.subr.mxu0 0.0
  %2256 = vmatpush1.msra.mxu0 0.0
  %2257 = vmatprep.subr.mxu0 0.0
  %2258 = vmatpush1.msra.mxu0 0.0
  %2259 = vmatprep.subr.mxu0 0.0
  %2260 = vmatpush1.msra.mxu0 0.0
  %2261 = vmatprep.subr.mxu0 0.0
  %2262 = vmatpush1.msra.mxu0 0.0
  %2263 = vmatprep.subr.mxu0 0.0
  %2264 = vmatpush1.msra.mxu0 0.0
  %2265 = vmatprep.subr.mxu0 0.0
  %2266 = vmatpush1.msra.mxu0 0.0
  %2267 = vmatprep.subr.mxu0 0.0
  %2268 = vmatpush1.msra.mxu0 0.0
  %2269 = vmatprep.subr.mxu0 0.0
  %2270 = vmatpush1.msra.mxu0 0.0
  %2271 = vmatprep.subr.mxu0 0.0
  %2272 = vmatpush1.msra.mxu0 0.0
  %2273 = vmatprep.subr.mxu0 0.0
  %2274 = vmatpush1.msra.mxu0 0.0
  %2275 = vmatprep.subr.mxu0 0.0
  %2276 = vmatpush1.msra.mxu0 0.0
  %2277 = vmatprep.subr.mxu0 0.0
  %2278 = vmatpush1.msra.mxu0 0.0
  %2279 = vmatprep.subr.mxu0 0.0
  %2280 = vmatpush1.msra.mxu0 0.0
  %2281 = vmatprep.subr.mxu0 0.0
  %2282 = vmatpush1.msra.mxu0 0.0
  %2283 = vmatprep.subr.mxu0 0.0
  %2284 = vmatpush1.msra.mxu0 0.0
  %2285 = vmatprep.subr.mxu0 0.0
  %2286 = vmatpush1.msra.mxu0 0.0
  %2287 = vmatprep.subr.mxu0 0.0
  %2288 = vmatpush1.msra.mxu0 0.0
  %2289 = vmatprep.mubr.f32.mxu0 0.0
  %v2290 = vand.u32 %v61, 4294901760
  %2291 = vmatmul.mubr.f32.gmra.mrb[0].mxu0 %v2290
  %v2292 = vpop.f32.mrb[0].mxu0
  %v2293 = vadd.f32 %v2219, %v2292
  %v2294 = vpop.f32.mrb[0].mxu0
  %2295 = vdwg.mxu0
  %2296 = vmatprep.subr.mxu0 0.0
  %v2297 = vand.u32 %v1920, 4294901760
  %2298 = vmatpush1.msra.mxu0 %v2297
  %2299 = vmatprep.subr.mxu0 0.0
  %2300 = vmatpush1.msra.mxu0 0.0
  %2301 = vmatprep.subr.mxu0 0.0
  %2302 = vmatpush1.msra.mxu0 0.0
  %2303 = vmatprep.subr.mxu0 0.0
  %2304 = vmatpush1.msra.mxu0 0.0
  %2305 = vmatprep.subr.mxu0 0.0
  %2306 = vmatpush1.msra.mxu0 0.0
  %2307 = vmatprep.subr.mxu0 0.0
  %2308 = vmatpush1.msra.mxu0 0.0
  %2309 = vmatprep.subr.mxu0 0.0
  %2310 = vmatpush1.msra.mxu0 0.0
  %2311 = vmatprep.subr.mxu0 0.0
  %2312 = vmatpush1.msra.mxu0 0.0
  %2313 = vmatprep.subr.mxu0 0.0
  %2314 = vmatpush1.msra.mxu0 0.0
  %2315 = vmatprep.subr.mxu0 0.0
  %2316 = vmatpush1.msra.mxu0 0.0
  %2317 = vmatprep.subr.mxu0 0.0
  %2318 = vmatpush1.msra.mxu0 0.0
  %2319 = vmatprep.subr.mxu0 0.0
  %2320 = vmatpush1.msra.mxu0 0.0
  %2321 = vmatprep.subr.mxu0 0.0
  %2322 = vmatpush1.msra.mxu0 0.0
  %2323 = vmatprep.subr.mxu0 0.0
  %2324 = vmatpush1.msra.mxu0 0.0
  %2325 = vmatprep.subr.mxu0 0.0
  %2326 = vmatpush1.msra.mxu0 0.0
  %2327 = vmatprep.subr.mxu0 0.0
  %2328 = vmatpush1.msra.mxu0 0.0
  %2329 = vmatprep.subr.mxu0 0.0
  %2330 = vmatpush1.msra.mxu0 0.0
  %2331 = vmatprep.subr.mxu0 0.0
  %2332 = vmatpush1.msra.mxu0 0.0
  %2333 = vmatprep.subr.mxu0 0.0
  %2334 = vmatpush1.msra.mxu0 0.0
  %2335 = vmatprep.subr.mxu0 0.0
  %2336 = vmatpush1.msra.mxu0 0.0
  %2337 = vmatprep.subr.mxu0 0.0
  %2338 = vmatpush1.msra.mxu0 0.0
  %2339 = vmatprep.subr.mxu0 0.0
  %2340 = vmatpush1.msra.mxu0 0.0
  %2341 = vmatprep.subr.mxu0 0.0
  %2342 = vmatpush1.msra.mxu0 0.0
  %2343 = vmatprep.subr.mxu0 0.0
  %2344 = vmatpush1.msra.mxu0 0.0
  %2345 = vmatprep.subr.mxu0 0.0
  %2346 = vmatpush1.msra.mxu0 0.0
  %2347 = vmatprep.subr.mxu0 0.0
  %2348 = vmatpush1.msra.mxu0 0.0
  %2349 = vmatprep.subr.mxu0 0.0
  %2350 = vmatpush1.msra.mxu0 0.0
  %2351 = vmatprep.subr.mxu0 0.0
  %2352 = vmatpush1.msra.mxu0 0.0
  %2353 = vmatprep.subr.mxu0 0.0
  %2354 = vmatpush1.msra.mxu0 0.0
  %2355 = vmatprep.subr.mxu0 0.0
  %2356 = vmatpush1.msra.mxu0 0.0
  %2357 = vmatprep.subr.mxu0 0.0
  %2358 = vmatpush1.msra.mxu0 0.0
  %2359 = vmatprep.subr.mxu0 0.0
  %2360 = vmatpush1.msra.mxu0 0.0
  %2361 = vmatprep.mubr.f32.mxu0 0.0
  %v2362 = vand.u32 %v61, 4294901760
  %2363 = vmatmul.mubr.f32.gmra.mrb[0].mxu0 %v2362
  %v2364 = vpop.f32.mrb[0].mxu0
  %v2365 = vadd.f32 %v2293, %v2364
  %v2366 = vpop.f32.mrb[0].mxu0
  %2367 = vdwg.mxu0
  %v2368 = vmax.f32 %v2365, 0.0
  %v2370 = vsel %vm52, %v2368, 0
  %2372 = vmatprep.subr.mxu0 0.0
  %v2373 = vand.u32 %v2370, 4294901760
  %2374 = vmatpush1.msra.mxu0 %v2373
  %2375 = vmatprep.subr.mxu0 0.0
  %2376 = vmatpush1.msra.mxu0 0.0
  %2377 = vmatprep.subr.mxu0 0.0
  %2378 = vmatpush1.msra.mxu0 0.0
  %2379 = vmatprep.subr.mxu0 0.0
  %2380 = vmatpush1.msra.mxu0 0.0
  %2381 = vmatprep.subr.mxu0 0.0
  %2382 = vmatpush1.msra.mxu0 0.0
  %2383 = vmatprep.subr.mxu0 0.0
  %2384 = vmatpush1.msra.mxu0 0.0
  %2385 = vmatprep.subr.mxu0 0.0
  %2386 = vmatpush1.msra.mxu0 0.0
  %2387 = vmatprep.subr.mxu0 0.0
  %2388 = vmatpush1.msra.mxu0 0.0
  %2389 = vmatprep.subr.mxu0 0.0
  %2390 = vmatpush1.msra.mxu0 0.0
  %2391 = vmatprep.subr.mxu0 0.0
  %2392 = vmatpush1.msra.mxu0 0.0
  %2393 = vmatprep.subr.mxu0 0.0
  %2394 = vmatpush1.msra.mxu0 0.0
  %2395 = vmatprep.subr.mxu0 0.0
  %2396 = vmatpush1.msra.mxu0 0.0
  %2397 = vmatprep.subr.mxu0 0.0
  %2398 = vmatpush1.msra.mxu0 0.0
  %2399 = vmatprep.subr.mxu0 0.0
  %2400 = vmatpush1.msra.mxu0 0.0
  %2401 = vmatprep.subr.mxu0 0.0
  %2402 = vmatpush1.msra.mxu0 0.0
  %2403 = vmatprep.subr.mxu0 0.0
  %2404 = vmatpush1.msra.mxu0 0.0
  %2405 = vmatprep.subr.mxu0 0.0
  %2406 = vmatpush1.msra.mxu0 0.0
  %2407 = vmatprep.subr.mxu0 0.0
  %2408 = vmatpush1.msra.mxu0 0.0
  %2409 = vmatprep.subr.mxu0 0.0
  %2410 = vmatpush1.msra.mxu0 0.0
  %2411 = vmatprep.subr.mxu0 0.0
  %2412 = vmatpush1.msra.mxu0 0.0
  %2413 = vmatprep.subr.mxu0 0.0
  %2414 = vmatpush1.msra.mxu0 0.0
  %2415 = vmatprep.subr.mxu0 0.0
  %2416 = vmatpush1.msra.mxu0 0.0
  %2417 = vmatprep.subr.mxu0 0.0
  %2418 = vmatpush1.msra.mxu0 0.0
  %2419 = vmatprep.subr.mxu0 0.0
  %2420 = vmatpush1.msra.mxu0 0.0
  %2421 = vmatprep.subr.mxu0 0.0
  %2422 = vmatpush1.msra.mxu0 0.0
  %2423 = vmatprep.subr.mxu0 0.0
  %2424 = vmatpush1.msra.mxu0 0.0
  %2425 = vmatprep.subr.mxu0 0.0
  %2426 = vmatpush1.msra.mxu0 0.0
  %2427 = vmatprep.subr.mxu0 0.0
  %2428 = vmatpush1.msra.mxu0 0.0
  %2429 = vmatprep.subr.mxu0 0.0
  %2430 = vmatpush1.msra.mxu0 0.0
  %2431 = vmatprep.subr.mxu0 0.0
  %2432 = vmatpush1.msra.mxu0 0.0
  %2433 = vmatprep.subr.mxu0 0.0
  %2434 = vmatpush1.msra.mxu0 0.0
  %2435 = vmatprep.subr.mxu0 0.0
  %2436 = vmatpush1.msra.mxu0 0.0
  %2437 = vmatprep.mubr.f32.mxu0 0.0
  %v2438 = vand.u32 %v514, 4294901760
  %v2439 = vsub.f32 %v514, %v2438
  %v2440 = vand.u32 %v2439, 4294901760
  %v2441 = vsub.f32 %v2439, %v2440
  %v2442 = vand.u32 %v2441, 4294901760
  %2443 = vmatmul.mubr.f32.gmra.mrb[0].mxu0 %v2442
  %v2444 = vpop.f32.mrb[0].mxu0
  %v2445 = vadd.f32 %v43, %v2444
  %v2446 = vpop.f32.mrb[0].mxu0
  %2447 = vdwg.mxu0
  %2448 = vmatprep.subr.mxu0 0.0
  %v2449 = vand.u32 %v2370, 4294901760
  %v2450 = vsub.f32 %v2370, %v2449
  %v2451 = vand.u32 %v2450, 4294901760
  %v2452 = vsub.f32 %v2450, %v2451
  %v2453 = vand.u32 %v2452, 4294901760
  %2454 = vmatpush1.msra.mxu0 %v2453
  %2455 = vmatprep.subr.mxu0 0.0
  %2456 = vmatpush1.msra.mxu0 0.0
  %2457 = vmatprep.subr.mxu0 0.0
  %2458 = vmatpush1.msra.mxu0 0.0
  %2459 = vmatprep.subr.mxu0 0.0
  %2460 = vmatpush1.msra.mxu0 0.0
  %2461 = vmatprep.subr.mxu0 0.0
  %2462 = vmatpush1.msra.mxu0 0.0
  %2463 = vmatprep.subr.mxu0 0.0
  %2464 = vmatpush1.msra.mxu0 0.0
  %2465 = vmatprep.subr.mxu0 0.0
  %2466 = vmatpush1.msra.mxu0 0.0
  %2467 = vmatprep.subr.mxu0 0.0
  %2468 = vmatpush1.msra.mxu0 0.0
  %2469 = vmatprep.subr.mxu0 0.0
  %2470 = vmatpush1.msra.mxu0 0.0
  %2471 = vmatprep.subr.mxu0 0.0
  %2472 = vmatpush1.msra.mxu0 0.0
  %2473 = vmatprep.subr.mxu0 0.0
  %2474 = vmatpush1.msra.mxu0 0.0
  %2475 = vmatprep.subr.mxu0 0.0
  %2476 = vmatpush1.msra.mxu0 0.0
  %2477 = vmatprep.subr.mxu0 0.0
  %2478 = vmatpush1.msra.mxu0 0.0
  %2479 = vmatprep.subr.mxu0 0.0
  %2480 = vmatpush1.msra.mxu0 0.0
  %2481 = vmatprep.subr.mxu0 0.0
  %2482 = vmatpush1.msra.mxu0 0.0
  %2483 = vmatprep.subr.mxu0 0.0
  %2484 = vmatpush1.msra.mxu0 0.0
  %2485 = vmatprep.subr.mxu0 0.0
  %2486 = vmatpush1.msra.mxu0 0.0
  %2487 = vmatprep.subr.mxu0 0.0
  %2488 = vmatpush1.msra.mxu0 0.0
  %2489 = vmatprep.subr.mxu0 0.0
  %2490 = vmatpush1.msra.mxu0 0.0
  %2491 = vmatprep.subr.mxu0 0.0
  %2492 = vmatpush1.msra.mxu0 0.0
  %2493 = vmatprep.subr.mxu0 0.0
  %2494 = vmatpush1.msra.mxu0 0.0
  %2495 = vmatprep.subr.mxu0 0.0
  %2496 = vmatpush1.msra.mxu0 0.0
  %2497 = vmatprep.subr.mxu0 0.0
  %2498 = vmatpush1.msra.mxu0 0.0
  %2499 = vmatprep.subr.mxu0 0.0
  %2500 = vmatpush1.msra.mxu0 0.0
  %2501 = vmatprep.subr.mxu0 0.0
  %2502 = vmatpush1.msra.mxu0 0.0
  %2503 = vmatprep.subr.mxu0 0.0
  %2504 = vmatpush1.msra.mxu0 0.0
  %2505 = vmatprep.subr.mxu0 0.0
  %2506 = vmatpush1.msra.mxu0 0.0
  %2507 = vmatprep.subr.mxu0 0.0
  %2508 = vmatpush1.msra.mxu0 0.0
  %2509 = vmatprep.subr.mxu0 0.0
  %2510 = vmatpush1.msra.mxu0 0.0
  %2511 = vmatprep.subr.mxu0 0.0
  %2512 = vmatpush1.msra.mxu0 0.0
  %2513 = vmatprep.subr.mxu0 0.0
  %2514 = vmatpush1.msra.mxu0 0.0
  %2515 = vmatprep.subr.mxu0 0.0
  %2516 = vmatpush1.msra.mxu0 0.0
  %2517 = vmatprep.mubr.f32.mxu0 0.0
  %v2518 = vand.u32 %v514, 4294901760
  %2519 = vmatmul.mubr.f32.gmra.mrb[0].mxu0 %v2518
  %v2520 = vpop.f32.mrb[0].mxu0
  %v2521 = vadd.f32 %v2445, %v2520
  %v2522 = vpop.f32.mrb[0].mxu0
  %2523 = vdwg.mxu0
  %2524 = vmatprep.subr.mxu0 0.0
  %v2525 = vand.u32 %v2370, 4294901760
  %v2526 = vsub.f32 %v2370, %v2525
  %2527 = vmatpush1.msra.mxu0 %v2526
  %2528 = vmatprep.subr.mxu0 0.0
  %2529 = vmatpush1.msra.mxu0 0.0
  %2530 = vmatprep.subr.mxu0 0.0
  %2531 = vmatpush1.msra.mxu0 0.0
  %2532 = vmatprep.subr.mxu0 0.0
  %2533 = vmatpush1.msra.mxu0 0.0
  %2534 = vmatprep.subr.mxu0 0.0
  %2535 = vmatpush1.msra.mxu0 0.0
  %2536 = vmatprep.subr.mxu0 0.0
  %2537 = vmatpush1.msra.mxu0 0.0
  %2538 = vmatprep.subr.mxu0 0.0
  %2539 = vmatpush1.msra.mxu0 0.0
  %2540 = vmatprep.subr.mxu0 0.0
  %2541 = vmatpush1.msra.mxu0 0.0
  %2542 = vmatprep.subr.mxu0 0.0
  %2543 = vmatpush1.msra.mxu0 0.0
  %2544 = vmatprep.subr.mxu0 0.0
  %2545 = vmatpush1.msra.mxu0 0.0
  %2546 = vmatprep.subr.mxu0 0.0
  %2547 = vmatpush1.msra.mxu0 0.0
  %2548 = vmatprep.subr.mxu0 0.0
  %2549 = vmatpush1.msra.mxu0 0.0
  %2550 = vmatprep.subr.mxu0 0.0
  %2551 = vmatpush1.msra.mxu0 0.0
  %2552 = vmatprep.subr.mxu0 0.0
  %2553 = vmatpush1.msra.mxu0 0.0
  %2554 = vmatprep.subr.mxu0 0.0
  %2555 = vmatpush1.msra.mxu0 0.0
  %2556 = vmatprep.subr.mxu0 0.0
  %2557 = vmatpush1.msra.mxu0 0.0
  %2558 = vmatprep.subr.mxu0 0.0
  %2559 = vmatpush1.msra.mxu0 0.0
  %2560 = vmatprep.subr.mxu0 0.0
  %2561 = vmatpush1.msra.mxu0 0.0
  %2562 = vmatprep.subr.mxu0 0.0
  %2563 = vmatpush1.msra.mxu0 0.0
  %2564 = vmatprep.subr.mxu0 0.0
  %2565 = vmatpush1.msra.mxu0 0.0
  %2566 = vmatprep.subr.mxu0 0.0
  %2567 = vmatpush1.msra.mxu0 0.0
  %2568 = vmatprep.subr.mxu0 0.0
  %2569 = vmatpush1.msra.mxu0 0.0
  %2570 = vmatprep.subr.mxu0 0.0
  %2571 = vmatpush1.msra.mxu0 0.0
  %2572 = vmatprep.subr.mxu0 0.0
  %2573 = vmatpush1.msra.mxu0 0.0
  %2574 = vmatprep.subr.mxu0 0.0
  %2575 = vmatpush1.msra.mxu0 0.0
  %2576 = vmatprep.subr.mxu0 0.0
  %2577 = vmatpush1.msra.mxu0 0.0
  %2578 = vmatprep.subr.mxu0 0.0
  %2579 = vmatpush1.msra.mxu0 0.0
  %2580 = vmatprep.subr.mxu0 0.0
  %2581 = vmatpush1.msra.mxu0 0.0
  %2582 = vmatprep.subr.mxu0 0.0
  %2583 = vmatpush1.msra.mxu0 0.0
  %2584 = vmatprep.subr.mxu0 0.0
  %2585 = vmatpush1.msra.mxu0 0.0
  %2586 = vmatprep.subr.mxu0 0.0
  %2587 = vmatpush1.msra.mxu0 0.0
  %2588 = vmatprep.subr.mxu0 0.0
  %2589 = vmatpush1.msra.mxu0 0.0
  %2590 = vmatprep.mubr.f32.mxu0 0.0
  %v2591 = vand.u32 %v514, 4294901760
  %v2592 = vsub.f32 %v514, %v2591
  %2593 = vmatmul.mubr.f32.gmra.mrb[0].mxu0 %v2592
  %v2594 = vpop.f32.mrb[0].mxu0
  %v2595 = vadd.f32 %v2521, %v2594
  %v2596 = vpop.f32.mrb[0].mxu0
  %2597 = vdwg.mxu0
  %2598 = vmatprep.subr.mxu0 0.0
  %v2599 = vand.u32 %v2370, 4294901760
  %2600 = vmatpush1.msra.mxu0 %v2599
  %2601 = vmatprep.subr.mxu0 0.0
  %2602 = vmatpush1.msra.mxu0 0.0
  %2603 = vmatprep.subr.mxu0 0.0
  %2604 = vmatpush1.msra.mxu0 0.0
  %2605 = vmatprep.subr.mxu0 0.0
  %2606 = vmatpush1.msra.mxu0 0.0
  %2607 = vmatprep.subr.mxu0 0.0
  %2608 = vmatpush1.msra.mxu0 0.0
  %2609 = vmatprep.subr.mxu0 0.0
  %2610 = vmatpush1.msra.mxu0 0.0
  %2611 = vmatprep.subr.mxu0 0.0
  %2612 = vmatpush1.msra.mxu0 0.0
  %2613 = vmatprep.subr.mxu0 0.0
  %2614 = vmatpush1.msra.mxu0 0.0
  %2615 = vmatprep.subr.mxu0 0.0
  %2616 = vmatpush1.msra.mxu0 0.0
  %2617 = vmatprep.subr.mxu0 0.0
  %2618 = vmatpush1.msra.mxu0 0.0
  %2619 = vmatprep.subr.mxu0 0.0
  %2620 = vmatpush1.msra.mxu0 0.0
  %2621 = vmatprep.subr.mxu0 0.0
  %2622 = vmatpush1.msra.mxu0 0.0
  %2623 = vmatprep.subr.mxu0 0.0
  %2624 = vmatpush1.msra.mxu0 0.0
  %2625 = vmatprep.subr.mxu0 0.0
  %2626 = vmatpush1.msra.mxu0 0.0
  %2627 = vmatprep.subr.mxu0 0.0
  %2628 = vmatpush1.msra.mxu0 0.0
  %2629 = vmatprep.subr.mxu0 0.0
  %2630 = vmatpush1.msra.mxu0 0.0
  %2631 = vmatprep.subr.mxu0 0.0
  %2632 = vmatpush1.msra.mxu0 0.0
  %2633 = vmatprep.subr.mxu0 0.0
  %2634 = vmatpush1.msra.mxu0 0.0
  %2635 = vmatprep.subr.mxu0 0.0
  %2636 = vmatpush1.msra.mxu0 0.0
  %2637 = vmatprep.subr.mxu0 0.0
  %2638 = vmatpush1.msra.mxu0 0.0
  %2639 = vmatprep.subr.mxu0 0.0
  %2640 = vmatpush1.msra.mxu0 0.0
  %2641 = vmatprep.subr.mxu0 0.0
  %2642 = vmatpush1.msra.mxu0 0.0
  %2643 = vmatprep.subr.mxu0 0.0
  %2644 = vmatpush1.msra.mxu0 0.0
  %2645 = vmatprep.subr.mxu0 0.0
  %2646 = vmatpush1.msra.mxu0 0.0
  %2647 = vmatprep.subr.mxu0 0.0
  %2648 = vmatpush1.msra.mxu0 0.0
  %2649 = vmatprep.subr.mxu0 0.0
  %2650 = vmatpush1.msra.mxu0 0.0
  %2651 = vmatprep.subr.mxu0 0.0
  %2652 = vmatpush1.msra.mxu0 0.0
  %2653 = vmatprep.subr.mxu0 0.0
  %2654 = vmatpush1.msra.mxu0 0.0
  %2655 = vmatprep.subr.mxu0 0.0
  %2656 = vmatpush1.msra.mxu0 0.0
  %2657 = vmatprep.subr.mxu0 0.0
  %2658 = vmatpush1.msra.mxu0 0.0
  %2659 = vmatprep.subr.mxu0 0.0
  %2660 = vmatpush1.msra.mxu0 0.0
  %2661 = vmatprep.subr.mxu0 0.0
  %2662 = vmatpush1.msra.mxu0 0.0
  %2663 = vmatprep.mubr.f32.mxu0 0.0
  %v2664 = vand.u32 %v514, 4294901760
  %v2665 = vsub.f32 %v514, %v2664
  %v2666 = vand.u32 %v2665, 4294901760
  %2667 = vmatmul.mubr.f32.gmra.mrb[0].mxu0 %v2666
  %v2668 = vpop.f32.mrb[0].mxu0
  %v2669 = vadd.f32 %v2595, %v2668
  %v2670 = vpop.f32.mrb[0].mxu0
  %2671 = vdwg.mxu0
  %2672 = vmatprep.subr.mxu0 0.0
  %v2673 = vand.u32 %v2370, 4294901760
  %v2674 = vsub.f32 %v2370, %v2673
  %v2675 = vand.u32 %v2674, 4294901760
  %2676 = vmatpush1.msra.mxu0 %v2675
  %2677 = vmatprep.subr.mxu0 0.0
  %2678 = vmatpush1.msra.mxu0 0.0
  %2679 = vmatprep.subr.mxu0 0.0
  %2680 = vmatpush1.msra.mxu0 0.0
  %2681 = vmatprep.subr.mxu0 0.0
  %2682 = vmatpush1.msra.mxu0 0.0
  %2683 = vmatprep.subr.mxu0 0.0
  %2684 = vmatpush1.msra.mxu0 0.0
  %2685 = vmatprep.subr.mxu0 0.0
  %2686 = vmatpush1.msra.mxu0 0.0
  %2687 = vmatprep.subr.mxu0 0.0
  %2688 = vmatpush1.msra.mxu0 0.0
  %2689 = vmatprep.subr.mxu0 0.0
  %2690 = vmatpush1.msra.mxu0 0.0
  %2691 = vmatprep.subr.mxu0 0.0
  %2692 = vmatpush1.msra.mxu0 0.0
  %2693 = vmatprep.subr.mxu0 0.0
  %2694 = vmatpush1.msra.mxu0 0.0
  %2695 = vmatprep.subr.mxu0 0.0
  %2696 = vmatpush1.msra.mxu0 0.0
  %2697 = vmatprep.subr.mxu0 0.0
  %2698 = vmatpush1.msra.mxu0 0.0
  %2699 = vmatprep.subr.mxu0 0.0
  %2700 = vmatpush1.msra.mxu0 0.0
  %2701 = vmatprep.subr.mxu0 0.0
  %2702 = vmatpush1.msra.mxu0 0.0
  %2703 = vmatprep.subr.mxu0 0.0
  %2704 = vmatpush1.msra.mxu0 0.0
  %2705 = vmatprep.subr.mxu0 0.0
  %2706 = vmatpush1.msra.mxu0 0.0
  %2707 = vmatprep.subr.mxu0 0.0
  %2708 = vmatpush1.msra.mxu0 0.0
  %2709 = vmatprep.subr.mxu0 0.0
  %2710 = vmatpush1.msra.mxu0 0.0
  %2711 = vmatprep.subr.mxu0 0.0
  %2712 = vmatpush1.msra.mxu0 0.0
  %2713 = vmatprep.subr.mxu0 0.0
  %2714 = vmatpush1.msra.mxu0 0.0
  %2715 = vmatprep.subr.mxu0 0.0
  %2716 = vmatpush1.msra.mxu0 0.0
  %2717 = vmatprep.subr.mxu0 0.0
  %2718 = vmatpush1.msra.mxu0 0.0
  %2719 = vmatprep.subr.mxu0 0.0
  %2720 = vmatpush1.msra.mxu0 0.0
  %2721 = vmatprep.subr.mxu0 0.0
  %2722 = vmatpush1.msra.mxu0 0.0
  %2723 = vmatprep.subr.mxu0 0.0
  %2724 = vmatpush1.msra.mxu0 0.0
  %2725 = vmatprep.subr.mxu0 0.0
  %2726 = vmatpush1.msra.mxu0 0.0
  %2727 = vmatprep.subr.mxu0 0.0
  %2728 = vmatpush1.msra.mxu0 0.0
  %2729 = vmatprep.subr.mxu0 0.0
  %2730 = vmatpush1.msra.mxu0 0.0
  %2731 = vmatprep.subr.mxu0 0.0
  %2732 = vmatpush1.msra.mxu0 0.0
  %2733 = vmatprep.subr.mxu0 0.0
  %2734 = vmatpush1.msra.mxu0 0.0
  %2735 = vmatprep.subr.mxu0 0.0
  %2736 = vmatpush1.msra.mxu0 0.0
  %2737 = vmatprep.subr.mxu0 0.0
  %2738 = vmatpush1.msra.mxu0 0.0
  %2739 = vmatprep.mubr.f32.mxu0 0.0
  %v2740 = vand.u32 %v514, 4294901760
  %2741 = vmatmul.mubr.f32.gmra.mrb[0].mxu0 %v2740
  %v2742 = vpop.f32.mrb[0].mxu0
  %v2743 = vadd.f32 %v2669, %v2742
  %v2744 = vpop.f32.mrb[0].mxu0
  %2745 = vdwg.mxu0
  %2746 = vmatprep.subr.mxu0 0.0
  %v2747 = vand.u32 %v2370, 4294901760
  %2748 = vmatpush1.msra.mxu0 %v2747
  %2749 = vmatprep.subr.mxu0 0.0
  %2750 = vmatpush1.msra.mxu0 0.0
  %2751 = vmatprep.subr.mxu0 0.0
  %2752 = vmatpush1.msra.mxu0 0.0
  %2753 = vmatprep.subr.mxu0 0.0
  %2754 = vmatpush1.msra.mxu0 0.0
  %2755 = vmatprep.subr.mxu0 0.0
  %2756 = vmatpush1.msra.mxu0 0.0
  %2757 = vmatprep.subr.mxu0 0.0
  %2758 = vmatpush1.msra.mxu0 0.0
  %2759 = vmatprep.subr.mxu0 0.0
  %2760 = vmatpush1.msra.mxu0 0.0
  %2761 = vmatprep.subr.mxu0 0.0
  %2762 = vmatpush1.msra.mxu0 0.0
  %2763 = vmatprep.subr.mxu0 0.0
  %2764 = vmatpush1.msra.mxu0 0.0
  %2765 = vmatprep.subr.mxu0 0.0
  %2766 = vmatpush1.msra.mxu0 0.0
  %2767 = vmatprep.subr.mxu0 0.0
  %2768 = vmatpush1.msra.mxu0 0.0
  %2769 = vmatprep.subr.mxu0 0.0
  %2770 = vmatpush1.msra.mxu0 0.0
  %2771 = vmatprep.subr.mxu0 0.0
  %2772 = vmatpush1.msra.mxu0 0.0
  %2773 = vmatprep.subr.mxu0 0.0
  %2774 = vmatpush1.msra.mxu0 0.0
  %2775 = vmatprep.subr.mxu0 0.0
  %2776 = vmatpush1.msra.mxu0 0.0
  %2777 = vmatprep.subr.mxu0 0.0
  %2778 = vmatpush1.msra.mxu0 0.0
  %2779 = vmatprep.subr.mxu0 0.0
  %2780 = vmatpush1.msra.mxu0 0.0
  %2781 = vmatprep.subr.mxu0 0.0
  %2782 = vmatpush1.msra.mxu0 0.0
  %2783 = vmatprep.subr.mxu0 0.0
  %2784 = vmatpush1.msra.mxu0 0.0
  %2785 = vmatprep.subr.mxu0 0.0
  %2786 = vmatpush1.msra.mxu0 0.0
  %2787 = vmatprep.subr.mxu0 0.0
  %2788 = vmatpush1.msra.mxu0 0.0
  %2789 = vmatprep.subr.mxu0 0.0
  %2790 = vmatpush1.msra.mxu0 0.0
  %2791 = vmatprep.subr.mxu0 0.0
  %2792 = vmatpush1.msra.mxu0 0.0
  %2793 = vmatprep.subr.mxu0 0.0
  %2794 = vmatpush1.msra.mxu0 0.0
  %2795 = vmatprep.subr.mxu0 0.0
  %2796 = vmatpush1.msra.mxu0 0.0
  %2797 = vmatprep.subr.mxu0 0.0
  %2798 = vmatpush1.msra.mxu0 0.0
  %2799 = vmatprep.subr.mxu0 0.0
  %2800 = vmatpush1.msra.mxu0 0.0
  %2801 = vmatprep.subr.mxu0 0.0
  %2802 = vmatpush1.msra.mxu0 0.0
  %2803 = vmatprep.subr.mxu0 0.0
  %2804 = vmatpush1.msra.mxu0 0.0
  %2805 = vmatprep.subr.mxu0 0.0
  %2806 = vmatpush1.msra.mxu0 0.0
  %2807 = vmatprep.subr.mxu0 0.0
  %2808 = vmatpush1.msra.mxu0 0.0
  %2809 = vmatprep.subr.mxu0 0.0
  %2810 = vmatpush1.msra.mxu0 0.0
  %2811 = vmatprep.mubr.f32.mxu0 0.0
  %v2812 = vand.u32 %v514, 4294901760
  %2813 = vmatmul.mubr.f32.gmra.mrb[0].mxu0 %v2812
  %v2814 = vpop.f32.mrb[0].mxu0
  %v2815 = vadd.f32 %v2743, %v2814
  %v2816 = vpop.f32.mrb[0].mxu0
  %2817 = vdwg.mxu0
  %v2818 = vsub.f32 0.0, %v2815
  %v2819 = vmul.f32 %v2818, 1.442695
  %v2820 = vpow.pop %v2819
  %v2821 = vadd.f32 %v2820, 1.0
  %v2822 = vrcp.pop %v2821
  %2823 = vmatprep.subr.mxu0 0.0
  %v2824 = vand.u32 %v1920, 4294901760
  %2825 = vmatpush1.msra.mxu0 %v2824
  %2826 = vmatprep.subr.mxu0 0.0
  %2827 = vmatpush1.msra.mxu0 0.0
  %2828 = vmatprep.subr.mxu0 0.0
  %2829 = vmatpush1.msra.mxu0 0.0
  %2830 = vmatprep.subr.mxu0 0.0
  %2831 = vmatpush1.msra.mxu0 0.0
  %2832 = vmatprep.subr.mxu0 0.0
  %2833 = vmatpush1.msra.mxu0 0.0
  %2834 = vmatprep.subr.mxu0 0.0
  %2835 = vmatpush1.msra.mxu0 0.0
  %2836 = vmatprep.subr.mxu0 0.0
  %2837 = vmatpush1.msra.mxu0 0.0
  %2838 = vmatprep.subr.mxu0 0.0
  %2839 = vmatpush1.msra.mxu0 0.0
  %2840 = vmatprep.subr.mxu0 0.0
  %2841 = vmatpush1.msra.mxu0 0.0
  %2842 = vmatprep.subr.mxu0 0.0
  %2843 = vmatpush1.msra.mxu0 0.0
  %2844 = vmatprep.subr.mxu0 0.0
  %2845 = vmatpush1.msra.mxu0 0.0
  %2846 = vmatprep.subr.mxu0 0.0
  %2847 = vmatpush1.msra.mxu0 0.0
  %2848 = vmatprep.subr.mxu0 0.0
  %2849 = vmatpush1.msra.mxu0 0.0
  %2850 = vmatprep.subr.mxu0 0.0
  %2851 = vmatpush1.msra.mxu0 0.0
  %2852 = vmatprep.subr.mxu0 0.0
  %2853 = vmatpush1.msra.mxu0 0.0
  %2854 = vmatprep.subr.mxu0 0.0
  %2855 = vmatpush1.msra.mxu0 0.0
  %2856 = vmatprep.subr.mxu0 0.0
  %2857 = vmatpush1.msra.mxu0 0.0
  %2858 = vmatprep.subr.mxu0 0.0
  %2859 = vmatpush1.msra.mxu0 0.0
  %2860 = vmatprep.subr.mxu0 0.0
  %2861 = vmatpush1.msra.mxu0 0.0
  %2862 = vmatprep.subr.mxu0 0.0
  %2863 = vmatpush1.msra.mxu0 0.0
  %2864 = vmatprep.subr.mxu0 0.0
  %2865 = vmatpush1.msra.mxu0 0.0
  %2866 = vmatprep.subr.mxu0 0.0
  %2867 = vmatpush1.msra.mxu0 0.0
  %2868 = vmatprep.subr.mxu0 0.0
  %2869 = vmatpush1.msra.mxu0 0.0
  %2870 = vmatprep.subr.mxu0 0.0
  %2871 = vmatpush1.msra.mxu0 0.0
  %2872 = vmatprep.subr.mxu0 0.0
  %2873 = vmatpush1.msra.mxu0 0.0
  %2874 = vmatprep.subr.mxu0 0.0
  %2875 = vmatpush1.msra.mxu0 0.0
  %2876 = vmatprep.subr.mxu0 0.0
  %2877 = vmatpush1.msra.mxu0 0.0
  %2878 = vmatprep.subr.mxu0 0.0
  %2879 = vmatpush1.msra.mxu0 0.0
  %2880 = vmatprep.subr.mxu0 0.0
  %2881 = vmatpush1.msra.mxu0 0.0
  %2882 = vmatprep.subr.mxu0 0.0
  %2883 = vmatpush1.msra.mxu0 0.0
  %2884 = vmatprep.subr.mxu0 0.0
  %2885 = vmatpush1.msra.mxu0 0.0
  %2886 = vmatprep.subr.mxu0 0.0
  %2887 = vmatpush1.msra.mxu0 0.0
  %2888 = vmatprep.mubr.f32.mxu0 0.0
  %v2889 = vand.u32 %v971, 4294901760
  %v2890 = vsub.f32 %v971, %v2889
  %v2891 = vand.u32 %v2890, 4294901760
  %v2892 = vsub.f32 %v2890, %v2891
  %v2893 = vand.u32 %v2892, 4294901760
  %2894 = vmatmul.mubr.f32.gmra.mrb[0].mxu0 %v2893
  %v2895 = vpop.f32.mrb[0].mxu0
  %v2896 = vadd.f32 %v45, %v2895
  %v2897 = vpop.f32.mrb[0].mxu0
  %2898 = vdwg.mxu0
  %2899 = vmatprep.subr.mxu0 0.0
  %v2900 = vand.u32 %v1920, 4294901760
  %v2901 = vsub.f32 %v1920, %v2900
  %v2902 = vand.u32 %v2901, 4294901760
  %v2903 = vsub.f32 %v2901, %v2902
  %v2904 = vand.u32 %v2903, 4294901760
  %2905 = vmatpush1.msra.mxu0 %v2904
  %2906 = vmatprep.subr.mxu0 0.0
  %2907 = vmatpush1.msra.mxu0 0.0
  %2908 = vmatprep.subr.mxu0 0.0
  %2909 = vmatpush1.msra.mxu0 0.0
  %2910 = vmatprep.subr.mxu0 0.0
  %2911 = vmatpush1.msra.mxu0 0.0
  %2912 = vmatprep.subr.mxu0 0.0
  %2913 = vmatpush1.msra.mxu0 0.0
  %2914 = vmatprep.subr.mxu0 0.0
  %2915 = vmatpush1.msra.mxu0 0.0
  %2916 = vmatprep.subr.mxu0 0.0
  %2917 = vmatpush1.msra.mxu0 0.0
  %2918 = vmatprep.subr.mxu0 0.0
  %2919 = vmatpush1.msra.mxu0 0.0
  %2920 = vmatprep.subr.mxu0 0.0
  %2921 = vmatpush1.msra.mxu0 0.0
  %2922 = vmatprep.subr.mxu0 0.0
  %2923 = vmatpush1.msra.mxu0 0.0
  %2924 = vmatprep.subr.mxu0 0.0
  %2925 = vmatpush1.msra.mxu0 0.0
  %2926 = vmatprep.subr.mxu0 0.0
  %2927 = vmatpush1.msra.mxu0 0.0
  %2928 = vmatprep.subr.mxu0 0.0
  %2929 = vmatpush1.msra.mxu0 0.0
  %2930 = vmatprep.subr.mxu0 0.0
  %2931 = vmatpush1.msra.mxu0 0.0
  %2932 = vmatprep.subr.mxu0 0.0
  %2933 = vmatpush1.msra.mxu0 0.0
  %2934 = vmatprep.subr.mxu0 0.0
  %2935 = vmatpush1.msra.mxu0 0.0
  %2936 = vmatprep.subr.mxu0 0.0
  %2937 = vmatpush1.msra.mxu0 0.0
  %2938 = vmatprep.subr.mxu0 0.0
  %2939 = vmatpush1.msra.mxu0 0.0
  %2940 = vmatprep.subr.mxu0 0.0
  %2941 = vmatpush1.msra.mxu0 0.0
  %2942 = vmatprep.subr.mxu0 0.0
  %2943 = vmatpush1.msra.mxu0 0.0
  %2944 = vmatprep.subr.mxu0 0.0
  %2945 = vmatpush1.msra.mxu0 0.0
  %2946 = vmatprep.subr.mxu0 0.0
  %2947 = vmatpush1.msra.mxu0 0.0
  %2948 = vmatprep.subr.mxu0 0.0
  %2949 = vmatpush1.msra.mxu0 0.0
  %2950 = vmatprep.subr.mxu0 0.0
  %2951 = vmatpush1.msra.mxu0 0.0
  %2952 = vmatprep.subr.mxu0 0.0
  %2953 = vmatpush1.msra.mxu0 0.0
  %2954 = vmatprep.subr.mxu0 0.0
  %2955 = vmatpush1.msra.mxu0 0.0
  %2956 = vmatprep.subr.mxu0 0.0
  %2957 = vmatpush1.msra.mxu0 0.0
  %2958 = vmatprep.subr.mxu0 0.0
  %2959 = vmatpush1.msra.mxu0 0.0
  %2960 = vmatprep.subr.mxu0 0.0
  %2961 = vmatpush1.msra.mxu0 0.0
  %2962 = vmatprep.subr.mxu0 0.0
  %2963 = vmatpush1.msra.mxu0 0.0
  %2964 = vmatprep.subr.mxu0 0.0
  %2965 = vmatpush1.msra.mxu0 0.0
  %2966 = vmatprep.subr.mxu0 0.0
  %2967 = vmatpush1.msra.mxu0 0.0
  %2968 = vmatprep.mubr.f32.mxu0 0.0
  %v2969 = vand.u32 %v971, 4294901760
  %2970 = vmatmul.mubr.f32.gmra.mrb[0].mxu0 %v2969
  %v2971 = vpop.f32.mrb[0].mxu0
  %v2972 = vadd.f32 %v2896, %v2971
  %v2973 = vpop.f32.mrb[0].mxu0
  %2974 = vdwg.mxu0
  %2975 = vmatprep.subr.mxu0 0.0
  %v2976 = vand.u32 %v1920, 4294901760
  %v2977 = vsub.f32 %v1920, %v2976
  %2978 = vmatpush1.msra.mxu0 %v2977
  %2979 = vmatprep.subr.mxu0 0.0
  %2980 = vmatpush1.msra.mxu0 0.0
  %2981 = vmatprep.subr.mxu0 0.0
  %2982 = vmatpush1.msra.mxu0 0.0
  %2983 = vmatprep.subr.mxu0 0.0
  %2984 = vmatpush1.msra.mxu0 0.0
  %2985 = vmatprep.subr.mxu0 0.0
  %2986 = vmatpush1.msra.mxu0 0.0
  %2987 = vmatprep.subr.mxu0 0.0
  %2988 = vmatpush1.msra.mxu0 0.0
  %2989 = vmatprep.subr.mxu0 0.0
  %2990 = vmatpush1.msra.mxu0 0.0
  %2991 = vmatprep.subr.mxu0 0.0
  %2992 = vmatpush1.msra.mxu0 0.0
  %2993 = vmatprep.subr.mxu0 0.0
  %2994 = vmatpush1.msra.mxu0 0.0
  %2995 = vmatprep.subr.mxu0 0.0
  %2996 = vmatpush1.msra.mxu0 0.0
  %2997 = vmatprep.subr.mxu0 0.0
  %2998 = vmatpush1.msra.mxu0 0.0
  %2999 = vmatprep.subr.mxu0 0.0
  %3000 = vmatpush1.msra.mxu0 0.0
  %3001 = vmatprep.subr.mxu0 0.0
  %3002 = vmatpush1.msra.mxu0 0.0
  %3003 = vmatprep.subr.mxu0 0.0
  %3004 = vmatpush1.msra.mxu0 0.0
  %3005 = vmatprep.subr.mxu0 0.0
  %3006 = vmatpush1.msra.mxu0 0.0
  %3007 = vmatprep.subr.mxu0 0.0
  %3008 = vmatpush1.msra.mxu0 0.0
  %3009 = vmatprep.subr.mxu0 0.0
  %3010 = vmatpush1.msra.mxu0 0.0
  %3011 = vmatprep.subr.mxu0 0.0
  %3012 = vmatpush1.msra.mxu0 0.0
  %3013 = vmatprep.subr.mxu0 0.0
  %3014 = vmatpush1.msra.mxu0 0.0
  %3015 = vmatprep.subr.mxu0 0.0
  %3016 = vmatpush1.msra.mxu0 0.0
  %3017 = vmatprep.subr.mxu0 0.0
  %3018 = vmatpush1.msra.mxu0 0.0
  %3019 = vmatprep.subr.mxu0 0.0
  %3020 = vmatpush1.msra.mxu0 0.0
  %3021 = vmatprep.subr.mxu0 0.0
  %3022 = vmatpush1.msra.mxu0 0.0
  %3023 = vmatprep.subr.mxu0 0.0
  %3024 = vmatpush1.msra.mxu0 0.0
  %3025 = vmatprep.subr.mxu0 0.0
  %3026 = vmatpush1.msra.mxu0 0.0
  %3027 = vmatprep.subr.mxu0 0.0
  %3028 = vmatpush1.msra.mxu0 0.0
  %3029 = vmatprep.subr.mxu0 0.0
  %3030 = vmatpush1.msra.mxu0 0.0
  %3031 = vmatprep.subr.mxu0 0.0
  %3032 = vmatpush1.msra.mxu0 0.0
  %3033 = vmatprep.subr.mxu0 0.0
  %3034 = vmatpush1.msra.mxu0 0.0
  %3035 = vmatprep.subr.mxu0 0.0
  %3036 = vmatpush1.msra.mxu0 0.0
  %3037 = vmatprep.subr.mxu0 0.0
  %3038 = vmatpush1.msra.mxu0 0.0
  %3039 = vmatprep.subr.mxu0 0.0
  %3040 = vmatpush1.msra.mxu0 0.0
  %3041 = vmatprep.mubr.f32.mxu0 0.0
  %v3042 = vand.u32 %v971, 4294901760
  %v3043 = vsub.f32 %v971, %v3042
  %3044 = vmatmul.mubr.f32.gmra.mrb[0].mxu0 %v3043
  %v3045 = vpop.f32.mrb[0].mxu0
  %v3046 = vadd.f32 %v2972, %v3045
  %v3047 = vpop.f32.mrb[0].mxu0
  %3048 = vdwg.mxu0
  %3049 = vmatprep.subr.mxu0 0.0
  %v3050 = vand.u32 %v1920, 4294901760
  %3051 = vmatpush1.msra.mxu0 %v3050
  %3052 = vmatprep.subr.mxu0 0.0
  %3053 = vmatpush1.msra.mxu0 0.0
  %3054 = vmatprep.subr.mxu0 0.0
  %3055 = vmatpush1.msra.mxu0 0.0
  %3056 = vmatprep.subr.mxu0 0.0
  %3057 = vmatpush1.msra.mxu0 0.0
  %3058 = vmatprep.subr.mxu0 0.0
  %3059 = vmatpush1.msra.mxu0 0.0
  %3060 = vmatprep.subr.mxu0 0.0
  %3061 = vmatpush1.msra.mxu0 0.0
  %3062 = vmatprep.subr.mxu0 0.0
  %3063 = vmatpush1.msra.mxu0 0.0
  %3064 = vmatprep.subr.mxu0 0.0
  %3065 = vmatpush1.msra.mxu0 0.0
  %3066 = vmatprep.subr.mxu0 0.0
  %3067 = vmatpush1.msra.mxu0 0.0
  %3068 = vmatprep.subr.mxu0 0.0
  %3069 = vmatpush1.msra.mxu0 0.0
  %3070 = vmatprep.subr.mxu0 0.0
  %3071 = vmatpush1.msra.mxu0 0.0
  %3072 = vmatprep.subr.mxu0 0.0
  %3073 = vmatpush1.msra.mxu0 0.0
  %3074 = vmatprep.subr.mxu0 0.0
  %3075 = vmatpush1.msra.mxu0 0.0
  %3076 = vmatprep.subr.mxu0 0.0
  %3077 = vmatpush1.msra.mxu0 0.0
  %3078 = vmatprep.subr.mxu0 0.0
  %3079 = vmatpush1.msra.mxu0 0.0
  %3080 = vmatprep.subr.mxu0 0.0
  %3081 = vmatpush1.msra.mxu0 0.0
  %3082 = vmatprep.subr.mxu0 0.0
  %3083 = vmatpush1.msra.mxu0 0.0
  %3084 = vmatprep.subr.mxu0 0.0
  %3085 = vmatpush1.msra.mxu0 0.0
  %3086 = vmatprep.subr.mxu0 0.0
  %3087 = vmatpush1.msra.mxu0 0.0
  %3088 = vmatprep.subr.mxu0 0.0
  %3089 = vmatpush1.msra.mxu0 0.0
  %3090 = vmatprep.subr.mxu0 0.0
  %3091 = vmatpush1.msra.mxu0 0.0
  %3092 = vmatprep.subr.mxu0 0.0
  %3093 = vmatpush1.msra.mxu0 0.0
  %3094 = vmatprep.subr.mxu0 0.0
  %3095 = vmatpush1.msra.mxu0 0.0
  %3096 = vmatprep.subr.mxu0 0.0
  %3097 = vmatpush1.msra.mxu0 0.0
  %3098 = vmatprep.subr.mxu0 0.0
  %3099 = vmatpush1.msra.mxu0 0.0
  %3100 = vmatprep.subr.mxu0 0.0
  %3101 = vmatpush1.msra.mxu0 0.0
  %3102 = vmatprep.subr.mxu0 0.0
  %3103 = vmatpush1.msra.mxu0 0.0
  %3104 = vmatprep.subr.mxu0 0.0
  %3105 = vmatpush1.msra.mxu0 0.0
  %3106 = vmatprep.subr.mxu0 0.0
  %3107 = vmatpush1.msra.mxu0 0.0
  %3108 = vmatprep.subr.mxu0 0.0
  %3109 = vmatpush1.msra.mxu0 0.0
  %3110 = vmatprep.subr.mxu0 0.0
  %3111 = vmatpush1.msra.mxu0 0.0
  %3112 = vmatprep.subr.mxu0 0.0
  %3113 = vmatpush1.msra.mxu0 0.0
  %3114 = vmatprep.mubr.f32.mxu0 0.0
  %v3115 = vand.u32 %v971, 4294901760
  %v3116 = vsub.f32 %v971, %v3115
  %v3117 = vand.u32 %v3116, 4294901760
  %3118 = vmatmul.mubr.f32.gmra.mrb[0].mxu0 %v3117
  %v3119 = vpop.f32.mrb[0].mxu0
  %v3120 = vadd.f32 %v3046, %v3119
  %v3121 = vpop.f32.mrb[0].mxu0
  %3122 = vdwg.mxu0
  %3123 = vmatprep.subr.mxu0 0.0
  %v3124 = vand.u32 %v1920, 4294901760
  %v3125 = vsub.f32 %v1920, %v3124
  %v3126 = vand.u32 %v3125, 4294901760
  %3127 = vmatpush1.msra.mxu0 %v3126
  %3128 = vmatprep.subr.mxu0 0.0
  %3129 = vmatpush1.msra.mxu0 0.0
  %3130 = vmatprep.subr.mxu0 0.0
  %3131 = vmatpush1.msra.mxu0 0.0
  %3132 = vmatprep.subr.mxu0 0.0
  %3133 = vmatpush1.msra.mxu0 0.0
  %3134 = vmatprep.subr.mxu0 0.0
  %3135 = vmatpush1.msra.mxu0 0.0
  %3136 = vmatprep.subr.mxu0 0.0
  %3137 = vmatpush1.msra.mxu0 0.0
  %3138 = vmatprep.subr.mxu0 0.0
  %3139 = vmatpush1.msra.mxu0 0.0
  %3140 = vmatprep.subr.mxu0 0.0
  %3141 = vmatpush1.msra.mxu0 0.0
  %3142 = vmatprep.subr.mxu0 0.0
  %3143 = vmatpush1.msra.mxu0 0.0
  %3144 = vmatprep.subr.mxu0 0.0
  %3145 = vmatpush1.msra.mxu0 0.0
  %3146 = vmatprep.subr.mxu0 0.0
  %3147 = vmatpush1.msra.mxu0 0.0
  %3148 = vmatprep.subr.mxu0 0.0
  %3149 = vmatpush1.msra.mxu0 0.0
  %3150 = vmatprep.subr.mxu0 0.0
  %3151 = vmatpush1.msra.mxu0 0.0
  %3152 = vmatprep.subr.mxu0 0.0
  %3153 = vmatpush1.msra.mxu0 0.0
  %3154 = vmatprep.subr.mxu0 0.0
  %3155 = vmatpush1.msra.mxu0 0.0
  %3156 = vmatprep.subr.mxu0 0.0
  %3157 = vmatpush1.msra.mxu0 0.0
  %3158 = vmatprep.subr.mxu0 0.0
  %3159 = vmatpush1.msra.mxu0 0.0
  %3160 = vmatprep.subr.mxu0 0.0
  %3161 = vmatpush1.msra.mxu0 0.0
  %3162 = vmatprep.subr.mxu0 0.0
  %3163 = vmatpush1.msra.mxu0 0.0
  %3164 = vmatprep.subr.mxu0 0.0
  %3165 = vmatpush1.msra.mxu0 0.0
  %3166 = vmatprep.subr.mxu0 0.0
  %3167 = vmatpush1.msra.mxu0 0.0
  %3168 = vmatprep.subr.mxu0 0.0
  %3169 = vmatpush1.msra.mxu0 0.0
  %3170 = vmatprep.subr.mxu0 0.0
  %3171 = vmatpush1.msra.mxu0 0.0
  %3172 = vmatprep.subr.mxu0 0.0
  %3173 = vmatpush1.msra.mxu0 0.0
  %3174 = vmatprep.subr.mxu0 0.0
  %3175 = vmatpush1.msra.mxu0 0.0
  %3176 = vmatprep.subr.mxu0 0.0
  %3177 = vmatpush1.msra.mxu0 0.0
  %3178 = vmatprep.subr.mxu0 0.0
  %3179 = vmatpush1.msra.mxu0 0.0
  %3180 = vmatprep.subr.mxu0 0.0
  %3181 = vmatpush1.msra.mxu0 0.0
  %3182 = vmatprep.subr.mxu0 0.0
  %3183 = vmatpush1.msra.mxu0 0.0
  %3184 = vmatprep.subr.mxu0 0.0
  %3185 = vmatpush1.msra.mxu0 0.0
  %3186 = vmatprep.subr.mxu0 0.0
  %3187 = vmatpush1.msra.mxu0 0.0
  %3188 = vmatprep.subr.mxu0 0.0
  %3189 = vmatpush1.msra.mxu0 0.0
  %3190 = vmatprep.mubr.f32.mxu0 0.0
  %v3191 = vand.u32 %v971, 4294901760
  %3192 = vmatmul.mubr.f32.gmra.mrb[0].mxu0 %v3191
  %v3193 = vpop.f32.mrb[0].mxu0
  %v3194 = vadd.f32 %v3120, %v3193
  %v3195 = vpop.f32.mrb[0].mxu0
  %3196 = vdwg.mxu0
  %3197 = vmatprep.subr.mxu0 0.0
  %v3198 = vand.u32 %v1920, 4294901760
  %3199 = vmatpush1.msra.mxu0 %v3198
  %3200 = vmatprep.subr.mxu0 0.0
  %3201 = vmatpush1.msra.mxu0 0.0
  %3202 = vmatprep.subr.mxu0 0.0
  %3203 = vmatpush1.msra.mxu0 0.0
  %3204 = vmatprep.subr.mxu0 0.0
  %3205 = vmatpush1.msra.mxu0 0.0
  %3206 = vmatprep.subr.mxu0 0.0
  %3207 = vmatpush1.msra.mxu0 0.0
  %3208 = vmatprep.subr.mxu0 0.0
  %3209 = vmatpush1.msra.mxu0 0.0
  %3210 = vmatprep.subr.mxu0 0.0
  %3211 = vmatpush1.msra.mxu0 0.0
  %3212 = vmatprep.subr.mxu0 0.0
  %3213 = vmatpush1.msra.mxu0 0.0
  %3214 = vmatprep.subr.mxu0 0.0
  %3215 = vmatpush1.msra.mxu0 0.0
  %3216 = vmatprep.subr.mxu0 0.0
  %3217 = vmatpush1.msra.mxu0 0.0
  %3218 = vmatprep.subr.mxu0 0.0
  %3219 = vmatpush1.msra.mxu0 0.0
  %3220 = vmatprep.subr.mxu0 0.0
  %3221 = vmatpush1.msra.mxu0 0.0
  %3222 = vmatprep.subr.mxu0 0.0
  %3223 = vmatpush1.msra.mxu0 0.0
  %3224 = vmatprep.subr.mxu0 0.0
  %3225 = vmatpush1.msra.mxu0 0.0
  %3226 = vmatprep.subr.mxu0 0.0
  %3227 = vmatpush1.msra.mxu0 0.0
  %3228 = vmatprep.subr.mxu0 0.0
  %3229 = vmatpush1.msra.mxu0 0.0
  %3230 = vmatprep.subr.mxu0 0.0
  %3231 = vmatpush1.msra.mxu0 0.0
  %3232 = vmatprep.subr.mxu0 0.0
  %3233 = vmatpush1.msra.mxu0 0.0
  %3234 = vmatprep.subr.mxu0 0.0
  %3235 = vmatpush1.msra.mxu0 0.0
  %3236 = vmatprep.subr.mxu0 0.0
  %3237 = vmatpush1.msra.mxu0 0.0
  %3238 = vmatprep.subr.mxu0 0.0
  %3239 = vmatpush1.msra.mxu0 0.0
  %3240 = vmatprep.subr.mxu0 0.0
  %3241 = vmatpush1.msra.mxu0 0.0
  %3242 = vmatprep.subr.mxu0 0.0
  %3243 = vmatpush1.msra.mxu0 0.0
  %3244 = vmatprep.subr.mxu0 0.0
  %3245 = vmatpush1.msra.mxu0 0.0
  %3246 = vmatprep.subr.mxu0 0.0
  %3247 = vmatpush1.msra.mxu0 0.0
  %3248 = vmatprep.subr.mxu0 0.0
  %3249 = vmatpush1.msra.mxu0 0.0
  %3250 = vmatprep.subr.mxu0 0.0
  %3251 = vmatpush1.msra.mxu0 0.0
  %3252 = vmatprep.subr.mxu0 0.0
  %3253 = vmatpush1.msra.mxu0 0.0
  %3254 = vmatprep.subr.mxu0 0.0
  %3255 = vmatpush1.msra.mxu0 0.0
  %3256 = vmatprep.subr.mxu0 0.0
  %3257 = vmatpush1.msra.mxu0 0.0
  %3258 = vmatprep.subr.mxu0 0.0
  %3259 = vmatpush1.msra.mxu0 0.0
  %3260 = vmatprep.subr.mxu0 0.0
  %3261 = vmatpush1.msra.mxu0 0.0
  %3262 = vmatprep.mubr.f32.mxu0 0.0
  %v3263 = vand.u32 %v971, 4294901760
  %3264 = vmatmul.mubr.f32.gmra.mrb[0].mxu0 %v3263
  %v3265 = vpop.f32.mrb[0].mxu0
  %v3266 = vadd.f32 %v3194, %v3265
  %v3267 = vpop.f32.mrb[0].mxu0
  %3268 = vdwg.mxu0
  %v3269 = vmax.f32 %v3266, 0.0
  %v3271 = vsel %vm52, %v3269, 0
  %3273 = vmatprep.subr.mxu0 0.0
  %v3274 = vand.u32 %v3271, 4294901760
  %3275 = vmatpush1.msra.mxu0 %v3274
  %3276 = vmatprep.subr.mxu0 0.0
  %3277 = vmatpush1.msra.mxu0 0.0
  %3278 = vmatprep.subr.mxu0 0.0
  %3279 = vmatpush1.msra.mxu0 0.0
  %3280 = vmatprep.subr.mxu0 0.0
  %3281 = vmatpush1.msra.mxu0 0.0
  %3282 = vmatprep.subr.mxu0 0.0
  %3283 = vmatpush1.msra.mxu0 0.0
  %3284 = vmatprep.subr.mxu0 0.0
  %3285 = vmatpush1.msra.mxu0 0.0
  %3286 = vmatprep.subr.mxu0 0.0
  %3287 = vmatpush1.msra.mxu0 0.0
  %3288 = vmatprep.subr.mxu0 0.0
  %3289 = vmatpush1.msra.mxu0 0.0
  %3290 = vmatprep.subr.mxu0 0.0
  %3291 = vmatpush1.msra.mxu0 0.0
  %3292 = vmatprep.subr.mxu0 0.0
  %3293 = vmatpush1.msra.mxu0 0.0
  %3294 = vmatprep.subr.mxu0 0.0
  %3295 = vmatpush1.msra.mxu0 0.0
  %3296 = vmatprep.subr.mxu0 0.0
  %3297 = vmatpush1.msra.mxu0 0.0
  %3298 = vmatprep.subr.mxu0 0.0
  %3299 = vmatpush1.msra.mxu0 0.0
  %3300 = vmatprep.subr.mxu0 0.0
  %3301 = vmatpush1.msra.mxu0 0.0
  %3302 = vmatprep.subr.mxu0 0.0
  %3303 = vmatpush1.msra.mxu0 0.0
  %3304 = vmatprep.subr.mxu0 0.0
  %3305 = vmatpush1.msra.mxu0 0.0
  %3306 = vmatprep.subr.mxu0 0.0
  %3307 = vmatpush1.msra.mxu0 0.0
  %3308 = vmatprep.subr.mxu0 0.0
  %3309 = vmatpush1.msra.mxu0 0.0
  %3310 = vmatprep.subr.mxu0 0.0
  %3311 = vmatpush1.msra.mxu0 0.0
  %3312 = vmatprep.subr.mxu0 0.0
  %3313 = vmatpush1.msra.mxu0 0.0
  %3314 = vmatprep.subr.mxu0 0.0
  %3315 = vmatpush1.msra.mxu0 0.0
  %3316 = vmatprep.subr.mxu0 0.0
  %3317 = vmatpush1.msra.mxu0 0.0
  %3318 = vmatprep.subr.mxu0 0.0
  %3319 = vmatpush1.msra.mxu0 0.0
  %3320 = vmatprep.subr.mxu0 0.0
  %3321 = vmatpush1.msra.mxu0 0.0
  %3322 = vmatprep.subr.mxu0 0.0
  %3323 = vmatpush1.msra.mxu0 0.0
  %3324 = vmatprep.subr.mxu0 0.0
  %3325 = vmatpush1.msra.mxu0 0.0
  %3326 = vmatprep.subr.mxu0 0.0
  %3327 = vmatpush1.msra.mxu0 0.0
  %3328 = vmatprep.subr.mxu0 0.0
  %3329 = vmatpush1.msra.mxu0 0.0
  %3330 = vmatprep.subr.mxu0 0.0
  %3331 = vmatpush1.msra.mxu0 0.0
  %3332 = vmatprep.subr.mxu0 0.0
  %3333 = vmatpush1.msra.mxu0 0.0
  %3334 = vmatprep.subr.mxu0 0.0
  %3335 = vmatpush1.msra.mxu0 0.0
  %3336 = vmatprep.subr.mxu0 0.0
  %3337 = vmatpush1.msra.mxu0 0.0
  %3338 = vmatprep.mubr.f32.mxu0 0.0
  %v3339 = vand.u32 %v1421, 4294901760
  %v3340 = vsub.f32 %v1421, %v3339
  %v3341 = vand.u32 %v3340, 4294901760
  %v3342 = vsub.f32 %v3340, %v3341
  %v3343 = vand.u32 %v3342, 4294901760
  %3344 = vmatmul.mubr.f32.gmra.mrb[0].mxu0 %v3343
  %v3345 = vpop.f32.mrb[0].mxu0
  %v3346 = vadd.f32 %v47, %v3345
  %v3347 = vpop.f32.mrb[0].mxu0
  %3348 = vdwg.mxu0
  %3349 = vmatprep.subr.mxu0 0.0
  %v3350 = vand.u32 %v3271, 4294901760
  %v3351 = vsub.f32 %v3271, %v3350
  %v3352 = vand.u32 %v3351, 4294901760
  %v3353 = vsub.f32 %v3351, %v3352
  %v3354 = vand.u32 %v3353, 4294901760
  %3355 = vmatpush1.msra.mxu0 %v3354
  %3356 = vmatprep.subr.mxu0 0.0
  %3357 = vmatpush1.msra.mxu0 0.0
  %3358 = vmatprep.subr.mxu0 0.0
  %3359 = vmatpush1.msra.mxu0 0.0
  %3360 = vmatprep.subr.mxu0 0.0
  %3361 = vmatpush1.msra.mxu0 0.0
  %3362 = vmatprep.subr.mxu0 0.0
  %3363 = vmatpush1.msra.mxu0 0.0
  %3364 = vmatprep.subr.mxu0 0.0
  %3365 = vmatpush1.msra.mxu0 0.0
  %3366 = vmatprep.subr.mxu0 0.0
  %3367 = vmatpush1.msra.mxu0 0.0
  %3368 = vmatprep.subr.mxu0 0.0
  %3369 = vmatpush1.msra.mxu0 0.0
  %3370 = vmatprep.subr.mxu0 0.0
  %3371 = vmatpush1.msra.mxu0 0.0
  %3372 = vmatprep.subr.mxu0 0.0
  %3373 = vmatpush1.msra.mxu0 0.0
  %3374 = vmatprep.subr.mxu0 0.0
  %3375 = vmatpush1.msra.mxu0 0.0
  %3376 = vmatprep.subr.mxu0 0.0
  %3377 = vmatpush1.msra.mxu0 0.0
  %3378 = vmatprep.subr.mxu0 0.0
  %3379 = vmatpush1.msra.mxu0 0.0
  %3380 = vmatprep.subr.mxu0 0.0
  %3381 = vmatpush1.msra.mxu0 0.0
  %3382 = vmatprep.subr.mxu0 0.0
  %3383 = vmatpush1.msra.mxu0 0.0
  %3384 = vmatprep.subr.mxu0 0.0
  %3385 = vmatpush1.msra.mxu0 0.0
  %3386 = vmatprep.subr.mxu0 0.0
  %3387 = vmatpush1.msra.mxu0 0.0
  %3388 = vmatprep.subr.mxu0 0.0
  %3389 = vmatpush1.msra.mxu0 0.0
  %3390 = vmatprep.subr.mxu0 0.0
  %3391 = vmatpush1.msra.mxu0 0.0
  %3392 = vmatprep.subr.mxu0 0.0
  %3393 = vmatpush1.msra.mxu0 0.0
  %3394 = vmatprep.subr.mxu0 0.0
  %3395 = vmatpush1.msra.mxu0 0.0
  %3396 = vmatprep.subr.mxu0 0.0
  %3397 = vmatpush1.msra.mxu0 0.0
  %3398 = vmatprep.subr.mxu0 0.0
  %3399 = vmatpush1.msra.mxu0 0.0
  %3400 = vmatprep.subr.mxu0 0.0
  %3401 = vmatpush1.msra.mxu0 0.0
  %3402 = vmatprep.subr.mxu0 0.0
  %3403 = vmatpush1.msra.mxu0 0.0
  %3404 = vmatprep.subr.mxu0 0.0
  %3405 = vmatpush1.msra.mxu0 0.0
  %3406 = vmatprep.subr.mxu0 0.0
  %3407 = vmatpush1.msra.mxu0 0.0
  %3408 = vmatprep.subr.mxu0 0.0
  %3409 = vmatpush1.msra.mxu0 0.0
  %3410 = vmatprep.subr.mxu0 0.0
  %3411 = vmatpush1.msra.mxu0 0.0
  %3412 = vmatprep.subr.mxu0 0.0
  %3413 = vmatpush1.msra.mxu0 0.0
  %3414 = vmatprep.subr.mxu0 0.0
  %3415 = vmatpush1.msra.mxu0 0.0
  %3416 = vmatprep.subr.mxu0 0.0
  %3417 = vmatpush1.msra.mxu0 0.0
  %3418 = vmatprep.mubr.f32.mxu0 0.0
  %v3419 = vand.u32 %v1421, 4294901760
  %3420 = vmatmul.mubr.f32.gmra.mrb[0].mxu0 %v3419
  %v3421 = vpop.f32.mrb[0].mxu0
  %v3422 = vadd.f32 %v3346, %v3421
  %v3423 = vpop.f32.mrb[0].mxu0
  %3424 = vdwg.mxu0
  %3425 = vmatprep.subr.mxu0 0.0
  %v3426 = vand.u32 %v3271, 4294901760
  %v3427 = vsub.f32 %v3271, %v3426
  %3428 = vmatpush1.msra.mxu0 %v3427
  %3429 = vmatprep.subr.mxu0 0.0
  %3430 = vmatpush1.msra.mxu0 0.0
  %3431 = vmatprep.subr.mxu0 0.0
  %3432 = vmatpush1.msra.mxu0 0.0
  %3433 = vmatprep.subr.mxu0 0.0
  %3434 = vmatpush1.msra.mxu0 0.0
  %3435 = vmatprep.subr.mxu0 0.0
  %3436 = vmatpush1.msra.mxu0 0.0
  %3437 = vmatprep.subr.mxu0 0.0
  %3438 = vmatpush1.msra.mxu0 0.0
  %3439 = vmatprep.subr.mxu0 0.0
  %3440 = vmatpush1.msra.mxu0 0.0
  %3441 = vmatprep.subr.mxu0 0.0
  %3442 = vmatpush1.msra.mxu0 0.0
  %3443 = vmatprep.subr.mxu0 0.0
  %3444 = vmatpush1.msra.mxu0 0.0
  %3445 = vmatprep.subr.mxu0 0.0
  %3446 = vmatpush1.msra.mxu0 0.0
  %3447 = vmatprep.subr.mxu0 0.0
  %3448 = vmatpush1.msra.mxu0 0.0
  %3449 = vmatprep.subr.mxu0 0.0
  %3450 = vmatpush1.msra.mxu0 0.0
  %3451 = vmatprep.subr.mxu0 0.0
  %3452 = vmatpush1.msra.mxu0 0.0
  %3453 = vmatprep.subr.mxu0 0.0
  %3454 = vmatpush1.msra.mxu0 0.0
  %3455 = vmatprep.subr.mxu0 0.0
  %3456 = vmatpush1.msra.mxu0 0.0
  %3457 = vmatprep.subr.mxu0 0.0
  %3458 = vmatpush1.msra.mxu0 0.0
  %3459 = vmatprep.subr.mxu0 0.0
  %3460 = vmatpush1.msra.mxu0 0.0
  %3461 = vmatprep.subr.mxu0 0.0
  %3462 = vmatpush1.msra.mxu0 0.0
  %3463 = vmatprep.subr.mxu0 0.0
  %3464 = vmatpush1.msra.mxu0 0.0
  %3465 = vmatprep.subr.mxu0 0.0
  %3466 = vmatpush1.msra.mxu0 0.0
  %3467 = vmatprep.subr.mxu0 0.0
  %3468 = vmatpush1.msra.mxu0 0.0
  %3469 = vmatprep.subr.mxu0 0.0
  %3470 = vmatpush1.msra.mxu0 0.0
  %3471 = vmatprep.subr.mxu0 0.0
  %3472 = vmatpush1.msra.mxu0 0.0
  %3473 = vmatprep.subr.mxu0 0.0
  %3474 = vmatpush1.msra.mxu0 0.0
  %3475 = vmatprep.subr.mxu0 0.0
  %3476 = vmatpush1.msra.mxu0 0.0
  %3477 = vmatprep.subr.mxu0 0.0
  %3478 = vmatpush1.msra.mxu0 0.0
  %3479 = vmatprep.subr.mxu0 0.0
  %3480 = vmatpush1.msra.mxu0 0.0
  %3481 = vmatprep.subr.mxu0 0.0
  %3482 = vmatpush1.msra.mxu0 0.0
  %3483 = vmatprep.subr.mxu0 0.0
  %3484 = vmatpush1.msra.mxu0 0.0
  %3485 = vmatprep.subr.mxu0 0.0
  %3486 = vmatpush1.msra.mxu0 0.0
  %3487 = vmatprep.subr.mxu0 0.0
  %3488 = vmatpush1.msra.mxu0 0.0
  %3489 = vmatprep.subr.mxu0 0.0
  %3490 = vmatpush1.msra.mxu0 0.0
  %3491 = vmatprep.mubr.f32.mxu0 0.0
  %v3492 = vand.u32 %v1421, 4294901760
  %v3493 = vsub.f32 %v1421, %v3492
  %3494 = vmatmul.mubr.f32.gmra.mrb[0].mxu0 %v3493
  %v3495 = vpop.f32.mrb[0].mxu0
  %v3496 = vadd.f32 %v3422, %v3495
  %v3497 = vpop.f32.mrb[0].mxu0
  %3498 = vdwg.mxu0
  %3499 = vmatprep.subr.mxu0 0.0
  %v3500 = vand.u32 %v3271, 4294901760
  %3501 = vmatpush1.msra.mxu0 %v3500
  %3502 = vmatprep.subr.mxu0 0.0
  %3503 = vmatpush1.msra.mxu0 0.0
  %3504 = vmatprep.subr.mxu0 0.0
  %3505 = vmatpush1.msra.mxu0 0.0
  %3506 = vmatprep.subr.mxu0 0.0
  %3507 = vmatpush1.msra.mxu0 0.0
  %3508 = vmatprep.subr.mxu0 0.0
  %3509 = vmatpush1.msra.mxu0 0.0
  %3510 = vmatprep.subr.mxu0 0.0
  %3511 = vmatpush1.msra.mxu0 0.0
  %3512 = vmatprep.subr.mxu0 0.0
  %3513 = vmatpush1.msra.mxu0 0.0
  %3514 = vmatprep.subr.mxu0 0.0
  %3515 = vmatpush1.msra.mxu0 0.0
  %3516 = vmatprep.subr.mxu0 0.0
  %3517 = vmatpush1.msra.mxu0 0.0
  %3518 = vmatprep.subr.mxu0 0.0
  %3519 = vmatpush1.msra.mxu0 0.0
  %3520 = vmatprep.subr.mxu0 0.0
  %3521 = vmatpush1.msra.mxu0 0.0
  %3522 = vmatprep.subr.mxu0 0.0
  %3523 = vmatpush1.msra.mxu0 0.0
  %3524 = vmatprep.subr.mxu0 0.0
  %3525 = vmatpush1.msra.mxu0 0.0
  %3526 = vmatprep.subr.mxu0 0.0
  %3527 = vmatpush1.msra.mxu0 0.0
  %3528 = vmatprep.subr.mxu0 0.0
  %3529 = vmatpush1.msra.mxu0 0.0
  %3530 = vmatprep.subr.mxu0 0.0
  %3531 = vmatpush1.msra.mxu0 0.0
  %3532 = vmatprep.subr.mxu0 0.0
  %3533 = vmatpush1.msra.mxu0 0.0
  %3534 = vmatprep.subr.mxu0 0.0
  %3535 = vmatpush1.msra.mxu0 0.0
  %3536 = vmatprep.subr.mxu0 0.0
  %3537 = vmatpush1.msra.mxu0 0.0
  %3538 = vmatprep.subr.mxu0 0.0
  %3539 = vmatpush1.msra.mxu0 0.0
  %3540 = vmatprep.subr.mxu0 0.0
  %3541 = vmatpush1.msra.mxu0 0.0
  %3542 = vmatprep.subr.mxu0 0.0
  %3543 = vmatpush1.msra.mxu0 0.0
  %3544 = vmatprep.subr.mxu0 0.0
  %3545 = vmatpush1.msra.mxu0 0.0
  %3546 = vmatprep.subr.mxu0 0.0
  %3547 = vmatpush1.msra.mxu0 0.0
  %3548 = vmatprep.subr.mxu0 0.0
  %3549 = vmatpush1.msra.mxu0 0.0
  %3550 = vmatprep.subr.mxu0 0.0
  %3551 = vmatpush1.msra.mxu0 0.0
  %3552 = vmatprep.subr.mxu0 0.0
  %3553 = vmatpush1.msra.mxu0 0.0
  %3554 = vmatprep.subr.mxu0 0.0
  %3555 = vmatpush1.msra.mxu0 0.0
  %3556 = vmatprep.subr.mxu0 0.0
  %3557 = vmatpush1.msra.mxu0 0.0
  %3558 = vmatprep.subr.mxu0 0.0
  %3559 = vmatpush1.msra.mxu0 0.0
  %3560 = vmatprep.subr.mxu0 0.0
  %3561 = vmatpush1.msra.mxu0 0.0
  %3562 = vmatprep.subr.mxu0 0.0
  %3563 = vmatpush1.msra.mxu0 0.0
  %3564 = vmatprep.mubr.f32.mxu0 0.0
  %v3565 = vand.u32 %v1421, 4294901760
  %v3566 = vsub.f32 %v1421, %v3565
  %v3567 = vand.u32 %v3566, 4294901760
  %3568 = vmatmul.mubr.f32.gmra.mrb[0].mxu0 %v3567
  %v3569 = vpop.f32.mrb[0].mxu0
  %v3570 = vadd.f32 %v3496, %v3569
  %v3571 = vpop.f32.mrb[0].mxu0
  %3572 = vdwg.mxu0
  %3573 = vmatprep.subr.mxu0 0.0
  %v3574 = vand.u32 %v3271, 4294901760
  %v3575 = vsub.f32 %v3271, %v3574
  %v3576 = vand.u32 %v3575, 4294901760
  %3577 = vmatpush1.msra.mxu0 %v3576
  %3578 = vmatprep.subr.mxu0 0.0
  %3579 = vmatpush1.msra.mxu0 0.0
  %3580 = vmatprep.subr.mxu0 0.0
  %3581 = vmatpush1.msra.mxu0 0.0
  %3582 = vmatprep.subr.mxu0 0.0
  %3583 = vmatpush1.msra.mxu0 0.0
  %3584 = vmatprep.subr.mxu0 0.0
  %3585 = vmatpush1.msra.mxu0 0.0
  %3586 = vmatprep.subr.mxu0 0.0
  %3587 = vmatpush1.msra.mxu0 0.0
  %3588 = vmatprep.subr.mxu0 0.0
  %3589 = vmatpush1.msra.mxu0 0.0
  %3590 = vmatprep.subr.mxu0 0.0
  %3591 = vmatpush1.msra.mxu0 0.0
  %3592 = vmatprep.subr.mxu0 0.0
  %3593 = vmatpush1.msra.mxu0 0.0
  %3594 = vmatprep.subr.mxu0 0.0
  %3595 = vmatpush1.msra.mxu0 0.0
  %3596 = vmatprep.subr.mxu0 0.0
  %3597 = vmatpush1.msra.mxu0 0.0
  %3598 = vmatprep.subr.mxu0 0.0
  %3599 = vmatpush1.msra.mxu0 0.0
  %3600 = vmatprep.subr.mxu0 0.0
  %3601 = vmatpush1.msra.mxu0 0.0
  %3602 = vmatprep.subr.mxu0 0.0
  %3603 = vmatpush1.msra.mxu0 0.0
  %3604 = vmatprep.subr.mxu0 0.0
  %3605 = vmatpush1.msra.mxu0 0.0
  %3606 = vmatprep.subr.mxu0 0.0
  %3607 = vmatpush1.msra.mxu0 0.0
  %3608 = vmatprep.subr.mxu0 0.0
  %3609 = vmatpush1.msra.mxu0 0.0
  %3610 = vmatprep.subr.mxu0 0.0
  %3611 = vmatpush1.msra.mxu0 0.0
  %3612 = vmatprep.subr.mxu0 0.0
  %3613 = vmatpush1.msra.mxu0 0.0
  %3614 = vmatprep.subr.mxu0 0.0
  %3615 = vmatpush1.msra.mxu0 0.0
  %3616 = vmatprep.subr.mxu0 0.0
  %3617 = vmatpush1.msra.mxu0 0.0
  %3618 = vmatprep.subr.mxu0 0.0
  %3619 = vmatpush1.msra.mxu0 0.0
  %3620 = vmatprep.subr.mxu0 0.0
  %3621 = vmatpush1.msra.mxu0 0.0
  %3622 = vmatprep.subr.mxu0 0.0
  %3623 = vmatpush1.msra.mxu0 0.0
  %3624 = vmatprep.subr.mxu0 0.0
  %3625 = vmatpush1.msra.mxu0 0.0
  %3626 = vmatprep.subr.mxu0 0.0
  %3627 = vmatpush1.msra.mxu0 0.0
  %3628 = vmatprep.subr.mxu0 0.0
  %3629 = vmatpush1.msra.mxu0 0.0
  %3630 = vmatprep.subr.mxu0 0.0
  %3631 = vmatpush1.msra.mxu0 0.0
  %3632 = vmatprep.subr.mxu0 0.0
  %3633 = vmatpush1.msra.mxu0 0.0
  %3634 = vmatprep.subr.mxu0 0.0
  %3635 = vmatpush1.msra.mxu0 0.0
  %3636 = vmatprep.subr.mxu0 0.0
  %3637 = vmatpush1.msra.mxu0 0.0
  %3638 = vmatprep.subr.mxu0 0.0
  %3639 = vmatpush1.msra.mxu0 0.0
  %3640 = vmatprep.mubr.f32.mxu0 0.0
  %v3641 = vand.u32 %v1421, 4294901760
  %3642 = vmatmul.mubr.f32.gmra.mrb[0].mxu0 %v3641
  %v3643 = vpop.f32.mrb[0].mxu0
  %v3644 = vadd.f32 %v3570, %v3643
  %v3645 = vpop.f32.mrb[0].mxu0
  %3646 = vdwg.mxu0
  %3647 = vmatprep.subr.mxu0 0.0
  %v3648 = vand.u32 %v3271, 4294901760
  %3649 = vmatpush1.msra.mxu0 %v3648
  %3650 = vmatprep.subr.mxu0 0.0
  %3651 = vmatpush1.msra.mxu0 0.0
  %3652 = vmatprep.subr.mxu0 0.0
  %3653 = vmatpush1.msra.mxu0 0.0
  %3654 = vmatprep.subr.mxu0 0.0
  %3655 = vmatpush1.msra.mxu0 0.0
  %3656 = vmatprep.subr.mxu0 0.0
  %3657 = vmatpush1.msra.mxu0 0.0
  %3658 = vmatprep.subr.mxu0 0.0
  %3659 = vmatpush1.msra.mxu0 0.0
  %3660 = vmatprep.subr.mxu0 0.0
  %3661 = vmatpush1.msra.mxu0 0.0
  %3662 = vmatprep.subr.mxu0 0.0
  %3663 = vmatpush1.msra.mxu0 0.0
  %3664 = vmatprep.subr.mxu0 0.0
  %3665 = vmatpush1.msra.mxu0 0.0
  %3666 = vmatprep.subr.mxu0 0.0
  %3667 = vmatpush1.msra.mxu0 0.0
  %3668 = vmatprep.subr.mxu0 0.0
  %3669 = vmatpush1.msra.mxu0 0.0
  %3670 = vmatprep.subr.mxu0 0.0
  %3671 = vmatpush1.msra.mxu0 0.0
  %3672 = vmatprep.subr.mxu0 0.0
  %3673 = vmatpush1.msra.mxu0 0.0
  %3674 = vmatprep.subr.mxu0 0.0
  %3675 = vmatpush1.msra.mxu0 0.0
  %3676 = vmatprep.subr.mxu0 0.0
  %3677 = vmatpush1.msra.mxu0 0.0
  %3678 = vmatprep.subr.mxu0 0.0
  %3679 = vmatpush1.msra.mxu0 0.0
  %3680 = vmatprep.subr.mxu0 0.0
  %3681 = vmatpush1.msra.mxu0 0.0
  %3682 = vmatprep.subr.mxu0 0.0
  %3683 = vmatpush1.msra.mxu0 0.0
  %3684 = vmatprep.subr.mxu0 0.0
  %3685 = vmatpush1.msra.mxu0 0.0
  %3686 = vmatprep.subr.mxu0 0.0
  %3687 = vmatpush1.msra.mxu0 0.0
  %3688 = vmatprep.subr.mxu0 0.0
  %3689 = vmatpush1.msra.mxu0 0.0
  %3690 = vmatprep.subr.mxu0 0.0
  %3691 = vmatpush1.msra.mxu0 0.0
  %3692 = vmatprep.subr.mxu0 0.0
  %3693 = vmatpush1.msra.mxu0 0.0
  %3694 = vmatprep.subr.mxu0 0.0
  %3695 = vmatpush1.msra.mxu0 0.0
  %3696 = vmatprep.subr.mxu0 0.0
  %3697 = vmatpush1.msra.mxu0 0.0
  %3698 = vmatprep.subr.mxu0 0.0
  %3699 = vmatpush1.msra.mxu0 0.0
  %3700 = vmatprep.subr.mxu0 0.0
  %3701 = vmatpush1.msra.mxu0 0.0
  %3702 = vmatprep.subr.mxu0 0.0
  %3703 = vmatpush1.msra.mxu0 0.0
  %3704 = vmatprep.subr.mxu0 0.0
  %3705 = vmatpush1.msra.mxu0 0.0
  %3706 = vmatprep.subr.mxu0 0.0
  %3707 = vmatpush1.msra.mxu0 0.0
  %3708 = vmatprep.subr.mxu0 0.0
  %3709 = vmatpush1.msra.mxu0 0.0
  %3710 = vmatprep.subr.mxu0 0.0
  %3711 = vmatpush1.msra.mxu0 0.0
  %3712 = vmatprep.mubr.f32.mxu0 0.0
  %v3713 = vand.u32 %v1421, 4294901760
  %3714 = vmatmul.mubr.f32.gmra.mrb[0].mxu0 %v3713
  %v3715 = vpop.f32.mrb[0].mxu0
  %v3716 = vadd.f32 %v3644, %v3715
  %v3717 = vpop.f32.mrb[0].mxu0
  %3718 = vdwg.mxu0
  %v3719 = vsub.f32 0.0, %v3716
  %v3720 = vmul.f32 %v3719, 1.442695
  %v3721 = vpow.pop %v3720
  %v3722 = vadd.f32 %v3721, 1.0
  %v3723 = vrcp.pop %v3722
  %3725 = vset.pattern.permute.xlu0 0
  %3726 = vperm.xlu0 %3725, %v2822
  %v3727 = vpop.permute.xlu0 %3726
  %v3729 = vmul.f32 %v3727, %v38
  %v3730 = vmul.f32 %v3727, %v1883
  %v3733 = vcombine.low %v3729, %v3730
  %v3735 = vadd.f32 %v1909, %v3733
  %3737 = vset.pattern.permute.xlu0 0
  %3738 = vperm.xlu0 %3737, %v3723
  %v3739 = vpop.permute.xlu0 %3738
  %v3741 = vmul.f32 %v3739, %v39
  %v3742 = vmul.f32 %v3739, %v1898
  %v3745 = vcombine.low %v3741, %v3742
  %v3747 = vadd.f32 %v3735, %v3745
  %s3748 = scalar_lea.vmem %s11, 8
  %3749 = vst [vmem:[%s3748] sm:$0xff] %v3747
  // Predicated region
  $region46: #{adaptive_2d_position_encoder.1} parent=0 // pred_check
    _
  $region47: #{adaptive_2d_position_encoder.1} parent=0 // pred_check_branch
    %3751 = sbr.rel (0) target = $region49
  $region48: #{adaptive_2d_position_encoder.1} parent=0 // pred_region
    _
  $region49: #{adaptive_2d_position_encoder.1} parent=0 // pred_fallthru
    _
  // Predicated region
  $region50: #{adaptive_2d_position_encoder.1} parent=0 // pred_check
    _
  $region51: #{adaptive_2d_position_encoder.1} parent=0 // pred_check_branch
    %3753 = sbr.rel (0) target = $region53
  $region52: #{adaptive_2d_position_encoder.1} parent=0 // pred_region
    _
  $region53: #{adaptive_2d_position_encoder.1} parent=0 // pred_fallthru
    _

</llo_original>
